<compile_context>
chip_gen: v7x
topology: tpu7x:2x2x1
jax: 0.10.0
libtpu: 0.0.40
codegen_flags: <defaults>
</compile_context>

<pallas_src>
import functools

import jax
import jax.numpy as jnp
import numpy as np
from jax.experimental import pallas as pl
from jax.experimental.pallas import tpu as pltpu

LANE = 128                        # lane width: keep the channel dim lane-dense
_VMEM_LIMIT = 32 * 1024 * 1024    # within every generation's scoped default


def _round_up(n, m):
    return ((n + m - 1) // m) * m


def _elementwise_rows(m, cp, target_bytes=2 << 20):
    """Pick rows-per-block by bytes (~2 MiB target), multiple of 8, dividing m."""
    cap = max(8, (target_bytes // (cp * 4)) // 8 * 8)
    rows = min(m, cap)
    rows -= rows % 8
    rows = max(rows, 8)
    while rows > 8 and m % rows:
        rows -= 8
    return rows if rows > 0 and m % rows == 0 else m


# --------------------------------------------------------------------------- kernels
def _conv_stats_kernel(x_ref, w_ref, o_ref, s_ref, sq_ref, *, taps, ho, wo, cin_p):
    # x_ref : (ncls*Hq, Wq, Cin_p)  space-to-depth rearranged, padded input (1 batch elem)
    # w_ref : (ntaps*Cin_p, Cout_p) per-tap weight matrices stacked along rows
    # o_ref : (Ho*Wo, Cout_p)       lane-dense conv output for this batch element
    # s_ref / sq_ref : (8, Cout_p)  per-channel partial sum / sum-of-squares
    cout_p = o_ref.shape[-1]
    acc = jnp.zeros((ho * wo, cout_p), jnp.float32)
    for t, (r0, c0) in enumerate(taps):
        patch = x_ref[r0:r0 + ho, c0:c0 + wo, :]          # contiguous static window
        a = patch.reshape(ho * wo, cin_p)
        acc = acc + jnp.dot(a, w_ref[t * cin_p:(t + 1) * cin_p, :],
                            preferred_element_type=jnp.float32)
    o_ref[...] = acc
    # Fused BatchNorm statistics: keep 8 sublane partials (VPU adds only); the final
    # (tiny) cross-sublane / cross-batch reduce happens in the wrapper.
    acc3 = acc.reshape(ho * wo // 8, 8, cout_p)
    s_ref[...] = jnp.sum(acc3, axis=0)
    sq_ref[...] = jnp.sum(acc3 * acc3, axis=0)


def _bn_relu_kernel(x_ref, s_ref, b_ref, o_ref):
    o_ref[...] = jnp.maximum(x_ref[...] * s_ref[...] + b_ref[...], 0.0)


def _bn_add_bn_relu_kernel(x_ref, r_ref, s2_ref, b2_ref, ss_ref, bs_ref, o_ref):
    # relu( bn2(conv2) + bn_sc(shortcut) ) in a single pass
    y = x_ref[...] * s2_ref[...] + b2_ref[...] + r_ref[...] * ss_ref[...] + bs_ref[...]
    o_ref[...] = jnp.maximum(y, 0.0)


# --------------------------------------------------------------------------- conv + stats
def conv2d_fused_stats(x_nhwc, w_oihw, stride):
    """x: (N, H, W, Cin_p) f32, channels already padded to a multiple of 128.
       w: PyTorch OIHW weights (unpadded).  3x3 -> padding=1, 1x1 -> padding=0.
       Returns (out (N*Ho*Wo, Cout_p), ch_sum (Cout_p,), ch_sumsq (Cout_p,), Ho, Wo)."""
    N, H, W, cin_p = x_nhwc.shape
    cout, cin, kh, kw = w_oihw.shape
    cout_p = _round_up(cout, LANE)
    pad = 1 if kh == 3 else 0
    ho = (H + 2 * pad - kh) // stride + 1
    wo = (W + 2 * pad - kw) // stride + 1

    # ---- space-to-depth parity decomposition (wrapper glue, ~1x the input bytes) ----
    taps_dhdw = [(dh, dw) for dh in range(kh) for dw in range(kw)]
    classes = sorted({(dh % stride, dw % stride) for dh, dw in taps_dhdw})
    cls_pos = {c: i for i, c in enumerate(classes)}
    hq = (kh - 1) // stride + ho
    wq = (kw - 1) // stride + wo
    hp = stride * hq
    wp = stride * wq
    xp = jnp.pad(x_nhwc, ((0, 0), (pad, hp - H - pad), (pad, wp - W - pad), (0, 0)))
    xsd = jnp.stack([xp[:, ph::stride, pw::stride, :][:, :hq, :wq, :]
                     for (ph, pw) in classes], axis=1)         # (N, ncls, Hq, Wq, Cin_p)
    nrows = len(classes) * hq
    xsd = xsd.reshape(N * nrows, wq, cin_p)

    # per-tap (row offset, col offset) into the rearranged per-batch block
    taps = tuple((cls_pos[(dh % stride, dw % stride)] * hq + dh // stride, dw // stride)
                 for dh, dw in taps_dhdw)

    # weights: pad channels to lane width, stack per-tap (Cin_p, Cout_p) matrices
    w_p = jnp.zeros((cout_p, cin_p, kh, kw), jnp.float32).at[:cout, :cin].set(
        w_oihw.astype(jnp.float32))
    w_mat = jnp.transpose(w_p, (2, 3, 1, 0)).reshape(kh * kw * cin_p, cout_p)

    out, s_part, sq_part = pl.pallas_call(
        functools.partial(_conv_stats_kernel, taps=taps, ho=ho, wo=wo, cin_p=cin_p),
        out_shape=(jax.ShapeDtypeStruct((N * ho * wo, cout_p), jnp.float32),
                   jax.ShapeDtypeStruct((N * 8, cout_p), jnp.float32),
                   jax.ShapeDtypeStruct((N * 8, cout_p), jnp.float32)),
        grid=(N,),
        in_specs=[pl.BlockSpec((nrows, wq, cin_p), lambda n: (n, 0, 0)),
                  pl.BlockSpec((kh * kw * cin_p, cout_p), lambda n: (0, 0))],
        out_specs=(pl.BlockSpec((ho * wo, cout_p), lambda n: (n, 0)),
                   pl.BlockSpec((8, cout_p), lambda n: (n, 0)),
                   pl.BlockSpec((8, cout_p), lambda n: (n, 0))),
        compiler_params=pltpu.CompilerParams(
            dimension_semantics=("parallel",), vmem_limit_bytes=_VMEM_LIMIT),
    )(xsd, w_mat)

    ch_sum = jnp.sum(s_part, axis=0)       # tiny (N*8, Cout_p) -> (Cout_p,)
    ch_sumsq = jnp.sum(sq_part, axis=0)
    return out, ch_sum, ch_sumsq, ho, wo


# --------------------------------------------------------------------------- BN apply
def _bn_scale_bias(ch_sum, ch_sumsq, m, gamma, beta, cout_p, eps=1e-5):
    # Training-mode BatchNorm: batch mean / biased variance.
    # Note: E[x^2]-E[x]^2 in f32 is cancellation-prone for huge activations; fine here.
    mean = ch_sum / m
    var = ch_sumsq / m - mean * mean
    g = jnp.zeros((cout_p,), jnp.float32).at[:gamma.shape[0]].set(gamma)
    b = jnp.zeros((cout_p,), jnp.float32).at[:beta.shape[0]].set(beta)
    scale = g * jax.lax.rsqrt(var + eps)
    bias = b - mean * scale
    return scale.reshape(1, cout_p), bias.reshape(1, cout_p)


def bn_relu_apply(x, scale, bias):
    m, cp = x.shape
    rows = _elementwise_rows(m, cp)
    return pl.pallas_call(
        _bn_relu_kernel,
        out_shape=jax.ShapeDtypeStruct((m, cp), jnp.float32),
        grid=(m // rows,),
        in_specs=[pl.BlockSpec((rows, cp), lambda i: (i, 0)),
                  pl.BlockSpec((1, cp), lambda i: (0, 0)),
                  pl.BlockSpec((1, cp), lambda i: (0, 0))],
        out_specs=pl.BlockSpec((rows, cp), lambda i: (i, 0)),
        input_output_aliases={0: 0},
        compiler_params=pltpu.CompilerParams(
            dimension_semantics=("parallel",), vmem_limit_bytes=_VMEM_LIMIT),
    )(x, scale, bias)


def bn_add_bn_relu_apply(x, res, scale2, bias2, scale_s, bias_s):
    m, cp = x.shape
    rows = _elementwise_rows(m, cp)
    return pl.pallas_call(
        _bn_add_bn_relu_kernel,
        out_shape=jax.ShapeDtypeStruct((m, cp), jnp.float32),
        grid=(m // rows,),
        in_specs=[pl.BlockSpec((rows, cp), lambda i: (i, 0)),
                  pl.BlockSpec((rows, cp), lambda i: (i, 0)),
                  pl.BlockSpec((1, cp), lambda i: (0, 0)),
                  pl.BlockSpec((1, cp), lambda i: (0, 0)),
                  pl.BlockSpec((1, cp), lambda i: (0, 0)),
                  pl.BlockSpec((1, cp), lambda i: (0, 0))],
        out_specs=pl.BlockSpec((rows, cp), lambda i: (i, 0)),
        input_output_aliases={0: 0},
        compiler_params=pltpu.CompilerParams(
            dimension_semantics=("parallel",), vmem_limit_bytes=_VMEM_LIMIT),
    )(x, res, scale2, bias2, scale_s, bias_s)


# --------------------------------------------------------------------------- BasicBlock
def init_basic_block_params(key, in_planes, planes, stride):
    k1, k2, k3 = jax.random.split(key, 3)
    params = {
        "conv1_w": 0.1 * jax.random.normal(k1, (planes, in_planes, 3, 3), jnp.float32),
        "bn1_g": jnp.ones((planes,), jnp.float32),
        "bn1_b": jnp.zeros((planes,), jnp.float32),
        "conv2_w": 0.1 * jax.random.normal(k2, (planes, planes, 3, 3), jnp.float32),
        "bn2_g": jnp.ones((planes,), jnp.float32),
        "bn2_b": jnp.zeros((planes,), jnp.float32),
    }
    if stride != 1 or in_planes != planes:
        params["sc_w"] = 0.1 * jax.random.normal(k3, (planes, in_planes, 1, 1), jnp.float32)
        params["sc_g"] = jnp.ones((planes,), jnp.float32)
        params["sc_b"] = jnp.zeros((planes,), jnp.float32)
    return params


def basic_block_forward(x_nchw, params, in_planes, planes, stride):
    n, _, h, w = x_nchw.shape
    cin_p = _round_up(in_planes, LANE)
    cp = _round_up(planes, LANE)

    # NCHW -> NHWC, pad channels to the lane width once at the boundary.
    x = jnp.transpose(x_nchw, (0, 2, 3, 1)).astype(jnp.float32)
    x = jnp.pad(x, ((0, 0), (0, 0), (0, 0), (0, cin_p - in_planes)))

    # conv1 (+ fused BN1 stats) -> bn1 + ReLU
    o1, s1, q1, ho, wo = conv2d_fused_stats(x, params["conv1_w"], stride)
    m1 = float(n * ho * wo)
    sc1, b1 = _bn_scale_bias(s1, q1, m1, params["bn1_g"], params["bn1_b"], cp)
    a1 = bn_relu_apply(o1, sc1, b1)                            # (N*Ho*Wo, Cp)

    # conv2 (+ fused BN2 stats), stride 1, pad 1
    a1_nhwc = a1.reshape(n, ho, wo, cp)
    o2, s2, q2, _, _ = conv2d_fused_stats(a1_nhwc, params["conv2_w"], 1)
    sc2, b2 = _bn_scale_bias(s2, q2, m1, params["bn2_g"], params["bn2_b"], cp)

    # shortcut: projection conv (+ fused BN stats) or identity (scale=1, bias=0)
    if stride != 1 or in_planes != planes:
        res, ss, qs, _, _ = conv2d_fused_stats(x, params["sc_w"], stride)
        scs, bs = _bn_scale_bias(ss, qs, m1, params["sc_g"], params["sc_b"], cp)
    else:
        res = x.reshape(n * h * w, cin_p)
        scs = jnp.ones((1, cp), jnp.float32)
        bs = jnp.zeros((1, cp), jnp.float32)

    # fused tail: out = relu( bn2(conv2) + bn_sc(shortcut) )
    out = bn_add_bn_relu_apply(o2, res, sc2, b2, scs, bs)

    out = out.reshape(n, ho, wo, cp)[:, :, :, :planes]
    return jnp.transpose(out, (0, 3, 1, 2))                    # NHWC -> NCHW


# --------------------------------------------------------------------------- pure-JAX reference
def _ref_conv(x_nhwc, w_oihw, stride):
    kh = w_oihw.shape[2]
    pad = 1 if kh == 3 else 0
    w_hwio = jnp.transpose(w_oihw, (2, 3, 1, 0))
    return jax.lax.conv_general_dilated(
        x_nhwc, w_hwio, (stride, stride), [(pad, pad), (pad, pad)],
        dimension_numbers=("NHWC", "HWIO", "NHWC"))


def _ref_bn(x_nhwc, gamma, beta, eps=1e-5):
    mean = jnp.mean(x_nhwc, axis=(0, 1, 2))
    var = jnp.mean((x_nhwc - mean) ** 2, axis=(0, 1, 2))
    return (x_nhwc - mean) * jax.lax.rsqrt(var + eps) * gamma + beta


def _ref_forward(x_nchw, params, in_planes, planes, stride):
    x = jnp.transpose(x_nchw, (0, 2, 3, 1))
    out = jax.nn.relu(_ref_bn(_ref_conv(x, params["conv1_w"], stride),
                              params["bn1_g"], params["bn1_b"]))
    out = _ref_bn(_ref_conv(out, params["conv2_w"], 1), params["bn2_g"], params["bn2_b"])
    if stride != 1 or in_planes != planes:
        sc = _ref_bn(_ref_conv(x, params["sc_w"], stride), params["sc_g"], params["sc_b"])
    else:
        sc = x
    out = jax.nn.relu(out + sc)
    return jnp.transpose(out, (0, 3, 1, 2))


# --------------------------------------------------------------------------- main
if __name__ == "__main__":
    key = jax.random.PRNGKey(0)
    kx, kp = jax.random.split(key)

    N, in_planes, planes, H, W, stride = 2, 4, 8, 16, 16, 2
    x = jax.random.normal(kx, (N, in_planes, H, W), jnp.float32)      # NCHW like PyTorch
    params = init_basic_block_params(kp, in_planes, planes, stride)

    fwd = jax.jit(functools.partial(basic_block_forward,
                                    in_planes=in_planes, planes=planes, stride=stride))
    out = jax.block_until_ready(fwd(x, params))

    ref = jax.block_until_ready(_ref_forward(x, params, in_planes, planes, stride))
    np.testing.assert_allclose(np.asarray(out), np.asarray(ref), rtol=1e-4, atol=1e-4)
    assert out.shape == (N, planes, H // stride, W // stride)

    print("KERNEL_OK")
</pallas_src>

<mosaic_0001>
module attributes {stable_mosaic.version = 11 : i64} {
  func.func @_conv_stats_kernel(%arg0: i32, %arg1: memref<8x8x128xf32, #tpu.memory_space<vmem>>, %arg2: memref<128x128xf32, #tpu.memory_space<vmem>>, %arg3: memref<64x128xf32, #tpu.memory_space<vmem>>, %arg4: memref<8x128xf32, #tpu.memory_space<vmem>>, %arg5: memref<8x128xf32, #tpu.memory_space<vmem>>) attributes {dimension_semantics = [#tpu.dimension_semantics<parallel>], iteration_bounds = array<i64: 2>, scalar_prefetch = 0 : i64, scratch_operands = 0 : i64, tpu.core_type = #tpu.core_type<tc>, window_params = [{transform_indices = @transform_0, window_bounds = array<i64: 8, 8, 128>}, {pipeline_mode = #tpu.pipeline_mode<synchronous>, transform_indices = @transform_1, window_bounds = array<i64: 128, 128>}, {transform_indices = @transform_2, window_bounds = array<i64: 64, 128>}, {transform_indices = @transform_3, window_bounds = array<i64: 8, 128>}, {transform_indices = @transform_4, window_bounds = array<i64: 8, 128>}]} {
    %cst = arith.constant 0.000000e+00 : f32
    %0 = vector.broadcast %cst : f32 to vector<64x128xf32>
    %c0 = arith.constant 0 : index
    %c0_0 = arith.constant 0 : index
    %c0_1 = arith.constant 0 : index
    %1 = vector.load %arg1[%c0, %c0_0, %c0_1] : memref<8x8x128xf32, #tpu.memory_space<vmem>>, vector<8x8x128xf32>
    %2 = vector.shape_cast %1 : vector<8x8x128xf32> to vector<64x128xf32>
    %c0_2 = arith.constant 0 : index
    %c0_3 = arith.constant 0 : index
    %3 = vector.load %arg2[%c0_2, %c0_3] : memref<128x128xf32, #tpu.memory_space<vmem>>, vector<128x128xf32>
    %cst_4 = arith.constant dense<0.000000e+00> : vector<64x128xf32>
    %4 = tpu.matmul %2, %3, %cst_4 {dimension_numbers = #tpu.dot_dimension_numbers<[1], [0], [0], [1], [0, 0, 1, 1], [], []>} : vector<64x128xf32>, vector<128x128xf32>, vector<64x128xf32> -> vector<64x128xf32>
    %5 = arith.addf %0, %4 : vector<64x128xf32>
    %c0_5 = arith.constant 0 : index
    %c0_6 = arith.constant 0 : index
    %6 = vector.load %arg3[%c0_5, %c0_6] : memref<64x128xf32, #tpu.memory_space<vmem>>, vector<64x128xf32>
    tpu.vector_store %arg3[%c0_5, %c0_6], %5 {strides = array<i32>} : memref<64x128xf32, #tpu.memory_space<vmem>>, vector<64x128xf32>,
    %7 = vector.shape_cast %5 : vector<64x128xf32> to vector<8x8x128xf32>
    %cst_7 = arith.constant dense<0.000000e+00> : vector<8x128xf32>
    %8 = vector.multi_reduction <add>, %7, %cst_7 [0] : vector<8x8x128xf32> to vector<8x128xf32>
    %c0_8 = arith.constant 0 : index
    %c0_9 = arith.constant 0 : index
    %9 = vector.load %arg4[%c0_8, %c0_9] : memref<8x128xf32, #tpu.memory_space<vmem>>, vector<8x128xf32>
    tpu.vector_store %arg4[%c0_8, %c0_9], %8 {strides = array<i32>} : memref<8x128xf32, #tpu.memory_space<vmem>>, vector<8x128xf32>,
    %10 = arith.mulf %7, %7 : vector<8x8x128xf32>
    %cst_10 = arith.constant dense<0.000000e+00> : vector<8x128xf32>
    %11 = vector.multi_reduction <add>, %10, %cst_10 [0] : vector<8x8x128xf32> to vector<8x128xf32>
    %c0_11 = arith.constant 0 : index
    %c0_12 = arith.constant 0 : index
    %12 = vector.load %arg5[%c0_11, %c0_12] : memref<8x128xf32, #tpu.memory_space<vmem>>, vector<8x128xf32>
    tpu.vector_store %arg5[%c0_11, %c0_12], %11 {strides = array<i32>} : memref<8x128xf32, #tpu.memory_space<vmem>>, vector<8x128xf32>,
    return
  }
  func.func @transform_0(%arg0: i32) -> (i32, i32, i32) {
    %c0_i32 = arith.constant 0 : i32
    %c0_i32_0 = arith.constant 0 : i32
    %c0_i32_1 = arith.constant 0 : i32
    return %arg0, %c0_i32, %c0_i32_0 : i32, i32, i32
  }
  func.func @transform_1(%arg0: i32) -> (i32, i32) {
    %c0_i32 = arith.constant 0 : i32
    %c0_i32_0 = arith.constant 0 : i32
    %c0_i32_1 = arith.constant 0 : i32
    return %c0_i32, %c0_i32_0 : i32, i32
  }
  func.func @transform_2(%arg0: i32) -> (i32, i32) {
    %c0_i32 = arith.constant 0 : i32
    %c0_i32_0 = arith.constant 0 : i32
    return %arg0, %c0_i32 : i32, i32
  }
  func.func @transform_3(%arg0: i32) -> (i32, i32) {
    %c0_i32 = arith.constant 0 : i32
    %c0_i32_0 = arith.constant 0 : i32
    return %arg0, %c0_i32 : i32, i32
  }
  func.func @transform_4(%arg0: i32) -> (i32, i32) {
    %c0_i32 = arith.constant 0 : i32
    %c0_i32_0 = arith.constant 0 : i32
    return %arg0, %c0_i32 : i32, i32
  }
}

module attributes {stable_mosaic.version = 11 : i64} {
  func.func @_conv_stats_kernel(%arg0: i32, %arg1: memref<36x9x128xf32, #tpu.memory_space<vmem>>, %arg2: memref<1152x128xf32, #tpu.memory_space<vmem>>, %arg3: memref<64x128xf32, #tpu.memory_space<vmem>>, %arg4: memref<8x128xf32, #tpu.memory_space<vmem>>, %arg5: memref<8x128xf32, #tpu.memory_space<vmem>>) attributes {dimension_semantics = [#tpu.dimension_semantics<parallel>], iteration_bounds = array<i64: 2>, scalar_prefetch = 0 : i64, scratch_operands = 0 : i64, tpu.core_type = #tpu.core_type<tc>, window_params = [{transform_indices = @transform_0, window_bounds = array<i64: 36, 9, 128>}, {pipeline_mode = #tpu.pipeline_mode<synchronous>, transform_indices = @transform_1, window_bounds = array<i64: 1152, 128>}, {transform_indices = @transform_2, window_bounds = array<i64: 64, 128>}, {transform_indices = @transform_3, window_bounds = array<i64: 8, 128>}, {transform_indices = @transform_4, window_bounds = array<i64: 8, 128>}]} {
    %cst = arith.constant 0.000000e+00 : f32
    %0 = vector.broadcast %cst : f32 to vector<64x128xf32>
    %c0 = arith.constant 0 : index
    %c0_0 = arith.constant 0 : index
    %c0_1 = arith.constant 0 : index
    %1 = vector.load %arg1[%c0, %c0_0, %c0_1] : memref<36x9x128xf32, #tpu.memory_space<vmem>>, vector<8x8x128xf32>
    %2 = vector.shape_cast %1 : vector<8x8x128xf32> to vector<64x128xf32>
    %c0_2 = arith.constant 0 : index
    %c0_3 = arith.constant 0 : index
    %3 = vector.load %arg2[%c0_2, %c0_3] : memref<1152x128xf32, #tpu.memory_space<vmem>>, vector<128x128xf32>
    %cst_4 = arith.constant dense<0.000000e+00> : vector<64x128xf32>
    %4 = tpu.matmul %2, %3, %cst_4 {dimension_numbers = #tpu.dot_dimension_numbers<[1], [0], [0], [1], [0, 0, 1, 1], [], []>} : vector<64x128xf32>, vector<128x128xf32>, vector<64x128xf32> -> vector<64x128xf32>
    %5 = arith.addf %0, %4 : vector<64x128xf32>
    %c9 = arith.constant 9 : index
    %c0_5 = arith.constant 0 : index
    %c0_6 = arith.constant 0 : index
    %6 = vector.load %arg1[%c9, %c0_5, %c0_6] : memref<36x9x128xf32, #tpu.memory_space<vmem>>, vector<8x8x128xf32>
    %7 = vector.shape_cast %6 : vector<8x8x128xf32> to vector<64x128xf32>
    %c128 = arith.constant 128 : index
    %c0_7 = arith.constant 0 : index
    %8 = vector.load %arg2[%c128, %c0_7] : memref<1152x128xf32, #tpu.memory_space<vmem>>, vector<128x128xf32>
    %cst_8 = arith.constant dense<0.000000e+00> : vector<64x128xf32>
    %9 = tpu.matmul %7, %8, %cst_8 {dimension_numbers = #tpu.dot_dimension_numbers<[1], [0], [0], [1], [0, 0, 1, 1], [], []>} : vector<64x128xf32>, vector<128x128xf32>, vector<64x128xf32> -> vector<64x128xf32>
    %10 = arith.addf %5, %9 : vector<64x128xf32>
    %c0_9 = arith.constant 0 : index
    %c1 = arith.constant 1 : index
    %c0_10 = arith.constant 0 : index
    %11 = vector.load %arg1[%c0_9, %c1, %c0_10] : memref<36x9x128xf32, #tpu.memory_space<vmem>>, vector<8x8x128xf32>
    %12 = vector.shape_cast %11 : vector<8x8x128xf32> to vector<64x128xf32>
    %c256 = arith.constant 256 : index
    %c0_11 = arith.constant 0 : index
    %13 = vector.load %arg2[%c256, %c0_11] : memref<1152x128xf32, #tpu.memory_space<vmem>>, vector<128x128xf32>
    %cst_12 = arith.constant dense<0.000000e+00> : vector<64x128xf32>
    %14 = tpu.matmul %12, %13, %cst_12 {dimension_numbers = #tpu.dot_dimension_numbers<[1], [0], [0], [1], [0, 0, 1, 1], [], []>} : vector<64x128xf32>, vector<128x128xf32>, vector<64x128xf32> -> vector<64x128xf32>
    %15 = arith.addf %10, %14 : vector<64x128xf32>
    %c18 = arith.constant 18 : index
    %c0_13 = arith.constant 0 : index
    %c0_14 = arith.constant 0 : index
    %16 = vector.load %arg1[%c18, %c0_13, %c0_14] : memref<36x9x128xf32, #tpu.memory_space<vmem>>, vector<8x8x128xf32>
    %17 = vector.shape_cast %16 : vector<8x8x128xf32> to vector<64x128xf32>
    %c384 = arith.constant 384 : index
    %c0_15 = arith.constant 0 : index
    %18 = vector.load %arg2[%c384, %c0_15] : memref<1152x128xf32, #tpu.memory_space<vmem>>, vector<128x128xf32>
    %cst_16 = arith.constant dense<0.000000e+00> : vector<64x128xf32>
    %19 = tpu.matmul %17, %18, %cst_16 {dimension_numbers = #tpu.dot_dimension_numbers<[1], [0], [0], [1], [0, 0, 1, 1], [], []>} : vector<64x128xf32>, vector<128x128xf32>, vector<64x128xf32> -> vector<64x128xf32>
    %20 = arith.addf %15, %19 : vector<64x128xf32>
    %c27 = arith.constant 27 : index
    %c0_17 = arith.constant 0 : index
    %c0_18 = arith.constant 0 : index
    %21 = vector.load %arg1[%c27, %c0_17, %c0_18] : memref<36x9x128xf32, #tpu.memory_space<vmem>>, vector<8x8x128xf32>
    %22 = vector.shape_cast %21 : vector<8x8x128xf32> to vector<64x128xf32>
    %c512 = arith.constant 512 : index
    %c0_19 = arith.constant 0 : index
    %23 = vector.load %arg2[%c512, %c0_19] : memref<1152x128xf32, #tpu.memory_space<vmem>>, vector<128x128xf32>
    %cst_20 = arith.constant dense<0.000000e+00> : vector<64x128xf32>
    %24 = tpu.matmul %22, %23, %cst_20 {dimension_numbers = #tpu.dot_dimension_numbers<[1], [0], [0], [1], [0, 0, 1, 1], [], []>} : vector<64x128xf32>, vector<128x128xf32>, vector<64x128xf32> -> vector<64x128xf32>
    %25 = arith.addf %20, %24 : vector<64x128xf32>
    %c18_21 = arith.constant 18 : index
    %c1_22 = arith.constant 1 : index
    %c0_23 = arith.constant 0 : index
    %26 = vector.load %arg1[%c18_21, %c1_22, %c0_23] : memref<36x9x128xf32, #tpu.memory_space<vmem>>, vector<8x8x128xf32>
    %27 = vector.shape_cast %26 : vector<8x8x128xf32> to vector<64x128xf32>
    %c640 = arith.constant 640 : index
    %c0_24 = arith.constant 0 : index
    %28 = vector.load %arg2[%c640, %c0_24] : memref<1152x128xf32, #tpu.memory_space<vmem>>, vector<128x128xf32>
    %cst_25 = arith.constant dense<0.000000e+00> : vector<64x128xf32>
    %29 = tpu.matmul %27, %28, %cst_25 {dimension_numbers = #tpu.dot_dimension_numbers<[1], [0], [0], [1], [0, 0, 1, 1], [], []>} : vector<64x128xf32>, vector<128x128xf32>, vector<64x128xf32> -> vector<64x128xf32>
    %30 = arith.addf %25, %29 : vector<64x128xf32>
    %c1_26 = arith.constant 1 : index
    %c0_27 = arith.constant 0 : index
    %c0_28 = arith.constant 0 : index
    %31 = vector.load %arg1[%c1_26, %c0_27, %c0_28] : memref<36x9x128xf32, #tpu.memory_space<vmem>>, vector<8x8x128xf32>
    %32 = vector.shape_cast %31 : vector<8x8x128xf32> to vector<64x128xf32>
    %c768 = arith.constant 768 : index
    %c0_29 = arith.constant 0 : index
    %33 = vector.load %arg2[%c768, %c0_29] : memref<1152x128xf32, #tpu.memory_space<vmem>>, vector<128x128xf32>
    %cst_30 = arith.constant dense<0.000000e+00> : vector<64x128xf32>
    %34 = tpu.matmul %32, %33, %cst_30 {dimension_numbers = #tpu.dot_dimension_numbers<[1], [0], [0], [1], [0, 0, 1, 1], [], []>} : vector<64x128xf32>, vector<128x128xf32>, vector<64x128xf32> -> vector<64x128xf32>
    %35 = arith.addf %30, %34 : vector<64x128xf32>
    %c10 = arith.constant 10 : index
    %c0_31 = arith.constant 0 : index
    %c0_32 = arith.constant 0 : index
    %36 = vector.load %arg1[%c10, %c0_31, %c0_32] : memref<36x9x128xf32, #tpu.memory_space<vmem>>, vector<8x8x128xf32>
    %37 = vector.shape_cast %36 : vector<8x8x128xf32> to vector<64x128xf32>
    %c896 = arith.constant 896 : index
    %c0_33 = arith.constant 0 : index
    %38 = vector.load %arg2[%c896, %c0_33] : memref<1152x128xf32, #tpu.memory_space<vmem>>, vector<128x128xf32>
    %cst_34 = arith.constant dense<0.000000e+00> : vector<64x128xf32>
    %39 = tpu.matmul %37, %38, %cst_34 {dimension_numbers = #tpu.dot_dimension_numbers<[1], [0], [0], [1], [0, 0, 1, 1], [], []>} : vector<64x128xf32>, vector<128x128xf32>, vector<64x128xf32> -> vector<64x128xf32>
    %40 = arith.addf %35, %39 : vector<64x128xf32>
    %c1_35 = arith.constant 1 : index
    %c1_36 = arith.constant 1 : index
    %c0_37 = arith.constant 0 : index
    %41 = vector.load %arg1[%c1_35, %c1_36, %c0_37] : memref<36x9x128xf32, #tpu.memory_space<vmem>>, vector<8x8x128xf32>
    %42 = vector.shape_cast %41 : vector<8x8x128xf32> to vector<64x128xf32>
    %c1024 = arith.constant 1024 : index
    %c0_38 = arith.constant 0 : index
    %43 = vector.load %arg2[%c1024, %c0_38] : memref<1152x128xf32, #tpu.memory_space<vmem>>, vector<128x128xf32>
    %cst_39 = arith.constant dense<0.000000e+00> : vector<64x128xf32>
    %44 = tpu.matmul %42, %43, %cst_39 {dimension_numbers = #tpu.dot_dimension_numbers<[1], [0], [0], [1], [0, 0, 1, 1], [], []>} : vector<64x128xf32>, vector<128x128xf32>, vector<64x128xf32> -> vector<64x128xf32>
    %45 = arith.addf %40, %44 : vector<64x128xf32>
    %c0_40 = arith.constant 0 : index
    %c0_41 = arith.constant 0 : index
    %46 = vector.load %arg3[%c0_40, %c0_41] : memref<64x128xf32, #tpu.memory_space<vmem>>, vector<64x128xf32>
    tpu.vector_store %arg3[%c0_40, %c0_41], %45 {strides = array<i32>} : memref<64x128xf32, #tpu.memory_space<vmem>>, vector<64x128xf32>,
    %47 = vector.shape_cast %45 : vector<64x128xf32> to vector<8x8x128xf32>
    %cst_42 = arith.constant dense<0.000000e+00> : vector<8x128xf32>
    %48 = vector.multi_reduction <add>, %47, %cst_42 [0] : vector<8x8x128xf32> to vector<8x128xf32>
    %c0_43 = arith.constant 0 : index
    %c0_44 = arith.constant 0 : index
    %49 = vector.load %arg4[%c0_43, %c0_44] : memref<8x128xf32, #tpu.memory_space<vmem>>, vector<8x128xf32>
    tpu.vector_store %arg4[%c0_43, %c0_44], %48 {strides = array<i32>} : memref<8x128xf32, #tpu.memory_space<vmem>>, vector<8x128xf32>,
    %50 = arith.mulf %47, %47 : vector<8x8x128xf32>
    %cst_45 = arith.constant dense<0.000000e+00> : vector<8x128xf32>
    %51 = vector.multi_reduction <add>, %50, %cst_45 [0] : vector<8x8x128xf32> to vector<8x128xf32>
    %c0_46 = arith.constant 0 : index
    %c0_47 = arith.constant 0 : index
    %52 = vector.load %arg5[%c0_46, %c0_47] : memref<8x128xf32, #tpu.memory_space<vmem>>, vector<8x128xf32>
    tpu.vector_store %arg5[%c0_46, %c0_47], %51 {strides = array<i32>} : memref<8x128xf32, #tpu.memory_space<vmem>>, vector<8x128xf32>,
    return
  }
  func.func @transform_0(%arg0: i32) -> (i32, i32, i32) {
    %c0_i32 = arith.constant 0 : i32
    %c0_i32_0 = arith.constant 0 : i32
    %c0_i32_1 = arith.constant 0 : i32
    return %arg0, %c0_i32, %c0_i32_0 : i32, i32, i32
  }
  func.func @transform_1(%arg0: i32) -> (i32, i32) {
    %c0_i32 = arith.constant 0 : i32
    %c0_i32_0 = arith.constant 0 : i32
    %c0_i32_1 = arith.constant 0 : i32
    return %c0_i32, %c0_i32_0 : i32, i32
  }
  func.func @transform_2(%arg0: i32) -> (i32, i32) {
    %c0_i32 = arith.constant 0 : i32
    %c0_i32_0 = arith.constant 0 : i32
    return %arg0, %c0_i32 : i32, i32
  }
  func.func @transform_3(%arg0: i32) -> (i32, i32) {
    %c0_i32 = arith.constant 0 : i32
    %c0_i32_0 = arith.constant 0 : i32
    return %arg0, %c0_i32 : i32, i32
  }
  func.func @transform_4(%arg0: i32) -> (i32, i32) {
    %c0_i32 = arith.constant 0 : i32
    %c0_i32_0 = arith.constant 0 : i32
    return %arg0, %c0_i32 : i32, i32
  }
}

module attributes {stable_mosaic.version = 11 : i64} {
  func.func @_bn_relu_kernel(%arg0: i32, %arg1: memref<128x128xf32, #tpu.memory_space<vmem>>, %arg2: memref<1x128xf32, #tpu.memory_space<vmem>>, %arg3: memref<1x128xf32, #tpu.memory_space<vmem>>, %arg4: memref<128x128xf32, #tpu.memory_space<vmem>>) attributes {dimension_semantics = [#tpu.dimension_semantics<parallel>], iteration_bounds = array<i64: 1>, scalar_prefetch = 0 : i64, scratch_operands = 0 : i64, tpu.core_type = #tpu.core_type<tc>, window_params = [{transform_indices = @transform_0, window_bounds = array<i64: 128, 128>}, {pipeline_mode = #tpu.pipeline_mode<synchronous>, transform_indices = @transform_1, window_bounds = array<i64: 1, 128>}, {pipeline_mode = #tpu.pipeline_mode<synchronous>, transform_indices = @transform_2, window_bounds = array<i64: 1, 128>}, {transform_indices = @transform_3, window_bounds = array<i64: 128, 128>}]} {
    %c0 = arith.constant 0 : index
    %c0_0 = arith.constant 0 : index
    %0 = vector.load %arg1[%c0, %c0_0] : memref<128x128xf32, #tpu.memory_space<vmem>>, vector<128x128xf32>
    %c0_1 = arith.constant 0 : index
    %c0_2 = arith.constant 0 : index
    %1 = vector.load %arg2[%c0_1, %c0_2] : memref<1x128xf32, #tpu.memory_space<vmem>>, vector<1x128xf32>
    %2 = vector.broadcast %1 : vector<1x128xf32> to vector<128x128xf32>
    %3 = arith.mulf %0, %2 : vector<128x128xf32>
    %c0_3 = arith.constant 0 : index
    %c0_4 = arith.constant 0 : index
    %4 = vector.load %arg3[%c0_3, %c0_4] : memref<1x128xf32, #tpu.memory_space<vmem>>, vector<1x128xf32>
    %5 = vector.broadcast %4 : vector<1x128xf32> to vector<128x128xf32>
    %6 = arith.addf %3, %5 : vector<128x128xf32>
    %cst = arith.constant 0.000000e+00 : f32
    %7 = vector.broadcast %cst : f32 to vector<128x128xf32>
    %8 = arith.maximumf %6, %7 : vector<128x128xf32>
    %c0_5 = arith.constant 0 : index
    %c0_6 = arith.constant 0 : index
    %9 = vector.load %arg4[%c0_5, %c0_6] : memref<128x128xf32, #tpu.memory_space<vmem>>, vector<128x128xf32>
    tpu.vector_store %arg4[%c0_5, %c0_6], %8 {strides = array<i32>} : memref<128x128xf32, #tpu.memory_space<vmem>>, vector<128x128xf32>,
    return
  }
  func.func @transform_0(%arg0: i32) -> (i32, i32) {
    %c0_i32 = arith.constant 0 : i32
    %c0_i32_0 = arith.constant 0 : i32
    return %arg0, %c0_i32 : i32, i32
  }
  func.func @transform_1(%arg0: i32) -> (i32, i32) {
    %c0_i32 = arith.constant 0 : i32
    %c0_i32_0 = arith.constant 0 : i32
    %c0_i32_1 = arith.constant 0 : i32
    return %c0_i32, %c0_i32_0 : i32, i32
  }
  func.func @transform_2(%arg0: i32) -> (i32, i32) {
    %c0_i32 = arith.constant 0 : i32
    %c0_i32_0 = arith.constant 0 : i32
    %c0_i32_1 = arith.constant 0 : i32
    return %c0_i32, %c0_i32_0 : i32, i32
  }
  func.func @transform_3(%arg0: i32) -> (i32, i32) {
    %c0_i32 = arith.constant 0 : i32
    %c0_i32_0 = arith.constant 0 : i32
    return %arg0, %c0_i32 : i32, i32
  }
}

module attributes {stable_mosaic.version = 11 : i64} {
  func.func @_conv_stats_kernel(%arg0: i32, %arg1: memref<10x10x128xf32, #tpu.memory_space<vmem>>, %arg2: memref<1152x128xf32, #tpu.memory_space<vmem>>, %arg3: memref<64x128xf32, #tpu.memory_space<vmem>>, %arg4: memref<8x128xf32, #tpu.memory_space<vmem>>, %arg5: memref<8x128xf32, #tpu.memory_space<vmem>>) attributes {dimension_semantics = [#tpu.dimension_semantics<parallel>], iteration_bounds = array<i64: 2>, scalar_prefetch = 0 : i64, scratch_operands = 0 : i64, tpu.core_type = #tpu.core_type<tc>, window_params = [{transform_indices = @transform_0, window_bounds = array<i64: 10, 10, 128>}, {pipeline_mode = #tpu.pipeline_mode<synchronous>, transform_indices = @transform_1, window_bounds = array<i64: 1152, 128>}, {transform_indices = @transform_2, window_bounds = array<i64: 64, 128>}, {transform_indices = @transform_3, window_bounds = array<i64: 8, 128>}, {transform_indices = @transform_4, window_bounds = array<i64: 8, 128>}]} {
    %cst = arith.constant 0.000000e+00 : f32
    %0 = vector.broadcast %cst : f32 to vector<64x128xf32>
    %c0 = arith.constant 0 : index
    %c0_0 = arith.constant 0 : index
    %c0_1 = arith.constant 0 : index
    %1 = vector.load %arg1[%c0, %c0_0, %c0_1] : memref<10x10x128xf32, #tpu.memory_space<vmem>>, vector<8x8x128xf32>
    %2 = vector.shape_cast %1 : vector<8x8x128xf32> to vector<64x128xf32>
    %c0_2 = arith.constant 0 : index
    %c0_3 = arith.constant 0 : index
    %3 = vector.load %arg2[%c0_2, %c0_3] : memref<1152x128xf32, #tpu.memory_space<vmem>>, vector<128x128xf32>
    %cst_4 = arith.constant dense<0.000000e+00> : vector<64x128xf32>
    %4 = tpu.matmul %2, %3, %cst_4 {dimension_numbers = #tpu.dot_dimension_numbers<[1], [0], [0], [1], [0, 0, 1, 1], [], []>} : vector<64x128xf32>, vector<128x128xf32>, vector<64x128xf32> -> vector<64x128xf32>
    %5 = arith.addf %0, %4 : vector<64x128xf32>
    %c0_5 = arith.constant 0 : index
    %c1 = arith.constant 1 : index
    %c0_6 = arith.constant 0 : index
    %6 = vector.load %arg1[%c0_5, %c1, %c0_6] : memref<10x10x128xf32, #tpu.memory_space<vmem>>, vector<8x8x128xf32>
    %7 = vector.shape_cast %6 : vector<8x8x128xf32> to vector<64x128xf32>
    %c128 = arith.constant 128 : index
    %c0_7 = arith.constant 0 : index
    %8 = vector.load %arg2[%c128, %c0_7] : memref<1152x128xf32, #tpu.memory_space<vmem>>, vector<128x128xf32>
    %cst_8 = arith.constant dense<0.000000e+00> : vector<64x128xf32>
    %9 = tpu.matmul %7, %8, %cst_8 {dimension_numbers = #tpu.dot_dimension_numbers<[1], [0], [0], [1], [0, 0, 1, 1], [], []>} : vector<64x128xf32>, vector<128x128xf32>, vector<64x128xf32> -> vector<64x128xf32>
    %10 = arith.addf %5, %9 : vector<64x128xf32>
    %c0_9 = arith.constant 0 : index
    %c2 = arith.constant 2 : index
    %c0_10 = arith.constant 0 : index
    %11 = vector.load %arg1[%c0_9, %c2, %c0_10] : memref<10x10x128xf32, #tpu.memory_space<vmem>>, vector<8x8x128xf32>
    %12 = vector.shape_cast %11 : vector<8x8x128xf32> to vector<64x128xf32>
    %c256 = arith.constant 256 : index
    %c0_11 = arith.constant 0 : index
    %13 = vector.load %arg2[%c256, %c0_11] : memref<1152x128xf32, #tpu.memory_space<vmem>>, vector<128x128xf32>
    %cst_12 = arith.constant dense<0.000000e+00> : vector<64x128xf32>
    %14 = tpu.matmul %12, %13, %cst_12 {dimension_numbers = #tpu.dot_dimension_numbers<[1], [0], [0], [1], [0, 0, 1, 1], [], []>} : vector<64x128xf32>, vector<128x128xf32>, vector<64x128xf32> -> vector<64x128xf32>
    %15 = arith.addf %10, %14 : vector<64x128xf32>
    %c1_13 = arith.constant 1 : index
    %c0_14 = arith.constant 0 : index
    %c0_15 = arith.constant 0 : index
    %16 = vector.load %arg1[%c1_13, %c0_14, %c0_15] : memref<10x10x128xf32, #tpu.memory_space<vmem>>, vector<8x8x128xf32>
    %17 = vector.shape_cast %16 : vector<8x8x128xf32> to vector<64x128xf32>
    %c384 = arith.constant 384 : index
    %c0_16 = arith.constant 0 : index
    %18 = vector.load %arg2[%c384, %c0_16] : memref<1152x128xf32, #tpu.memory_space<vmem>>, vector<128x128xf32>
    %cst_17 = arith.constant dense<0.000000e+00> : vector<64x128xf32>
    %19 = tpu.matmul %17, %18, %cst_17 {dimension_numbers = #tpu.dot_dimension_numbers<[1], [0], [0], [1], [0, 0, 1, 1], [], []>} : vector<64x128xf32>, vector<128x128xf32>, vector<64x128xf32> -> vector<64x128xf32>
    %20 = arith.addf %15, %19 : vector<64x128xf32>
    %c1_18 = arith.constant 1 : index
    %c1_19 = arith.constant 1 : index
    %c0_20 = arith.constant 0 : index
    %21 = vector.load %arg1[%c1_18, %c1_19, %c0_20] : memref<10x10x128xf32, #tpu.memory_space<vmem>>, vector<8x8x128xf32>
    %22 = vector.shape_cast %21 : vector<8x8x128xf32> to vector<64x128xf32>
    %c512 = arith.constant 512 : index
    %c0_21 = arith.constant 0 : index
    %23 = vector.load %arg2[%c512, %c0_21] : memref<1152x128xf32, #tpu.memory_space<vmem>>, vector<128x128xf32>
    %cst_22 = arith.constant dense<0.000000e+00> : vector<64x128xf32>
    %24 = tpu.matmul %22, %23, %cst_22 {dimension_numbers = #tpu.dot_dimension_numbers<[1], [0], [0], [1], [0, 0, 1, 1], [], []>} : vector<64x128xf32>, vector<128x128xf32>, vector<64x128xf32> -> vector<64x128xf32>
    %25 = arith.addf %20, %24 : vector<64x128xf32>
    %c1_23 = arith.constant 1 : index
    %c2_24 = arith.constant 2 : index
    %c0_25 = arith.constant 0 : index
    %26 = vector.load %arg1[%c1_23, %c2_24, %c0_25] : memref<10x10x128xf32, #tpu.memory_space<vmem>>, vector<8x8x128xf32>
    %27 = vector.shape_cast %26 : vector<8x8x128xf32> to vector<64x128xf32>
    %c640 = arith.constant 640 : index
    %c0_26 = arith.constant 0 : index
    %28 = vector.load %arg2[%c640, %c0_26] : memref<1152x128xf32, #tpu.memory_space<vmem>>, vector<128x128xf32>
    %cst_27 = arith.constant dense<0.000000e+00> : vector<64x128xf32>
    %29 = tpu.matmul %27, %28, %cst_27 {dimension_numbers = #tpu.dot_dimension_numbers<[1], [0], [0], [1], [0, 0, 1, 1], [], []>} : vector<64x128xf32>, vector<128x128xf32>, vector<64x128xf32> -> vector<64x128xf32>
    %30 = arith.addf %25, %29 : vector<64x128xf32>
    %c2_28 = arith.constant 2 : index
    %c0_29 = arith.constant 0 : index
    %c0_30 = arith.constant 0 : index
    %31 = vector.load %arg1[%c2_28, %c0_29, %c0_30] : memref<10x10x128xf32, #tpu.memory_space<vmem>>, vector<8x8x128xf32>
    %32 = vector.shape_cast %31 : vector<8x8x128xf32> to vector<64x128xf32>
    %c768 = arith.constant 768 : index
    %c0_31 = arith.constant 0 : index
    %33 = vector.load %arg2[%c768, %c0_31] : memref<1152x128xf32, #tpu.memory_space<vmem>>, vector<128x128xf32>
    %cst_32 = arith.constant dense<0.000000e+00> : vector<64x128xf32>
    %34 = tpu.matmul %32, %33, %cst_32 {dimension_numbers = #tpu.dot_dimension_numbers<[1], [0], [0], [1], [0, 0, 1, 1], [], []>} : vector<64x128xf32>, vector<128x128xf32>, vector<64x128xf32> -> vector<64x128xf32>
    %35 = arith.addf %30, %34 : vector<64x128xf32>
    %c2_33 = arith.constant 2 : index
    %c1_34 = arith.constant 1 : index
    %c0_35 = arith.constant 0 : index
    %36 = vector.load %arg1[%c2_33, %c1_34, %c0_35] : memref<10x10x128xf32, #tpu.memory_space<vmem>>, vector<8x8x128xf32>
    %37 = vector.shape_cast %36 : vector<8x8x128xf32> to vector<64x128xf32>
    %c896 = arith.constant 896 : index
    %c0_36 = arith.constant 0 : index
    %38 = vector.load %arg2[%c896, %c0_36] : memref<1152x128xf32, #tpu.memory_space<vmem>>, vector<128x128xf32>
    %cst_37 = arith.constant dense<0.000000e+00> : vector<64x128xf32>
    %39 = tpu.matmul %37, %38, %cst_37 {dimension_numbers = #tpu.dot_dimension_numbers<[1], [0], [0], [1], [0, 0, 1, 1], [], []>} : vector<64x128xf32>, vector<128x128xf32>, vector<64x128xf32> -> vector<64x128xf32>
    %40 = arith.addf %35, %39 : vector<64x128xf32>
    %c2_38 = arith.constant 2 : index
    %c2_39 = arith.constant 2 : index
    %c0_40 = arith.constant 0 : index
    %41 = vector.load %arg1[%c2_38, %c2_39, %c0_40] : memref<10x10x128xf32, #tpu.memory_space<vmem>>, vector<8x8x128xf32>
    %42 = vector.shape_cast %41 : vector<8x8x128xf32> to vector<64x128xf32>
    %c1024 = arith.constant 1024 : index
    %c0_41 = arith.constant 0 : index
    %43 = vector.load %arg2[%c1024, %c0_41] : memref<1152x128xf32, #tpu.memory_space<vmem>>, vector<128x128xf32>
    %cst_42 = arith.constant dense<0.000000e+00> : vector<64x128xf32>
    %44 = tpu.matmul %42, %43, %cst_42 {dimension_numbers = #tpu.dot_dimension_numbers<[1], [0], [0], [1], [0, 0, 1, 1], [], []>} : vector<64x128xf32>, vector<128x128xf32>, vector<64x128xf32> -> vector<64x128xf32>
    %45 = arith.addf %40, %44 : vector<64x128xf32>
    %c0_43 = arith.constant 0 : index
    %c0_44 = arith.constant 0 : index
    %46 = vector.load %arg3[%c0_43, %c0_44] : memref<64x128xf32, #tpu.memory_space<vmem>>, vector<64x128xf32>
    tpu.vector_store %arg3[%c0_43, %c0_44], %45 {strides = array<i32>} : memref<64x128xf32, #tpu.memory_space<vmem>>, vector<64x128xf32>,
    %47 = vector.shape_cast %45 : vector<64x128xf32> to vector<8x8x128xf32>
    %cst_45 = arith.constant dense<0.000000e+00> : vector<8x128xf32>
    %48 = vector.multi_reduction <add>, %47, %cst_45 [0] : vector<8x8x128xf32> to vector<8x128xf32>
    %c0_46 = arith.constant 0 : index
    %c0_47 = arith.constant 0 : index
    %49 = vector.load %arg4[%c0_46, %c0_47] : memref<8x128xf32, #tpu.memory_space<vmem>>, vector<8x128xf32>
    tpu.vector_store %arg4[%c0_46, %c0_47], %48 {strides = array<i32>} : memref<8x128xf32, #tpu.memory_space<vmem>>, vector<8x128xf32>,
    %50 = arith.mulf %47, %47 : vector<8x8x128xf32>
    %cst_48 = arith.constant dense<0.000000e+00> : vector<8x128xf32>
    %51 = vector.multi_reduction <add>, %50, %cst_48 [0] : vector<8x8x128xf32> to vector<8x128xf32>
    %c0_49 = arith.constant 0 : index
    %c0_50 = arith.constant 0 : index
    %52 = vector.load %arg5[%c0_49, %c0_50] : memref<8x128xf32, #tpu.memory_space<vmem>>, vector<8x128xf32>
    tpu.vector_store %arg5[%c0_49, %c0_50], %51 {strides = array<i32>} : memref<8x128xf32, #tpu.memory_space<vmem>>, vector<8x128xf32>,
    return
  }
  func.func @transform_0(%arg0: i32) -> (i32, i32, i32) {
    %c0_i32 = arith.constant 0 : i32
    %c0_i32_0 = arith.constant 0 : i32
    %c0_i32_1 = arith.constant 0 : i32
    return %arg0, %c0_i32, %c0_i32_0 : i32, i32, i32
  }
  func.func @transform_1(%arg0: i32) -> (i32, i32) {
    %c0_i32 = arith.constant 0 : i32
    %c0_i32_0 = arith.constant 0 : i32
    %c0_i32_1 = arith.constant 0 : i32
    return %c0_i32, %c0_i32_0 : i32, i32
  }
  func.func @transform_2(%arg0: i32) -> (i32, i32) {
    %c0_i32 = arith.constant 0 : i32
    %c0_i32_0 = arith.constant 0 : i32
    return %arg0, %c0_i32 : i32, i32
  }
  func.func @transform_3(%arg0: i32) -> (i32, i32) {
    %c0_i32 = arith.constant 0 : i32
    %c0_i32_0 = arith.constant 0 : i32
    return %arg0, %c0_i32 : i32, i32
  }
  func.func @transform_4(%arg0: i32) -> (i32, i32) {
    %c0_i32 = arith.constant 0 : i32
    %c0_i32_0 = arith.constant 0 : i32
    return %arg0, %c0_i32 : i32, i32
  }
}

module attributes {stable_mosaic.version = 11 : i64} {
  func.func @_bn_add_bn_relu_kernel(%arg0: i32, %arg1: memref<128x128xf32, #tpu.memory_space<vmem>>, %arg2: memref<128x128xf32, #tpu.memory_space<vmem>>, %arg3: memref<1x128xf32, #tpu.memory_space<vmem>>, %arg4: memref<1x128xf32, #tpu.memory_space<vmem>>, %arg5: memref<1x128xf32, #tpu.memory_space<vmem>>, %arg6: memref<1x128xf32, #tpu.memory_space<vmem>>, %arg7: memref<128x128xf32, #tpu.memory_space<vmem>>) attributes {dimension_semantics = [#tpu.dimension_semantics<parallel>], iteration_bounds = array<i64: 1>, scalar_prefetch = 0 : i64, scratch_operands = 0 : i64, tpu.core_type = #tpu.core_type<tc>, window_params = [{transform_indices = @transform_0, window_bounds = array<i64: 128, 128>}, {transform_indices = @transform_1, window_bounds = array<i64: 128, 128>}, {pipeline_mode = #tpu.pipeline_mode<synchronous>, transform_indices = @transform_2, window_bounds = array<i64: 1, 128>}, {pipeline_mode = #tpu.pipeline_mode<synchronous>, transform_indices = @transform_3, window_bounds = array<i64: 1, 128>}, {pipeline_mode = #tpu.pipeline_mode<synchronous>, transform_indices = @transform_4, window_bounds = array<i64: 1, 128>}, {pipeline_mode = #tpu.pipeline_mode<synchronous>, transform_indices = @transform_5, window_bounds = array<i64: 1, 128>}, {transform_indices = @transform_6, window_bounds = array<i64: 128, 128>}]} {
    %c0 = arith.constant 0 : index
    %c0_0 = arith.constant 0 : index
    %0 = vector.load %arg1[%c0, %c0_0] : memref<128x128xf32, #tpu.memory_space<vmem>>, vector<128x128xf32>
    %c0_1 = arith.constant 0 : index
    %c0_2 = arith.constant 0 : index
    %1 = vector.load %arg3[%c0_1, %c0_2] : memref<1x128xf32, #tpu.memory_space<vmem>>, vector<1x128xf32>
    %2 = vector.broadcast %1 : vector<1x128xf32> to vector<128x128xf32>
    %3 = arith.mulf %0, %2 : vector<128x128xf32>
    %c0_3 = arith.constant 0 : index
    %c0_4 = arith.constant 0 : index
    %4 = vector.load %arg4[%c0_3, %c0_4] : memref<1x128xf32, #tpu.memory_space<vmem>>, vector<1x128xf32>
    %5 = vector.broadcast %4 : vector<1x128xf32> to vector<128x128xf32>
    %6 = arith.addf %3, %5 : vector<128x128xf32>
    %c0_5 = arith.constant 0 : index
    %c0_6 = arith.constant 0 : index
    %7 = vector.load %arg2[%c0_5, %c0_6] : memref<128x128xf32, #tpu.memory_space<vmem>>, vector<128x128xf32>
    %c0_7 = arith.constant 0 : index
    %c0_8 = arith.constant 0 : index
    %8 = vector.load %arg5[%c0_7, %c0_8] : memref<1x128xf32, #tpu.memory_space<vmem>>, vector<1x128xf32>
    %9 = vector.broadcast %8 : vector<1x128xf32> to vector<128x128xf32>
    %10 = arith.mulf %7, %9 : vector<128x128xf32>
    %11 = arith.addf %6, %10 : vector<128x128xf32>
    %c0_9 = arith.constant 0 : index
    %c0_10 = arith.constant 0 : index
    %12 = vector.load %arg6[%c0_9, %c0_10] : memref<1x128xf32, #tpu.memory_space<vmem>>, vector<1x128xf32>
    %13 = vector.broadcast %12 : vector<1x128xf32> to vector<128x128xf32>
    %14 = arith.addf %11, %13 : vector<128x128xf32>
    %cst = arith.constant 0.000000e+00 : f32
    %15 = vector.broadcast %cst : f32 to vector<128x128xf32>
    %16 = arith.maximumf %14, %15 : vector<128x128xf32>
    %c0_11 = arith.constant 0 : index
    %c0_12 = arith.constant 0 : index
    %17 = vector.load %arg7[%c0_11, %c0_12] : memref<128x128xf32, #tpu.memory_space<vmem>>, vector<128x128xf32>
    tpu.vector_store %arg7[%c0_11, %c0_12], %16 {strides = array<i32>} : memref<128x128xf32, #tpu.memory_space<vmem>>, vector<128x128xf32>,
    return
  }
  func.func @transform_0(%arg0: i32) -> (i32, i32) {
    %c0_i32 = arith.constant 0 : i32
    %c0_i32_0 = arith.constant 0 : i32
    return %arg0, %c0_i32 : i32, i32
  }
  func.func @transform_1(%arg0: i32) -> (i32, i32) {
    %c0_i32 = arith.constant 0 : i32
    %c0_i32_0 = arith.constant 0 : i32
    return %arg0, %c0_i32 : i32, i32
  }
  func.func @transform_2(%arg0: i32) -> (i32, i32) {
    %c0_i32 = arith.constant 0 : i32
    %c0_i32_0 = arith.constant 0 : i32
    %c0_i32_1 = arith.constant 0 : i32
    return %c0_i32, %c0_i32_0 : i32, i32
  }
  func.func @transform_3(%arg0: i32) -> (i32, i32) {
    %c0_i32 = arith.constant 0 : i32
    %c0_i32_0 = arith.constant 0 : i32
    %c0_i32_1 = arith.constant 0 : i32
    return %c0_i32, %c0_i32_0 : i32, i32
  }
  func.func @transform_4(%arg0: i32) -> (i32, i32) {
    %c0_i32 = arith.constant 0 : i32
    %c0_i32_0 = arith.constant 0 : i32
    %c0_i32_1 = arith.constant 0 : i32
    return %c0_i32, %c0_i32_0 : i32, i32
  }
  func.func @transform_5(%arg0: i32) -> (i32, i32) {
    %c0_i32 = arith.constant 0 : i32
    %c0_i32_0 = arith.constant 0 : i32
    %c0_i32_1 = arith.constant 0 : i32
    return %c0_i32, %c0_i32_0 : i32, i32
  }
  func.func @transform_6(%arg0: i32) -> (i32, i32) {
    %c0_i32 = arith.constant 0 : i32
    %c0_i32_0 = arith.constant 0 : i32
    return %arg0, %c0_i32 : i32, i32
  }
}

</mosaic_0001>

<llo_original>
// kernel: basic_block_forward.8
$region0: #{basic_block_forward.8}
  #allocation0 [shape = 'u32[]', space=smem, size = 0x4, offset = 0x4, fixed_abs, tag = 'smem constant byte address 0x4 - core index']
  #allocation1 [shape = 'u32[144,128]{1,0:T(1,128)}', space=vmem, size = 0x12000, scoped, tag = 'internal scratch']
  %s0 = inlined_call_operand.vmem [shape: f32[16,8,128], index: 0, kind: input, shape index: {}]
  %s1 = inlined_call_operand.vmem [shape: f32[128,128], index: 1, kind: input, shape index: {}]
  %s2 = inlined_call_operand.vmem [shape: f32[128,128], index: 2, kind: output, shape index: {0}]
  %s3 = inlined_call_operand.vmem [shape: f32[16,128], index: 3, kind: output, shape index: {1}]
  %s4 = inlined_call_operand.vmem [shape: f32[16,128], index: 4, kind: output, shape index: {2}]
  %5 = xla_tuple %s2, %s3, %s4
  %s6 = sld [smem:[#allocation0]]
  $region57: #{basic_block_forward.8} parent=0
    _
  %s8 = ssub.s32 1, %s6
  %s9 = scalar_select 0, %s8, %s6
  loop: start=0, step=1, limit=4
  $region2: #{basic_block_forward.8} parent=0 // loop_pre_header
    _
  $region3: #{basic_block_forward.8} parent=0 // loop_header
    %s11 = sphi 0, %s15
    %p12 = scmp.ge.s32.totalorder %s11, 4
    %s21 = sphi 0, %s23
    %s24 = sphi 0, %s21
    %s25 = sphi 0, %s24
    %s41 = sphi 0, %s25
    %s45 = sphi 0, %s45
    %s47 = sphi 0, %s45
    %s48 = sphi 0, %s47
    %s62 = sphi 0, %s48
    %s68 = sphi 0, %s70
    %s71 = sphi 0, %s68
    %s72 = sphi 0, %s71
    %s88 = sphi 0, %s72
    %s94 = sphi 0, %s96
    %s97 = sphi 0, %s94
    %s98 = sphi 0, %s97
    %s114 = sphi 0, %s98
    %s120 = sphi 0, %s122
    %s123 = sphi 0, %s120
    %s124 = sphi 0, %s123
    %s140 = sphi 0, %s124
  $region4: #{basic_block_forward.8} parent=0 // loop_header_branch
    %14 = sbr.rel (%p12) target = $region8
  $region5: #{basic_block_forward.8} parent=0 // loop_body
    %s16 = ssub.s32 %s11, 1
    %s17 = ssub.s32 %s11, 2
    %s18 = sadd.s32 %s11, 1
    %s19 = ssub.s32 %s11, %s18
    %p20 = scmp.eq.s32.totalorder %s19, 0
    %s22 = sadd.s32 %s21, 1
    %s23 = scalar_select %p20, %s21, %s22
    %p26 = pneg %p20
    %p27 = scmp.eq.s32.totalorder %s11, 1
    %p28 = por %p26, %p27
    %p29 = scmp.ne.s32.totalorder %s21, %s24
    %p30 = scmp.eq.s32.totalorder %s11, 0
    %p31 = por %p29, %p30
    %p32 = scmp.ne.s32.totalorder %s21, %s24
    %p33 = scmp.eq.s32.totalorder %s16, 1
    %p34 = por %p32, %p33
    %p35 = scmp.ne.s32.totalorder %s24, %s25
    %p36 = scmp.eq.s32.totalorder %s16, 0
    %p37 = por %p35, %p36
    %p38 = scmp.ne.s32.totalorder %s24, %s25
    %p39 = scmp.eq.s32.totalorder %s17, 1
    %p40 = por %p38, %p39
    %p42 = scmp.ne.s32.totalorder %s25, %s41
    %p43 = scmp.eq.s32.totalorder %s17, 0
    %p44 = por %p42, %p43
    %s46 = sadd.s32 %s45, 1
    %p49 = scmp.eq.s32.totalorder %s11, 1
    %p50 = scmp.ne.s32.totalorder %s45, %s47
    %p51 = scmp.eq.s32.totalorder %s11, 0
    %p52 = por %p50, %p51
    %p53 = scmp.ne.s32.totalorder %s45, %s47
    %p54 = scmp.eq.s32.totalorder %s16, 1
    %p55 = por %p53, %p54
    %p56 = scmp.ne.s32.totalorder %s47, %s48
    %p57 = scmp.eq.s32.totalorder %s16, 0
    %p58 = por %p56, %p57
    %p59 = scmp.ne.s32.totalorder %s47, %s48
    %p60 = scmp.eq.s32.totalorder %s17, 1
    %p61 = por %p59, %p60
    %p63 = scmp.ne.s32.totalorder %s48, %s62
    %p64 = scmp.eq.s32.totalorder %s17, 0
    %p65 = por %p63, %p64
    %s66 = ssub.s32 %s11, %s18
    %p67 = scmp.eq.s32.totalorder %s66, 0
    %s69 = sadd.s32 %s68, 1
    %s70 = scalar_select %p67, %s68, %s69
    %p73 = pneg %p67
    %p74 = scmp.eq.s32.totalorder %s11, 1
    %p75 = por %p73, %p74
    %p76 = scmp.ne.s32.totalorder %s68, %s71
    %p77 = scmp.eq.s32.totalorder %s11, 0
    %p78 = por %p76, %p77
    %p79 = scmp.ne.s32.totalorder %s68, %s71
    %p80 = scmp.eq.s32.totalorder %s16, 1
    %p81 = por %p79, %p80
    %p82 = scmp.ne.s32.totalorder %s71, %s72
    %p83 = scmp.eq.s32.totalorder %s16, 0
    %p84 = por %p82, %p83
    %p85 = scmp.ne.s32.totalorder %s71, %s72
    %p86 = scmp.eq.s32.totalorder %s17, 1
    %p87 = por %p85, %p86
    %p89 = scmp.ne.s32.totalorder %s72, %s88
    %p90 = scmp.eq.s32.totalorder %s17, 0
    %p91 = por %p89, %p90
    %s92 = ssub.s32 %s11, %s18
    %p93 = scmp.eq.s32.totalorder %s92, 0
    %s95 = sadd.s32 %s94, 1
    %s96 = scalar_select %p93, %s94, %s95
    %p99 = pneg %p93
    %p100 = scmp.eq.s32.totalorder %s11, 1
    %p101 = por %p99, %p100
    %p102 = scmp.ne.s32.totalorder %s94, %s97
    %p103 = scmp.eq.s32.totalorder %s11, 0
    %p104 = por %p102, %p103
    %p105 = scmp.ne.s32.totalorder %s94, %s97
    %p106 = scmp.eq.s32.totalorder %s16, 1
    %p107 = por %p105, %p106
    %p108 = scmp.ne.s32.totalorder %s97, %s98
    %p109 = scmp.eq.s32.totalorder %s16, 0
    %p110 = por %p108, %p109
    %p111 = scmp.ne.s32.totalorder %s97, %s98
    %p112 = scmp.eq.s32.totalorder %s17, 1
    %p113 = por %p111, %p112
    %p115 = scmp.ne.s32.totalorder %s98, %s114
    %p116 = scmp.eq.s32.totalorder %s17, 0
    %p117 = por %p115, %p116
    %s118 = ssub.s32 %s11, %s18
    %p119 = scmp.eq.s32.totalorder %s118, 0
    %s121 = sadd.s32 %s120, 1
    %s122 = scalar_select %p119, %s120, %s121
    %p125 = pneg %p119
    %p126 = scmp.eq.s32.totalorder %s11, 1
    %p127 = por %p125, %p126
    %p128 = scmp.ne.s32.totalorder %s120, %s123
    %p129 = scmp.eq.s32.totalorder %s11, 0
    %p130 = por %p128, %p129
    %p131 = scmp.ne.s32.totalorder %s120, %s123
    %p132 = scmp.eq.s32.totalorder %s16, 1
    %p133 = por %p131, %p132
    %p134 = scmp.ne.s32.totalorder %s123, %s124
    %p135 = scmp.eq.s32.totalorder %s16, 0
    %p136 = por %p134, %p135
    %p137 = scmp.ne.s32.totalorder %s123, %s124
    %p138 = scmp.eq.s32.totalorder %s17, 1
    %p139 = por %p137, %p138
    %p141 = scmp.ne.s32.totalorder %s124, %s140
    %p142 = scmp.eq.s32.totalorder %s17, 0
    %p143 = por %p141, %p142
    %p144 = scmp.le.s32.totalorder 1, %s11
    %p145 = scmp.lt.s32.totalorder %s11, 3
    %p146 = pnand %p144, %p145
    %p147 = pneg %p146
    // Predicated region
    $region9: #{basic_block_forward.8} parent=5 // pred_check
      _
    $region10: #{basic_block_forward.8} parent=5 // pred_check_branch
      %149 = sbr.rel (%p146) target = $region12
    $region11: #{basic_block_forward.8} parent=5 // pred_region
      %s150 = ssub.s32 %s11, 1
      // Predicated region
      $region13: #{basic_block_forward.8} parent=11 // pred_check
        %p151 = pneg %p58
      $region14: #{basic_block_forward.8} parent=11 // pred_check_branch
        %153 = sbr.rel (%p151) target = $region16
      $region15: #{basic_block_forward.8} parent=11 // pred_region
        _
      $region16: #{basic_block_forward.8} parent=11 // pred_fallthru
        _
    $region12: #{basic_block_forward.8} parent=5 // pred_fallthru
      _
    %p154 = scmp.lt.s32.totalorder %s11, 2
    // Predicated region
    $region17: #{basic_block_forward.8} parent=5 // pred_check
      %p155 = pneg %p154
    $region18: #{basic_block_forward.8} parent=5 // pred_check_branch
      %157 = sbr.rel (%p155) target = $region20
    $region19: #{basic_block_forward.8} parent=5 // pred_region
      // Predicated region
      $region21: #{basic_block_forward.8} parent=19 // pred_check
        %p158 = pneg %p31
      $region22: #{basic_block_forward.8} parent=19 // pred_check_branch
        %160 = sbr.rel (%p158) target = $region24
      $region23: #{basic_block_forward.8} parent=19 // pred_region
        %s161 = smul.u32 8, %s11
        %p162 = scmp.lt.s32.totalorder %s161, 15
        %s163 = scalar_select %p162, %s161, 15
        %s164 = smul.addr %s163, 8
        %s165 = scalar_lea.vmem %s0, %s164
        %s166 = smul.u32 8, %s11
      $region24: #{basic_block_forward.8} parent=19 // pred_fallthru
        _
    $region20: #{basic_block_forward.8} parent=5 // pred_fallthru
      _
    %p167 = scmp.le.s32.totalorder 1, %s11
    %p168 = scmp.lt.s32.totalorder %s11, 3
    %p169 = pnand %p167, %p168
    %p170 = pneg %p169
    // Predicated region
    $region25: #{basic_block_forward.8} parent=5 // pred_check
      _
    $region26: #{basic_block_forward.8} parent=5 // pred_check_branch
      %172 = sbr.rel (%p169) target = $region28
    $region27: #{basic_block_forward.8} parent=5 // pred_region
      %s173 = ssub.s32 %s11, 1
      %s174 = smul.u32 8, %s16
      %p175 = scmp.lt.s32.totalorder %s174, 15
      %s176 = scalar_select %p175, %s174, 15
      %s177 = smul.addr %s176, 8
      %s178 = scalar_lea.vmem %s0, %s177
      %p179 = pneg %p37
      %p180 = pneg %p34
      %p181 = pneg %p58
      %p182 = pneg %p55
      %p183 = pneg %p84
      %p184 = pneg %p81
      %s185 = smul.u32 8, %s16
      %p186 = scmp.lt.s32.totalorder %s185, 15
      %s187 = scalar_select %p186, %s185, 15
      %s188 = smul.addr %s187, 8
      %s189 = scalar_lea.vmem %s2, %s188
      %p190 = pneg %p110
      %p191 = pneg %p107
      %p192 = scmp.lt.s32.totalorder %s16, 1
      %s193 = scalar_select %p192, %s16, 1
      %s194 = smul.addr %s193, 8
      %s195 = scalar_lea.vmem %s3, %s194
      %p196 = pneg %p136
      %p197 = pneg %p133
      %p198 = scmp.lt.s32.totalorder %s16, 1
      %s199 = scalar_select %p198, %s16, 1
      %s200 = smul.addr %s199, 8
      %s201 = scalar_lea.vmem %s4, %s200
      %s202 = smul.u32 8, %s16
      %p203 = scmp.lt.s32.totalorder %s202, 15
      %s204 = scalar_select %p203, %s202, 15
      %s205 = smul.addr %s204, 8
      %s206 = scalar_lea.vmem %s0, %s205
      %s207 = smul.u32 8, %s16
      %s208 = smul.u32 8, %s16
      %p209 = scmp.lt.s32.totalorder %s208, 15
      %s210 = scalar_select %p209, %s208, 15
      %s211 = smul.addr %s210, 8
      %s212 = scalar_lea.vmem %s2, %s211
      %s213 = smul.u32 8, %s16
      %p214 = scmp.lt.s32.totalorder %s16, 1
      %s215 = scalar_select %p214, %s16, 1
      %s216 = smul.addr %s215, 8
      %s217 = scalar_lea.vmem %s3, %s216
      %p218 = scmp.lt.s32.totalorder %s16, 1
      %s219 = scalar_select %p218, %s16, 1
      %s220 = smul.addr %s219, 8
      %s221 = scalar_lea.vmem %s4, %s220
      %v222 = vld [vmem:[%s206] sm:$0xff]
      %v223 = vld [vmem:[%s206 + $0x8] sm:$0xff]
      %v224 = vld [vmem:[%s206 + $0x10] sm:$0xff]
      %v225 = vld [vmem:[%s206 + $0x18] sm:$0xff]
      %v226 = vld [vmem:[%s206 + $0x20] sm:$0xff]
      %v227 = vld [vmem:[%s206 + $0x28] sm:$0xff]
      %v228 = vld [vmem:[%s206 + $0x30] sm:$0xff]
      %v229 = vld [vmem:[%s206 + $0x38] sm:$0xff]
      %v230 = vld [vmem:[%s1] sm:$0xff]
      %v231 = vld [vmem:[%s1 + $0x8] sm:$0xff]
      %v232 = vld [vmem:[%s1 + $0x10] sm:$0xff]
      %v233 = vld [vmem:[%s1 + $0x18] sm:$0xff]
      %v234 = vld [vmem:[%s1 + $0x20] sm:$0xff]
      %v235 = vld [vmem:[%s1 + $0x28] sm:$0xff]
      %v236 = vld [vmem:[%s1 + $0x30] sm:$0xff]
      %v237 = vld [vmem:[%s1 + $0x38] sm:$0xff]
      %v238 = vld [vmem:[%s1 + $0x40] sm:$0xff]
      %v239 = vld [vmem:[%s1 + $0x48] sm:$0xff]
      %v240 = vld [vmem:[%s1 + $0x50] sm:$0xff]
      %v241 = vld [vmem:[%s1 + $0x58] sm:$0xff]
      %v242 = vld [vmem:[%s1 + $0x60] sm:$0xff]
      %v243 = vld [vmem:[%s1 + $0x68] sm:$0xff]
      %v244 = vld [vmem:[%s1 + $0x70] sm:$0xff]
      %v245 = vld [vmem:[%s1 + $0x78] sm:$0xff]
      %246 = vmatprep.subr.mxu0 0.0
      %247 = vmatpush1.msra.mxu0 %v230
      %248 = vmatprep.subr.mxu0 0.0
      %249 = vmatpush1.msra.mxu0 %v231
      %250 = vmatprep.subr.mxu0 0.0
      %251 = vmatpush1.msra.mxu0 %v232
      %252 = vmatprep.subr.mxu0 0.0
      %253 = vmatpush1.msra.mxu0 %v233
      %254 = vmatprep.subr.mxu0 0.0
      %255 = vmatpush1.msra.mxu0 %v234
      %256 = vmatprep.subr.mxu0 0.0
      %257 = vmatpush1.msra.mxu0 %v235
      %258 = vmatprep.subr.mxu0 0.0
      %259 = vmatpush1.msra.mxu0 %v236
      %260 = vmatprep.subr.mxu0 0.0
      %261 = vmatpush1.msra.mxu0 %v237
      %262 = vmatprep.subr.mxu0 0.0
      %263 = vmatpush1.msra.mxu0 %v238
      %264 = vmatprep.subr.mxu0 0.0
      %265 = vmatpush1.msra.mxu0 %v239
      %266 = vmatprep.subr.mxu0 0.0
      %267 = vmatpush1.msra.mxu0 %v240
      %268 = vmatprep.subr.mxu0 0.0
      %269 = vmatpush1.msra.mxu0 %v241
      %270 = vmatprep.subr.mxu0 0.0
      %271 = vmatpush1.msra.mxu0 %v242
      %272 = vmatprep.subr.mxu0 0.0
      %273 = vmatpush1.msra.mxu0 %v243
      %274 = vmatprep.subr.mxu0 0.0
      %275 = vmatpush1.msra.mxu0 %v244
      %276 = vmatprep.subr.mxu0 0.0
      %277 = vmatpush1.msra.mxu0 %v245
      %278 = vmatprep.subr.mxu0 0.0
      %279 = vmatpush1.msra.mxu0 0.0
      %280 = vmatprep.subr.mxu0 0.0
      %281 = vmatpush1.msra.mxu0 0.0
      %282 = vmatprep.subr.mxu0 0.0
      %283 = vmatpush1.msra.mxu0 0.0
      %284 = vmatprep.subr.mxu0 0.0
      %285 = vmatpush1.msra.mxu0 0.0
      %286 = vmatprep.subr.mxu0 0.0
      %287 = vmatpush1.msra.mxu0 0.0
      %288 = vmatprep.subr.mxu0 0.0
      %289 = vmatpush1.msra.mxu0 0.0
      %290 = vmatprep.subr.mxu0 0.0
      %291 = vmatpush1.msra.mxu0 0.0
      %292 = vmatprep.subr.mxu0 0.0
      %293 = vmatpush1.msra.mxu0 0.0
      %294 = vmatprep.subr.mxu0 0.0
      %295 = vmatpush1.msra.mxu0 0.0
      %296 = vmatprep.subr.mxu0 0.0
      %297 = vmatpush1.msra.mxu0 0.0
      %298 = vmatprep.subr.mxu0 0.0
      %299 = vmatpush1.msra.mxu0 0.0
      %300 = vmatprep.subr.mxu0 0.0
      %301 = vmatpush1.msra.mxu0 0.0
      %302 = vmatprep.subr.mxu0 0.0
      %303 = vmatpush1.msra.mxu0 0.0
      %304 = vmatprep.subr.mxu0 0.0
      %305 = vmatpush1.msra.mxu0 0.0
      %306 = vmatprep.subr.mxu0 0.0
      %307 = vmatpush1.msra.mxu0 0.0
      %308 = vmatprep.subr.mxu0 0.0
      %309 = vmatpush1.msra.mxu0 0.0
      %310 = vmatprep.mubr.f32.mxu0 0.0
      %311 = vmatmul.mubr.f32.gmra.mrb[0].mxu0 %v222
      %v312 = vpop.f32.mrb[0].mxu0
      %v313 = vadd.f32 0.0, %v312
      %v314 = vpop.f32.mrb[0].mxu0
      %315 = vmatprep.mubr.f32.mxu0 0.0
      %316 = vmatmul.mubr.f32.gmra.mrb[0].mxu0 %v223
      %v317 = vpop.f32.mrb[0].mxu0
      %v318 = vadd.f32 0.0, %v317
      %v319 = vpop.f32.mrb[0].mxu0
      %320 = vmatprep.mubr.f32.mxu0 0.0
      %321 = vmatmul.mubr.f32.gmra.mrb[0].mxu0 %v224
      %v322 = vpop.f32.mrb[0].mxu0
      %v323 = vadd.f32 0.0, %v322
      %v324 = vpop.f32.mrb[0].mxu0
      %325 = vmatprep.mubr.f32.mxu0 0.0
      %326 = vmatmul.mubr.f32.gmra.mrb[0].mxu0 %v225
      %v327 = vpop.f32.mrb[0].mxu0
      %v328 = vadd.f32 0.0, %v327
      %v329 = vpop.f32.mrb[0].mxu0
      %330 = vmatprep.mubr.f32.mxu0 0.0
      %331 = vmatmul.mubr.f32.gmra.mrb[0].mxu0 %v226
      %v332 = vpop.f32.mrb[0].mxu0
      %v333 = vadd.f32 0.0, %v332
      %v334 = vpop.f32.mrb[0].mxu0
      %335 = vmatprep.mubr.f32.mxu0 0.0
      %336 = vmatmul.mubr.f32.gmra.mrb[0].mxu0 %v227
      %v337 = vpop.f32.mrb[0].mxu0
      %v338 = vadd.f32 0.0, %v337
      %v339 = vpop.f32.mrb[0].mxu0
      %340 = vmatprep.mubr.f32.mxu0 0.0
      %341 = vmatmul.mubr.f32.gmra.mrb[0].mxu0 %v228
      %v342 = vpop.f32.mrb[0].mxu0
      %v343 = vadd.f32 0.0, %v342
      %v344 = vpop.f32.mrb[0].mxu0
      %345 = vmatprep.mubr.f32.mxu0 0.0
      %346 = vmatmul.mubr.f32.gmra.mrb[0].mxu0 %v229
      %v347 = vpop.f32.mrb[0].mxu0
      %v348 = vadd.f32 0.0, %v347
      %v349 = vpop.f32.mrb[0].mxu0
      %350 = vdwg.mxu0
      %351 = vst [vmem:[%s212] sm:$0xff] %v313
      %352 = vst [vmem:[%s212 + $0x8] sm:$0xff] %v318
      %353 = vst [vmem:[%s212 + $0x10] sm:$0xff] %v323
      %354 = vst [vmem:[%s212 + $0x18] sm:$0xff] %v328
      %355 = vst [vmem:[%s212 + $0x20] sm:$0xff] %v333
      %356 = vst [vmem:[%s212 + $0x28] sm:$0xff] %v338
      %357 = vst [vmem:[%s212 + $0x30] sm:$0xff] %v343
      %358 = vst [vmem:[%s212 + $0x38] sm:$0xff] %v348
      %v359 = vadd.f32 %v313, %v318
      %v360 = vadd.f32 %v359, %v323
      %v361 = vadd.f32 %v360, %v328
      %v362 = vadd.f32 %v361, %v333
      %v363 = vadd.f32 %v362, %v338
      %v364 = vadd.f32 %v363, %v343
      %v365 = vadd.f32 %v364, %v348
      %366 = vst [vmem:[%s217] sm:$0xff] %v365
      %v367 = vmul.f32 %v313, %v313
      %v368 = vmul.f32 %v318, %v318
      %v369 = vmul.f32 %v323, %v323
      %v370 = vmul.f32 %v328, %v328
      %v371 = vmul.f32 %v333, %v333
      %v372 = vmul.f32 %v338, %v338
      %v373 = vmul.f32 %v343, %v343
      %v374 = vmul.f32 %v348, %v348
      %v375 = vadd.f32 %v367, %v368
      %v376 = vadd.f32 %v375, %v369
      %v377 = vadd.f32 %v376, %v370
      %v378 = vadd.f32 %v377, %v371
      %v379 = vadd.f32 %v378, %v372
      %v380 = vadd.f32 %v379, %v373
      %v381 = vadd.f32 %v380, %v374
      %382 = vst [vmem:[%s221] sm:$0xff] %v381
      %s383 = smul.u32 8, %s16
      %p384 = scmp.lt.s32.totalorder %s383, 15
      %s385 = scalar_select %p384, %s383, 15
      %s386 = smul.addr %s385, 8
      %s387 = scalar_lea.vmem %s2, %s386
      %p388 = scmp.lt.s32.totalorder %s16, 1
      %s389 = scalar_select %p388, %s16, 1
      %s390 = smul.addr %s389, 8
      %s391 = scalar_lea.vmem %s3, %s390
      %p392 = scmp.lt.s32.totalorder %s16, 1
      %s393 = scalar_select %p392, %s16, 1
      %s394 = smul.addr %s393, 8
      %s395 = scalar_lea.vmem %s4, %s394
      // Predicated region
      $region29: #{basic_block_forward.8} parent=27 // pred_check
        %p396 = pneg %p81
      $region30: #{basic_block_forward.8} parent=27 // pred_check_branch
        %398 = sbr.rel (%p396) target = $region32
      $region31: #{basic_block_forward.8} parent=27 // pred_region
        %s399 = smul.u32 8, %s16
      $region32: #{basic_block_forward.8} parent=27 // pred_fallthru
        _
      // Predicated region
      $region33: #{basic_block_forward.8} parent=27 // pred_check
        %p400 = pneg %p107
      $region34: #{basic_block_forward.8} parent=27 // pred_check_branch
        %402 = sbr.rel (%p400) target = $region36
      $region35: #{basic_block_forward.8} parent=27 // pred_region
        _
      $region36: #{basic_block_forward.8} parent=27 // pred_fallthru
        _
      // Predicated region
      $region37: #{basic_block_forward.8} parent=27 // pred_check
        %p403 = pneg %p133
      $region38: #{basic_block_forward.8} parent=27 // pred_check_branch
        %405 = sbr.rel (%p403) target = $region40
      $region39: #{basic_block_forward.8} parent=27 // pred_region
        _
      $region40: #{basic_block_forward.8} parent=27 // pred_fallthru
        _
    $region28: #{basic_block_forward.8} parent=5 // pred_fallthru
      _
    %p406 = scmp.le.s32.totalorder 2, %s11
    // Predicated region
    $region41: #{basic_block_forward.8} parent=5 // pred_check
      %p407 = pneg %p406
    $region42: #{basic_block_forward.8} parent=5 // pred_check_branch
      %409 = sbr.rel (%p407) target = $region44
    $region43: #{basic_block_forward.8} parent=5 // pred_region
      %s410 = ssub.s32 %s11, 2
      // Predicated region
      $region45: #{basic_block_forward.8} parent=43 // pred_check
        %p411 = pneg %p87
      $region46: #{basic_block_forward.8} parent=43 // pred_check_branch
        %413 = sbr.rel (%p411) target = $region48
      $region47: #{basic_block_forward.8} parent=43 // pred_region
        %s414 = smul.u32 8, %s17
        %p415 = scmp.lt.s32.totalorder %s414, 15
        %s416 = scalar_select %p415, %s414, 15
        %s417 = smul.addr %s416, 8
        %s418 = scalar_lea.vmem %s2, %s417
      $region48: #{basic_block_forward.8} parent=43 // pred_fallthru
        _
      // Predicated region
      $region49: #{basic_block_forward.8} parent=43 // pred_check
        %p419 = pneg %p113
      $region50: #{basic_block_forward.8} parent=43 // pred_check_branch
        %421 = sbr.rel (%p419) target = $region52
      $region51: #{basic_block_forward.8} parent=43 // pred_region
        %p422 = scmp.lt.s32.totalorder %s17, 1
        %s423 = scalar_select %p422, %s17, 1
        %s424 = smul.addr %s423, 8
        %s425 = scalar_lea.vmem %s3, %s424
      $region52: #{basic_block_forward.8} parent=43 // pred_fallthru
        _
      // Predicated region
      $region53: #{basic_block_forward.8} parent=43 // pred_check
        %p426 = pneg %p139
      $region54: #{basic_block_forward.8} parent=43 // pred_check_branch
        %428 = sbr.rel (%p426) target = $region56
      $region55: #{basic_block_forward.8} parent=43 // pred_region
        %p429 = scmp.lt.s32.totalorder %s17, 1
        %s430 = scalar_select %p429, %s17, 1
        %s431 = smul.addr %s430, 8
        %s432 = scalar_lea.vmem %s4, %s431
      $region56: #{basic_block_forward.8} parent=43 // pred_fallthru
        _
    $region44: #{basic_block_forward.8} parent=5 // pred_fallthru
      _
  $region6: #{basic_block_forward.8} parent=0 // loop_footer
    %s15 = sadd.s32 1, %s11
  $region7: #{basic_block_forward.8} parent=0 // loop_footer_branch
    %10 = sbr.rel target = $region3
  $region8: #{basic_block_forward.8} parent=0 // loop_exit
    _

// kernel: basic_block_forward.5
$region0: #{basic_block_forward.5}
  #allocation0 [shape = 'u32[]', space=smem, size = 0x4, offset = 0x4, fixed_abs, tag = 'smem constant byte address 0x4 - core index']
  #allocation1 [shape = 'u32[144,128]{1,0:T(1,128)}', space=vmem, size = 0x12000, scoped, tag = 'internal scratch']
  %s0 = inlined_call_operand.vmem [shape: f32[72,9,128], index: 0, kind: input, shape index: {}]
  %s1 = inlined_call_operand.vmem [shape: f32[1152,128], index: 1, kind: input, shape index: {}]
  %s2 = inlined_call_operand.vmem [shape: f32[128,128], index: 2, kind: output, shape index: {0}]
  %s3 = inlined_call_operand.vmem [shape: f32[16,128], index: 3, kind: output, shape index: {1}]
  %s4 = inlined_call_operand.vmem [shape: f32[16,128], index: 4, kind: output, shape index: {2}]
  %5 = xla_tuple %s2, %s3, %s4
  %s6 = sld [smem:[#allocation0]]
  $region57: #{basic_block_forward.5} parent=0
    _
  %s8 = ssub.s32 1, %s6
  %s9 = scalar_select 0, %s8, %s6
  loop: start=0, step=1, limit=4
  $region2: #{basic_block_forward.5} parent=0 // loop_pre_header
    _
  $region3: #{basic_block_forward.5} parent=0 // loop_header
    %s11 = sphi 0, %s15
    %p12 = scmp.ge.s32.totalorder %s11, 4
    %s21 = sphi 0, %s23
    %s24 = sphi 0, %s21
    %s25 = sphi 0, %s24
    %s41 = sphi 0, %s25
    %s45 = sphi 0, %s45
    %s47 = sphi 0, %s45
    %s48 = sphi 0, %s47
    %s62 = sphi 0, %s48
    %s68 = sphi 0, %s70
    %s71 = sphi 0, %s68
    %s72 = sphi 0, %s71
    %s88 = sphi 0, %s72
    %s94 = sphi 0, %s96
    %s97 = sphi 0, %s94
    %s98 = sphi 0, %s97
    %s114 = sphi 0, %s98
    %s120 = sphi 0, %s122
    %s123 = sphi 0, %s120
    %s124 = sphi 0, %s123
    %s140 = sphi 0, %s124
  $region4: #{basic_block_forward.5} parent=0 // loop_header_branch
    %14 = sbr.rel (%p12) target = $region8
  $region5: #{basic_block_forward.5} parent=0 // loop_body
    %s16 = ssub.s32 %s11, 1
    %s17 = ssub.s32 %s11, 2
    %s18 = sadd.s32 %s11, 1
    %s19 = ssub.s32 %s11, %s18
    %p20 = scmp.eq.s32.totalorder %s19, 0
    %s22 = sadd.s32 %s21, 1
    %s23 = scalar_select %p20, %s21, %s22
    %p26 = pneg %p20
    %p27 = scmp.eq.s32.totalorder %s11, 1
    %p28 = por %p26, %p27
    %p29 = scmp.ne.s32.totalorder %s21, %s24
    %p30 = scmp.eq.s32.totalorder %s11, 0
    %p31 = por %p29, %p30
    %p32 = scmp.ne.s32.totalorder %s21, %s24
    %p33 = scmp.eq.s32.totalorder %s16, 1
    %p34 = por %p32, %p33
    %p35 = scmp.ne.s32.totalorder %s24, %s25
    %p36 = scmp.eq.s32.totalorder %s16, 0
    %p37 = por %p35, %p36
    %p38 = scmp.ne.s32.totalorder %s24, %s25
    %p39 = scmp.eq.s32.totalorder %s17, 1
    %p40 = por %p38, %p39
    %p42 = scmp.ne.s32.totalorder %s25, %s41
    %p43 = scmp.eq.s32.totalorder %s17, 0
    %p44 = por %p42, %p43
    %s46 = sadd.s32 %s45, 1
    %p49 = scmp.eq.s32.totalorder %s11, 1
    %p50 = scmp.ne.s32.totalorder %s45, %s47
    %p51 = scmp.eq.s32.totalorder %s11, 0
    %p52 = por %p50, %p51
    %p53 = scmp.ne.s32.totalorder %s45, %s47
    %p54 = scmp.eq.s32.totalorder %s16, 1
    %p55 = por %p53, %p54
    %p56 = scmp.ne.s32.totalorder %s47, %s48
    %p57 = scmp.eq.s32.totalorder %s16, 0
    %p58 = por %p56, %p57
    %p59 = scmp.ne.s32.totalorder %s47, %s48
    %p60 = scmp.eq.s32.totalorder %s17, 1
    %p61 = por %p59, %p60
    %p63 = scmp.ne.s32.totalorder %s48, %s62
    %p64 = scmp.eq.s32.totalorder %s17, 0
    %p65 = por %p63, %p64
    %s66 = ssub.s32 %s11, %s18
    %p67 = scmp.eq.s32.totalorder %s66, 0
    %s69 = sadd.s32 %s68, 1
    %s70 = scalar_select %p67, %s68, %s69
    %p73 = pneg %p67
    %p74 = scmp.eq.s32.totalorder %s11, 1
    %p75 = por %p73, %p74
    %p76 = scmp.ne.s32.totalorder %s68, %s71
    %p77 = scmp.eq.s32.totalorder %s11, 0
    %p78 = por %p76, %p77
    %p79 = scmp.ne.s32.totalorder %s68, %s71
    %p80 = scmp.eq.s32.totalorder %s16, 1
    %p81 = por %p79, %p80
    %p82 = scmp.ne.s32.totalorder %s71, %s72
    %p83 = scmp.eq.s32.totalorder %s16, 0
    %p84 = por %p82, %p83
    %p85 = scmp.ne.s32.totalorder %s71, %s72
    %p86 = scmp.eq.s32.totalorder %s17, 1
    %p87 = por %p85, %p86
    %p89 = scmp.ne.s32.totalorder %s72, %s88
    %p90 = scmp.eq.s32.totalorder %s17, 0
    %p91 = por %p89, %p90
    %s92 = ssub.s32 %s11, %s18
    %p93 = scmp.eq.s32.totalorder %s92, 0
    %s95 = sadd.s32 %s94, 1
    %s96 = scalar_select %p93, %s94, %s95
    %p99 = pneg %p93
    %p100 = scmp.eq.s32.totalorder %s11, 1
    %p101 = por %p99, %p100
    %p102 = scmp.ne.s32.totalorder %s94, %s97
    %p103 = scmp.eq.s32.totalorder %s11, 0
    %p104 = por %p102, %p103
    %p105 = scmp.ne.s32.totalorder %s94, %s97
    %p106 = scmp.eq.s32.totalorder %s16, 1
    %p107 = por %p105, %p106
    %p108 = scmp.ne.s32.totalorder %s97, %s98
    %p109 = scmp.eq.s32.totalorder %s16, 0
    %p110 = por %p108, %p109
    %p111 = scmp.ne.s32.totalorder %s97, %s98
    %p112 = scmp.eq.s32.totalorder %s17, 1
    %p113 = por %p111, %p112
    %p115 = scmp.ne.s32.totalorder %s98, %s114
    %p116 = scmp.eq.s32.totalorder %s17, 0
    %p117 = por %p115, %p116
    %s118 = ssub.s32 %s11, %s18
    %p119 = scmp.eq.s32.totalorder %s118, 0
    %s121 = sadd.s32 %s120, 1
    %s122 = scalar_select %p119, %s120, %s121
    %p125 = pneg %p119
    %p126 = scmp.eq.s32.totalorder %s11, 1
    %p127 = por %p125, %p126
    %p128 = scmp.ne.s32.totalorder %s120, %s123
    %p129 = scmp.eq.s32.totalorder %s11, 0
    %p130 = por %p128, %p129
    %p131 = scmp.ne.s32.totalorder %s120, %s123
    %p132 = scmp.eq.s32.totalorder %s16, 1
    %p133 = por %p131, %p132
    %p134 = scmp.ne.s32.totalorder %s123, %s124
    %p135 = scmp.eq.s32.totalorder %s16, 0
    %p136 = por %p134, %p135
    %p137 = scmp.ne.s32.totalorder %s123, %s124
    %p138 = scmp.eq.s32.totalorder %s17, 1
    %p139 = por %p137, %p138
    %p141 = scmp.ne.s32.totalorder %s124, %s140
    %p142 = scmp.eq.s32.totalorder %s17, 0
    %p143 = por %p141, %p142
    %p144 = scmp.le.s32.totalorder 1, %s11
    %p145 = scmp.lt.s32.totalorder %s11, 3
    %p146 = pnand %p144, %p145
    %p147 = pneg %p146
    // Predicated region
    $region9: #{basic_block_forward.5} parent=5 // pred_check
      _
    $region10: #{basic_block_forward.5} parent=5 // pred_check_branch
      %149 = sbr.rel (%p146) target = $region12
    $region11: #{basic_block_forward.5} parent=5 // pred_region
      %s150 = ssub.s32 %s11, 1
      // Predicated region
      $region13: #{basic_block_forward.5} parent=11 // pred_check
        %p151 = pneg %p58
      $region14: #{basic_block_forward.5} parent=11 // pred_check_branch
        %153 = sbr.rel (%p151) target = $region16
      $region15: #{basic_block_forward.5} parent=11 // pred_region
        _
      $region16: #{basic_block_forward.5} parent=11 // pred_fallthru
        _
    $region12: #{basic_block_forward.5} parent=5 // pred_fallthru
      _
    %p154 = scmp.lt.s32.totalorder %s11, 2
    // Predicated region
    $region17: #{basic_block_forward.5} parent=5 // pred_check
      %p155 = pneg %p154
    $region18: #{basic_block_forward.5} parent=5 // pred_check_branch
      %157 = sbr.rel (%p155) target = $region20
    $region19: #{basic_block_forward.5} parent=5 // pred_region
      // Predicated region
      $region21: #{basic_block_forward.5} parent=19 // pred_check
        %p158 = pneg %p31
      $region22: #{basic_block_forward.5} parent=19 // pred_check_branch
        %160 = sbr.rel (%p158) target = $region24
      $region23: #{basic_block_forward.5} parent=19 // pred_region
        %s161 = smul.u32 36, %s11
        %p162 = scmp.lt.s32.totalorder %s161, 71
        %s163 = scalar_select %p162, %s161, 71
        %s164 = smul.addr %s163, 2
        %s165 = smul.addr %s164, 8
        %s166 = scalar_lea.vmem %s0, %s165
        %s167 = smul.u32 36, %s11
      $region24: #{basic_block_forward.5} parent=19 // pred_fallthru
        _
    $region20: #{basic_block_forward.5} parent=5 // pred_fallthru
      _
    %p168 = scmp.le.s32.totalorder 1, %s11
    %p169 = scmp.lt.s32.totalorder %s11, 3
    %p170 = pnand %p168, %p169
    %p171 = pneg %p170
    // Predicated region
    $region25: #{basic_block_forward.5} parent=5 // pred_check
      _
    $region26: #{basic_block_forward.5} parent=5 // pred_check_branch
      %173 = sbr.rel (%p170) target = $region28
    $region27: #{basic_block_forward.5} parent=5 // pred_region
      %s174 = ssub.s32 %s11, 1
      %s175 = smul.u32 36, %s16
      %p176 = scmp.lt.s32.totalorder %s175, 71
      %s177 = scalar_select %p176, %s175, 71
      %s178 = smul.addr %s177, 2
      %s179 = smul.addr %s178, 8
      %s180 = scalar_lea.vmem %s0, %s179
      %p181 = pneg %p37
      %p182 = pneg %p34
      %p183 = pneg %p58
      %p184 = pneg %p55
      %p185 = pneg %p84
      %p186 = pneg %p81
      %s187 = smul.u32 8, %s16
      %p188 = scmp.lt.s32.totalorder %s187, 15
      %s189 = scalar_select %p188, %s187, 15
      %s190 = smul.addr %s189, 8
      %s191 = scalar_lea.vmem %s2, %s190
      %p192 = pneg %p110
      %p193 = pneg %p107
      %p194 = scmp.lt.s32.totalorder %s16, 1
      %s195 = scalar_select %p194, %s16, 1
      %s196 = smul.addr %s195, 8
      %s197 = scalar_lea.vmem %s3, %s196
      %p198 = pneg %p136
      %p199 = pneg %p133
      %p200 = scmp.lt.s32.totalorder %s16, 1
      %s201 = scalar_select %p200, %s16, 1
      %s202 = smul.addr %s201, 8
      %s203 = scalar_lea.vmem %s4, %s202
      %s204 = smul.u32 36, %s16
      %p205 = scmp.lt.s32.totalorder %s204, 71
      %s206 = scalar_select %p205, %s204, 71
      %s207 = smul.addr %s206, 2
      %s208 = smul.addr %s207, 8
      %s209 = scalar_lea.vmem %s0, %s208
      %s210 = smul.u32 36, %s16
      %s211 = smul.u32 8, %s16
      %p212 = scmp.lt.s32.totalorder %s211, 15
      %s213 = scalar_select %p212, %s211, 15
      %s214 = smul.addr %s213, 8
      %s215 = scalar_lea.vmem %s2, %s214
      %s216 = smul.u32 8, %s16
      %p217 = scmp.lt.s32.totalorder %s16, 1
      %s218 = scalar_select %p217, %s16, 1
      %s219 = smul.addr %s218, 8
      %s220 = scalar_lea.vmem %s3, %s219
      %p221 = scmp.lt.s32.totalorder %s16, 1
      %s222 = scalar_select %p221, %s16, 1
      %s223 = smul.addr %s222, 8
      %s224 = scalar_lea.vmem %s4, %s223
      %v225 = vld [vmem:[%s209] sm:$0xff]
      %v226 = vld [vmem:[%s209 + $0x10] sm:$0xff]
      %v227 = vld [vmem:[%s209 + $0x20] sm:$0xff]
      %v228 = vld [vmem:[%s209 + $0x30] sm:$0xff]
      %v229 = vld [vmem:[%s209 + $0x40] sm:$0xff]
      %v230 = vld [vmem:[%s209 + $0x50] sm:$0xff]
      %v231 = vld [vmem:[%s209 + $0x60] sm:$0xff]
      %v232 = vld [vmem:[%s209 + $0x70] sm:$0xff]
      %v233 = vld [vmem:[%s1] sm:$0xff]
      %v234 = vld [vmem:[%s1 + $0x8] sm:$0xff]
      %v235 = vld [vmem:[%s1 + $0x10] sm:$0xff]
      %v236 = vld [vmem:[%s1 + $0x18] sm:$0xff]
      %v237 = vld [vmem:[%s1 + $0x20] sm:$0xff]
      %v238 = vld [vmem:[%s1 + $0x28] sm:$0xff]
      %v239 = vld [vmem:[%s1 + $0x30] sm:$0xff]
      %v240 = vld [vmem:[%s1 + $0x38] sm:$0xff]
      %v241 = vld [vmem:[%s1 + $0x40] sm:$0xff]
      %v242 = vld [vmem:[%s1 + $0x48] sm:$0xff]
      %v243 = vld [vmem:[%s1 + $0x50] sm:$0xff]
      %v244 = vld [vmem:[%s1 + $0x58] sm:$0xff]
      %v245 = vld [vmem:[%s1 + $0x60] sm:$0xff]
      %v246 = vld [vmem:[%s1 + $0x68] sm:$0xff]
      %v247 = vld [vmem:[%s1 + $0x70] sm:$0xff]
      %v248 = vld [vmem:[%s1 + $0x78] sm:$0xff]
      %s249 = scalar_lea.vmem %s209, 144
      %v250 = vld [vmem:[%s249] sm:$0xff]
      %v251 = vld [vmem:[%s249 + $0x10] sm:$0xff]
      %v252 = vld [vmem:[%s249 + $0x20] sm:$0xff]
      %v253 = vld [vmem:[%s249 + $0x30] sm:$0xff]
      %v254 = vld [vmem:[%s249 + $0x40] sm:$0xff]
      %v255 = vld [vmem:[%s249 + $0x50] sm:$0xff]
      %v256 = vld [vmem:[%s249 + $0x60] sm:$0xff]
      %v257 = vld [vmem:[%s249 + $0x70] sm:$0xff]
      %v258 = vld [vmem:[%s1 + $0x80] sm:$0xff]
      %v259 = vld [vmem:[%s1 + $0x88] sm:$0xff]
      %v260 = vld [vmem:[%s1 + $0x90] sm:$0xff]
      %v261 = vld [vmem:[%s1 + $0x98] sm:$0xff]
      %v262 = vld [vmem:[%s1 + $0xa0] sm:$0xff]
      %v263 = vld [vmem:[%s1 + $0xa8] sm:$0xff]
      %v264 = vld [vmem:[%s1 + $0xb0] sm:$0xff]
      %v265 = vld [vmem:[%s1 + $0xb8] sm:$0xff]
      %v266 = vld [vmem:[%s1 + $0xc0] sm:$0xff]
      %v267 = vld [vmem:[%s1 + $0xc8] sm:$0xff]
      %v268 = vld [vmem:[%s1 + $0xd0] sm:$0xff]
      %v269 = vld [vmem:[%s1 + $0xd8] sm:$0xff]
      %v270 = vld [vmem:[%s1 + $0xe0] sm:$0xff]
      %v271 = vld [vmem:[%s1 + $0xe8] sm:$0xff]
      %v272 = vld [vmem:[%s1 + $0xf0] sm:$0xff]
      %v273 = vld [vmem:[%s1 + $0xf8] sm:$0xff]
      %274 = vmatprep.subr.mxu0 0.0
      %275 = vmatpush1.msra.mxu0 %v258
      %276 = vmatprep.subr.mxu0 0.0
      %277 = vmatpush1.msra.mxu0 %v259
      %278 = vmatprep.subr.mxu0 0.0
      %279 = vmatpush1.msra.mxu0 %v260
      %280 = vmatprep.subr.mxu0 0.0
      %281 = vmatpush1.msra.mxu0 %v261
      %282 = vmatprep.subr.mxu0 0.0
      %283 = vmatpush1.msra.mxu0 %v262
      %284 = vmatprep.subr.mxu0 0.0
      %285 = vmatpush1.msra.mxu0 %v263
      %286 = vmatprep.subr.mxu0 0.0
      %287 = vmatpush1.msra.mxu0 %v264
      %288 = vmatprep.subr.mxu0 0.0
      %289 = vmatpush1.msra.mxu0 %v265
      %290 = vmatprep.subr.mxu0 0.0
      %291 = vmatpush1.msra.mxu0 %v266
      %292 = vmatprep.subr.mxu0 0.0
      %293 = vmatpush1.msra.mxu0 %v267
      %294 = vmatprep.subr.mxu0 0.0
      %295 = vmatpush1.msra.mxu0 %v268
      %296 = vmatprep.subr.mxu0 0.0
      %297 = vmatpush1.msra.mxu0 %v269
      %298 = vmatprep.subr.mxu0 0.0
      %299 = vmatpush1.msra.mxu0 %v270
      %300 = vmatprep.subr.mxu0 0.0
      %301 = vmatpush1.msra.mxu0 %v271
      %302 = vmatprep.subr.mxu0 0.0
      %303 = vmatpush1.msra.mxu0 %v272
      %304 = vmatprep.subr.mxu0 0.0
      %305 = vmatpush1.msra.mxu0 %v273
      %306 = vmatprep.subr.mxu0 0.0
      %307 = vmatpush1.msra.mxu0 0.0
      %308 = vmatprep.subr.mxu0 0.0
      %309 = vmatpush1.msra.mxu0 0.0
      %310 = vmatprep.subr.mxu0 0.0
      %311 = vmatpush1.msra.mxu0 0.0
      %312 = vmatprep.subr.mxu0 0.0
      %313 = vmatpush1.msra.mxu0 0.0
      %314 = vmatprep.subr.mxu0 0.0
      %315 = vmatpush1.msra.mxu0 0.0
      %316 = vmatprep.subr.mxu0 0.0
      %317 = vmatpush1.msra.mxu0 0.0
      %318 = vmatprep.subr.mxu0 0.0
      %319 = vmatpush1.msra.mxu0 0.0
      %320 = vmatprep.subr.mxu0 0.0
      %321 = vmatpush1.msra.mxu0 0.0
      %322 = vmatprep.subr.mxu0 0.0
      %323 = vmatpush1.msra.mxu0 0.0
      %324 = vmatprep.subr.mxu0 0.0
      %325 = vmatpush1.msra.mxu0 0.0
      %326 = vmatprep.subr.mxu0 0.0
      %327 = vmatpush1.msra.mxu0 0.0
      %328 = vmatprep.subr.mxu0 0.0
      %329 = vmatpush1.msra.mxu0 0.0
      %330 = vmatprep.subr.mxu0 0.0
      %331 = vmatpush1.msra.mxu0 0.0
      %332 = vmatprep.subr.mxu0 0.0
      %333 = vmatpush1.msra.mxu0 0.0
      %334 = vmatprep.subr.mxu0 0.0
      %335 = vmatpush1.msra.mxu0 0.0
      %336 = vmatprep.subr.mxu0 0.0
      %337 = vmatpush1.msra.mxu0 0.0
      %338 = vmatprep.mubr.f32.mxu0 0.0
      %339 = vmatmul.mubr.f32.gmra.mrb[0].mxu0 %v250
      %v340 = vpop.f32.mrb[0].mxu0
      %v341 = vadd.f32 0.0, %v340
      %v342 = vpop.f32.mrb[0].mxu0
      %343 = vmatprep.mubr.f32.mxu0 0.0
      %344 = vmatmul.mubr.f32.gmra.mrb[0].mxu0 %v251
      %v345 = vpop.f32.mrb[0].mxu0
      %v346 = vadd.f32 0.0, %v345
      %v347 = vpop.f32.mrb[0].mxu0
      %348 = vmatprep.mubr.f32.mxu0 0.0
      %349 = vmatmul.mubr.f32.gmra.mrb[0].mxu0 %v252
      %v350 = vpop.f32.mrb[0].mxu0
      %v351 = vadd.f32 0.0, %v350
      %v352 = vpop.f32.mrb[0].mxu0
      %353 = vmatprep.mubr.f32.mxu0 0.0
      %354 = vmatmul.mubr.f32.gmra.mrb[0].mxu0 %v253
      %v355 = vpop.f32.mrb[0].mxu0
      %v356 = vadd.f32 0.0, %v355
      %v357 = vpop.f32.mrb[0].mxu0
      %358 = vmatprep.mubr.f32.mxu0 0.0
      %359 = vmatmul.mubr.f32.gmra.mrb[0].mxu0 %v254
      %v360 = vpop.f32.mrb[0].mxu0
      %v361 = vadd.f32 0.0, %v360
      %v362 = vpop.f32.mrb[0].mxu0
      %363 = vmatprep.mubr.f32.mxu0 0.0
      %364 = vmatmul.mubr.f32.gmra.mrb[0].mxu0 %v255
      %v365 = vpop.f32.mrb[0].mxu0
      %v366 = vadd.f32 0.0, %v365
      %v367 = vpop.f32.mrb[0].mxu0
      %368 = vmatprep.mubr.f32.mxu0 0.0
      %369 = vmatmul.mubr.f32.gmra.mrb[0].mxu0 %v256
      %v370 = vpop.f32.mrb[0].mxu0
      %v371 = vadd.f32 0.0, %v370
      %v372 = vpop.f32.mrb[0].mxu0
      %373 = vmatprep.mubr.f32.mxu0 0.0
      %374 = vmatmul.mubr.f32.gmra.mrb[0].mxu0 %v257
      %v375 = vpop.f32.mrb[0].mxu0
      %v376 = vadd.f32 0.0, %v375
      %v377 = vpop.f32.mrb[0].mxu0
      %378 = vdwg.mxu0
      %379 = vmatprep.subr.mxu0 0.0
      %380 = vmatpush1.msra.mxu0 %v233
      %381 = vmatprep.subr.mxu0 0.0
      %382 = vmatpush1.msra.mxu0 %v234
      %383 = vmatprep.subr.mxu0 0.0
      %384 = vmatpush1.msra.mxu0 %v235
      %385 = vmatprep.subr.mxu0 0.0
      %386 = vmatpush1.msra.mxu0 %v236
      %387 = vmatprep.subr.mxu0 0.0
      %388 = vmatpush1.msra.mxu0 %v237
      %389 = vmatprep.subr.mxu0 0.0
      %390 = vmatpush1.msra.mxu0 %v238
      %391 = vmatprep.subr.mxu0 0.0
      %392 = vmatpush1.msra.mxu0 %v239
      %393 = vmatprep.subr.mxu0 0.0
      %394 = vmatpush1.msra.mxu0 %v240
      %395 = vmatprep.subr.mxu0 0.0
      %396 = vmatpush1.msra.mxu0 %v241
      %397 = vmatprep.subr.mxu0 0.0
      %398 = vmatpush1.msra.mxu0 %v242
      %399 = vmatprep.subr.mxu0 0.0
      %400 = vmatpush1.msra.mxu0 %v243
      %401 = vmatprep.subr.mxu0 0.0
      %402 = vmatpush1.msra.mxu0 %v244
      %403 = vmatprep.subr.mxu0 0.0
      %404 = vmatpush1.msra.mxu0 %v245
      %405 = vmatprep.subr.mxu0 0.0
      %406 = vmatpush1.msra.mxu0 %v246
      %407 = vmatprep.subr.mxu0 0.0
      %408 = vmatpush1.msra.mxu0 %v247
      %409 = vmatprep.subr.mxu0 0.0
      %410 = vmatpush1.msra.mxu0 %v248
      %411 = vmatprep.subr.mxu0 0.0
      %412 = vmatpush1.msra.mxu0 0.0
      %413 = vmatprep.subr.mxu0 0.0
      %414 = vmatpush1.msra.mxu0 0.0
      %415 = vmatprep.subr.mxu0 0.0
      %416 = vmatpush1.msra.mxu0 0.0
      %417 = vmatprep.subr.mxu0 0.0
      %418 = vmatpush1.msra.mxu0 0.0
      %419 = vmatprep.subr.mxu0 0.0
      %420 = vmatpush1.msra.mxu0 0.0
      %421 = vmatprep.subr.mxu0 0.0
      %422 = vmatpush1.msra.mxu0 0.0
      %423 = vmatprep.subr.mxu0 0.0
      %424 = vmatpush1.msra.mxu0 0.0
      %425 = vmatprep.subr.mxu0 0.0
      %426 = vmatpush1.msra.mxu0 0.0
      %427 = vmatprep.subr.mxu0 0.0
      %428 = vmatpush1.msra.mxu0 0.0
      %429 = vmatprep.subr.mxu0 0.0
      %430 = vmatpush1.msra.mxu0 0.0
      %431 = vmatprep.subr.mxu0 0.0
      %432 = vmatpush1.msra.mxu0 0.0
      %433 = vmatprep.subr.mxu0 0.0
      %434 = vmatpush1.msra.mxu0 0.0
      %435 = vmatprep.subr.mxu0 0.0
      %436 = vmatpush1.msra.mxu0 0.0
      %437 = vmatprep.subr.mxu0 0.0
      %438 = vmatpush1.msra.mxu0 0.0
      %439 = vmatprep.subr.mxu0 0.0
      %440 = vmatpush1.msra.mxu0 0.0
      %441 = vmatprep.subr.mxu0 0.0
      %442 = vmatpush1.msra.mxu0 0.0
      %443 = vmatprep.mubr.f32.mxu0 0.0
      %444 = vmatmul.mubr.f32.gmra.mrb[0].mxu0 %v225
      %v445 = vpop.f32.mrb[0].mxu0
      %v446 = vadd.f32 %v341, %v445
      %v447 = vpop.f32.mrb[0].mxu0
      %448 = vmatprep.mubr.f32.mxu0 0.0
      %449 = vmatmul.mubr.f32.gmra.mrb[0].mxu0 %v226
      %v450 = vpop.f32.mrb[0].mxu0
      %v451 = vadd.f32 %v346, %v450
      %v452 = vpop.f32.mrb[0].mxu0
      %453 = vmatprep.mubr.f32.mxu0 0.0
      %454 = vmatmul.mubr.f32.gmra.mrb[0].mxu0 %v227
      %v455 = vpop.f32.mrb[0].mxu0
      %v456 = vadd.f32 %v351, %v455
      %v457 = vpop.f32.mrb[0].mxu0
      %458 = vmatprep.mubr.f32.mxu0 0.0
      %459 = vmatmul.mubr.f32.gmra.mrb[0].mxu0 %v228
      %v460 = vpop.f32.mrb[0].mxu0
      %v461 = vadd.f32 %v356, %v460
      %v462 = vpop.f32.mrb[0].mxu0
      %463 = vmatprep.mubr.f32.mxu0 0.0
      %464 = vmatmul.mubr.f32.gmra.mrb[0].mxu0 %v229
      %v465 = vpop.f32.mrb[0].mxu0
      %v466 = vadd.f32 %v361, %v465
      %v467 = vpop.f32.mrb[0].mxu0
      %468 = vmatprep.mubr.f32.mxu0 0.0
      %469 = vmatmul.mubr.f32.gmra.mrb[0].mxu0 %v230
      %v470 = vpop.f32.mrb[0].mxu0
      %v471 = vadd.f32 %v366, %v470
      %v472 = vpop.f32.mrb[0].mxu0
      %473 = vmatprep.mubr.f32.mxu0 0.0
      %474 = vmatmul.mubr.f32.gmra.mrb[0].mxu0 %v231
      %v475 = vpop.f32.mrb[0].mxu0
      %v476 = vadd.f32 %v371, %v475
      %v477 = vpop.f32.mrb[0].mxu0
      %478 = vmatprep.mubr.f32.mxu0 0.0
      %479 = vmatmul.mubr.f32.gmra.mrb[0].mxu0 %v232
      %v480 = vpop.f32.mrb[0].mxu0
      %v481 = vadd.f32 %v376, %v480
      %v482 = vpop.f32.mrb[0].mxu0
      %483 = vdwg.mxu0
      %v484 = vld [vmem:[%s209 + $0x1] sm:$0xff]
      %v485 = vld [vmem:[%s209 + $0x11] sm:$0xff]
      %v486 = vld [vmem:[%s209 + $0x21] sm:$0xff]
      %v487 = vld [vmem:[%s209 + $0x31] sm:$0xff]
      %v488 = vld [vmem:[%s209 + $0x41] sm:$0xff]
      %v489 = vld [vmem:[%s209 + $0x51] sm:$0xff]
      %v490 = vld [vmem:[%s209 + $0x61] sm:$0xff]
      %v491 = vld [vmem:[%s209 + $0x71] sm:$0xff]
      %v492 = vld [vmem:[%s1 + $0x100] sm:$0xff]
      %v493 = vld [vmem:[%s1 + $0x108] sm:$0xff]
      %v494 = vld [vmem:[%s1 + $0x110] sm:$0xff]
      %v495 = vld [vmem:[%s1 + $0x118] sm:$0xff]
      %v496 = vld [vmem:[%s1 + $0x120] sm:$0xff]
      %v497 = vld [vmem:[%s1 + $0x128] sm:$0xff]
      %v498 = vld [vmem:[%s1 + $0x130] sm:$0xff]
      %v499 = vld [vmem:[%s1 + $0x138] sm:$0xff]
      %v500 = vld [vmem:[%s1 + $0x140] sm:$0xff]
      %v501 = vld [vmem:[%s1 + $0x148] sm:$0xff]
      %v502 = vld [vmem:[%s1 + $0x150] sm:$0xff]
      %v503 = vld [vmem:[%s1 + $0x158] sm:$0xff]
      %v504 = vld [vmem:[%s1 + $0x160] sm:$0xff]
      %v505 = vld [vmem:[%s1 + $0x168] sm:$0xff]
      %v506 = vld [vmem:[%s1 + $0x170] sm:$0xff]
      %v507 = vld [vmem:[%s1 + $0x178] sm:$0xff]
      %508 = vmatprep.subr.mxu0 0.0
      %509 = vmatpush1.msra.mxu0 %v492
      %510 = vmatprep.subr.mxu0 0.0
      %511 = vmatpush1.msra.mxu0 %v493
      %512 = vmatprep.subr.mxu0 0.0
      %513 = vmatpush1.msra.mxu0 %v494
      %514 = vmatprep.subr.mxu0 0.0
      %515 = vmatpush1.msra.mxu0 %v495
      %516 = vmatprep.subr.mxu0 0.0
      %517 = vmatpush1.msra.mxu0 %v496
      %518 = vmatprep.subr.mxu0 0.0
      %519 = vmatpush1.msra.mxu0 %v497
      %520 = vmatprep.subr.mxu0 0.0
      %521 = vmatpush1.msra.mxu0 %v498
      %522 = vmatprep.subr.mxu0 0.0
      %523 = vmatpush1.msra.mxu0 %v499
      %524 = vmatprep.subr.mxu0 0.0
      %525 = vmatpush1.msra.mxu0 %v500
      %526 = vmatprep.subr.mxu0 0.0
      %527 = vmatpush1.msra.mxu0 %v501
      %528 = vmatprep.subr.mxu0 0.0
      %529 = vmatpush1.msra.mxu0 %v502
      %530 = vmatprep.subr.mxu0 0.0
      %531 = vmatpush1.msra.mxu0 %v503
      %532 = vmatprep.subr.mxu0 0.0
      %533 = vmatpush1.msra.mxu0 %v504
      %534 = vmatprep.subr.mxu0 0.0
      %535 = vmatpush1.msra.mxu0 %v505
      %536 = vmatprep.subr.mxu0 0.0
      %537 = vmatpush1.msra.mxu0 %v506
      %538 = vmatprep.subr.mxu0 0.0
      %539 = vmatpush1.msra.mxu0 %v507
      %540 = vmatprep.subr.mxu0 0.0
      %541 = vmatpush1.msra.mxu0 0.0
      %542 = vmatprep.subr.mxu0 0.0
      %543 = vmatpush1.msra.mxu0 0.0
      %544 = vmatprep.subr.mxu0 0.0
      %545 = vmatpush1.msra.mxu0 0.0
      %546 = vmatprep.subr.mxu0 0.0
      %547 = vmatpush1.msra.mxu0 0.0
      %548 = vmatprep.subr.mxu0 0.0
      %549 = vmatpush1.msra.mxu0 0.0
      %550 = vmatprep.subr.mxu0 0.0
      %551 = vmatpush1.msra.mxu0 0.0
      %552 = vmatprep.subr.mxu0 0.0
      %553 = vmatpush1.msra.mxu0 0.0
      %554 = vmatprep.subr.mxu0 0.0
      %555 = vmatpush1.msra.mxu0 0.0
      %556 = vmatprep.subr.mxu0 0.0
      %557 = vmatpush1.msra.mxu0 0.0
      %558 = vmatprep.subr.mxu0 0.0
      %559 = vmatpush1.msra.mxu0 0.0
      %560 = vmatprep.subr.mxu0 0.0
      %561 = vmatpush1.msra.mxu0 0.0
      %562 = vmatprep.subr.mxu0 0.0
      %563 = vmatpush1.msra.mxu0 0.0
      %564 = vmatprep.subr.mxu0 0.0
      %565 = vmatpush1.msra.mxu0 0.0
      %566 = vmatprep.subr.mxu0 0.0
      %567 = vmatpush1.msra.mxu0 0.0
      %568 = vmatprep.subr.mxu0 0.0
      %569 = vmatpush1.msra.mxu0 0.0
      %570 = vmatprep.subr.mxu0 0.0
      %571 = vmatpush1.msra.mxu0 0.0
      %572 = vmatprep.mubr.f32.mxu0 0.0
      %573 = vmatmul.mubr.f32.gmra.mrb[0].mxu0 %v484
      %v574 = vpop.f32.mrb[0].mxu0
      %v575 = vadd.f32 0.0, %v574
      %v576 = vpop.f32.mrb[0].mxu0
      %577 = vmatprep.mubr.f32.mxu0 0.0
      %578 = vmatmul.mubr.f32.gmra.mrb[0].mxu0 %v485
      %v579 = vpop.f32.mrb[0].mxu0
      %v580 = vadd.f32 0.0, %v579
      %v581 = vpop.f32.mrb[0].mxu0
      %582 = vmatprep.mubr.f32.mxu0 0.0
      %583 = vmatmul.mubr.f32.gmra.mrb[0].mxu0 %v486
      %v584 = vpop.f32.mrb[0].mxu0
      %v585 = vadd.f32 0.0, %v584
      %v586 = vpop.f32.mrb[0].mxu0
      %587 = vmatprep.mubr.f32.mxu0 0.0
      %588 = vmatmul.mubr.f32.gmra.mrb[0].mxu0 %v487
      %v589 = vpop.f32.mrb[0].mxu0
      %v590 = vadd.f32 0.0, %v589
      %v591 = vpop.f32.mrb[0].mxu0
      %592 = vmatprep.mubr.f32.mxu0 0.0
      %593 = vmatmul.mubr.f32.gmra.mrb[0].mxu0 %v488
      %v594 = vpop.f32.mrb[0].mxu0
      %v595 = vadd.f32 0.0, %v594
      %v596 = vpop.f32.mrb[0].mxu0
      %597 = vmatprep.mubr.f32.mxu0 0.0
      %598 = vmatmul.mubr.f32.gmra.mrb[0].mxu0 %v489
      %v599 = vpop.f32.mrb[0].mxu0
      %v600 = vadd.f32 0.0, %v599
      %v601 = vpop.f32.mrb[0].mxu0
      %602 = vmatprep.mubr.f32.mxu0 0.0
      %603 = vmatmul.mubr.f32.gmra.mrb[0].mxu0 %v490
      %v604 = vpop.f32.mrb[0].mxu0
      %v605 = vadd.f32 0.0, %v604
      %v606 = vpop.f32.mrb[0].mxu0
      %607 = vmatprep.mubr.f32.mxu0 0.0
      %608 = vmatmul.mubr.f32.gmra.mrb[0].mxu0 %v491
      %v609 = vpop.f32.mrb[0].mxu0
      %v610 = vadd.f32 0.0, %v609
      %v611 = vpop.f32.mrb[0].mxu0
      %612 = vdwg.mxu0
      %v613 = vadd.f32 %v446, %v575
      %v614 = vadd.f32 %v451, %v580
      %v615 = vadd.f32 %v456, %v585
      %v616 = vadd.f32 %v461, %v590
      %v617 = vadd.f32 %v466, %v595
      %v618 = vadd.f32 %v471, %v600
      %v619 = vadd.f32 %v476, %v605
      %v620 = vadd.f32 %v481, %v610
      %s621 = scalar_lea.vmem %s209, 288
      %v622 = vld [vmem:[%s621] sm:$0xff]
      %v623 = vld [vmem:[%s621 + $0x10] sm:$0xff]
      %v624 = vld [vmem:[%s621 + $0x20] sm:$0xff]
      %v625 = vld [vmem:[%s621 + $0x30] sm:$0xff]
      %v626 = vld [vmem:[%s621 + $0x40] sm:$0xff]
      %v627 = vld [vmem:[%s621 + $0x50] sm:$0xff]
      %v628 = vld [vmem:[%s621 + $0x60] sm:$0xff]
      %v629 = vld [vmem:[%s621 + $0x70] sm:$0xff]
      %v630 = vld [vmem:[%s1 + $0x180] sm:$0xff]
      %v631 = vld [vmem:[%s1 + $0x188] sm:$0xff]
      %v632 = vld [vmem:[%s1 + $0x190] sm:$0xff]
      %v633 = vld [vmem:[%s1 + $0x198] sm:$0xff]
      %v634 = vld [vmem:[%s1 + $0x1a0] sm:$0xff]
      %v635 = vld [vmem:[%s1 + $0x1a8] sm:$0xff]
      %v636 = vld [vmem:[%s1 + $0x1b0] sm:$0xff]
      %v637 = vld [vmem:[%s1 + $0x1b8] sm:$0xff]
      %v638 = vld [vmem:[%s1 + $0x1c0] sm:$0xff]
      %v639 = vld [vmem:[%s1 + $0x1c8] sm:$0xff]
      %v640 = vld [vmem:[%s1 + $0x1d0] sm:$0xff]
      %v641 = vld [vmem:[%s1 + $0x1d8] sm:$0xff]
      %v642 = vld [vmem:[%s1 + $0x1e0] sm:$0xff]
      %v643 = vld [vmem:[%s1 + $0x1e8] sm:$0xff]
      %v644 = vld [vmem:[%s1 + $0x1f0] sm:$0xff]
      %v645 = vld [vmem:[%s1 + $0x1f8] sm:$0xff]
      %646 = vmatprep.subr.mxu0 0.0
      %647 = vmatpush1.msra.mxu0 %v630
      %648 = vmatprep.subr.mxu0 0.0
      %649 = vmatpush1.msra.mxu0 %v631
      %650 = vmatprep.subr.mxu0 0.0
      %651 = vmatpush1.msra.mxu0 %v632
      %652 = vmatprep.subr.mxu0 0.0
      %653 = vmatpush1.msra.mxu0 %v633
      %654 = vmatprep.subr.mxu0 0.0
      %655 = vmatpush1.msra.mxu0 %v634
      %656 = vmatprep.subr.mxu0 0.0
      %657 = vmatpush1.msra.mxu0 %v635
      %658 = vmatprep.subr.mxu0 0.0
      %659 = vmatpush1.msra.mxu0 %v636
      %660 = vmatprep.subr.mxu0 0.0
      %661 = vmatpush1.msra.mxu0 %v637
      %662 = vmatprep.subr.mxu0 0.0
      %663 = vmatpush1.msra.mxu0 %v638
      %664 = vmatprep.subr.mxu0 0.0
      %665 = vmatpush1.msra.mxu0 %v639
      %666 = vmatprep.subr.mxu0 0.0
      %667 = vmatpush1.msra.mxu0 %v640
      %668 = vmatprep.subr.mxu0 0.0
      %669 = vmatpush1.msra.mxu0 %v641
      %670 = vmatprep.subr.mxu0 0.0
      %671 = vmatpush1.msra.mxu0 %v642
      %672 = vmatprep.subr.mxu0 0.0
      %673 = vmatpush1.msra.mxu0 %v643
      %674 = vmatprep.subr.mxu0 0.0
      %675 = vmatpush1.msra.mxu0 %v644
      %676 = vmatprep.subr.mxu0 0.0
      %677 = vmatpush1.msra.mxu0 %v645
      %678 = vmatprep.subr.mxu0 0.0
      %679 = vmatpush1.msra.mxu0 0.0
      %680 = vmatprep.subr.mxu0 0.0
      %681 = vmatpush1.msra.mxu0 0.0
      %682 = vmatprep.subr.mxu0 0.0
      %683 = vmatpush1.msra.mxu0 0.0
      %684 = vmatprep.subr.mxu0 0.0
      %685 = vmatpush1.msra.mxu0 0.0
      %686 = vmatprep.subr.mxu0 0.0
      %687 = vmatpush1.msra.mxu0 0.0
      %688 = vmatprep.subr.mxu0 0.0
      %689 = vmatpush1.msra.mxu0 0.0
      %690 = vmatprep.subr.mxu0 0.0
      %691 = vmatpush1.msra.mxu0 0.0
      %692 = vmatprep.subr.mxu0 0.0
      %693 = vmatpush1.msra.mxu0 0.0
      %694 = vmatprep.subr.mxu0 0.0
      %695 = vmatpush1.msra.mxu0 0.0
      %696 = vmatprep.subr.mxu0 0.0
      %697 = vmatpush1.msra.mxu0 0.0
      %698 = vmatprep.subr.mxu0 0.0
      %699 = vmatpush1.msra.mxu0 0.0
      %700 = vmatprep.subr.mxu0 0.0
      %701 = vmatpush1.msra.mxu0 0.0
      %702 = vmatprep.subr.mxu0 0.0
      %703 = vmatpush1.msra.mxu0 0.0
      %704 = vmatprep.subr.mxu0 0.0
      %705 = vmatpush1.msra.mxu0 0.0
      %706 = vmatprep.subr.mxu0 0.0
      %707 = vmatpush1.msra.mxu0 0.0
      %708 = vmatprep.subr.mxu0 0.0
      %709 = vmatpush1.msra.mxu0 0.0
      %710 = vmatprep.mubr.f32.mxu0 0.0
      %711 = vmatmul.mubr.f32.gmra.mrb[0].mxu0 %v622
      %v712 = vpop.f32.mrb[0].mxu0
      %v713 = vadd.f32 0.0, %v712
      %v714 = vpop.f32.mrb[0].mxu0
      %715 = vmatprep.mubr.f32.mxu0 0.0
      %716 = vmatmul.mubr.f32.gmra.mrb[0].mxu0 %v623
      %v717 = vpop.f32.mrb[0].mxu0
      %v718 = vadd.f32 0.0, %v717
      %v719 = vpop.f32.mrb[0].mxu0
      %720 = vmatprep.mubr.f32.mxu0 0.0
      %721 = vmatmul.mubr.f32.gmra.mrb[0].mxu0 %v624
      %v722 = vpop.f32.mrb[0].mxu0
      %v723 = vadd.f32 0.0, %v722
      %v724 = vpop.f32.mrb[0].mxu0
      %725 = vmatprep.mubr.f32.mxu0 0.0
      %726 = vmatmul.mubr.f32.gmra.mrb[0].mxu0 %v625
      %v727 = vpop.f32.mrb[0].mxu0
      %v728 = vadd.f32 0.0, %v727
      %v729 = vpop.f32.mrb[0].mxu0
      %730 = vmatprep.mubr.f32.mxu0 0.0
      %731 = vmatmul.mubr.f32.gmra.mrb[0].mxu0 %v626
      %v732 = vpop.f32.mrb[0].mxu0
      %v733 = vadd.f32 0.0, %v732
      %v734 = vpop.f32.mrb[0].mxu0
      %735 = vmatprep.mubr.f32.mxu0 0.0
      %736 = vmatmul.mubr.f32.gmra.mrb[0].mxu0 %v627
      %v737 = vpop.f32.mrb[0].mxu0
      %v738 = vadd.f32 0.0, %v737
      %v739 = vpop.f32.mrb[0].mxu0
      %740 = vmatprep.mubr.f32.mxu0 0.0
      %741 = vmatmul.mubr.f32.gmra.mrb[0].mxu0 %v628
      %v742 = vpop.f32.mrb[0].mxu0
      %v743 = vadd.f32 0.0, %v742
      %v744 = vpop.f32.mrb[0].mxu0
      %745 = vmatprep.mubr.f32.mxu0 0.0
      %746 = vmatmul.mubr.f32.gmra.mrb[0].mxu0 %v629
      %v747 = vpop.f32.mrb[0].mxu0
      %v748 = vadd.f32 0.0, %v747
      %v749 = vpop.f32.mrb[0].mxu0
      %750 = vdwg.mxu0
      %v751 = vadd.f32 %v613, %v713
      %v752 = vadd.f32 %v614, %v718
      %v753 = vadd.f32 %v615, %v723
      %v754 = vadd.f32 %v616, %v728
      %v755 = vadd.f32 %v617, %v733
      %v756 = vadd.f32 %v618, %v738
      %v757 = vadd.f32 %v619, %v743
      %v758 = vadd.f32 %v620, %v748
      %s759 = scalar_lea.vmem %s209, 432
      %v760 = vld [vmem:[%s759] sm:$0xff]
      %v761 = vld [vmem:[%s759 + $0x10] sm:$0xff]
      %v762 = vld [vmem:[%s759 + $0x20] sm:$0xff]
      %v763 = vld [vmem:[%s759 + $0x30] sm:$0xff]
      %v764 = vld [vmem:[%s759 + $0x40] sm:$0xff]
      %v765 = vld [vmem:[%s759 + $0x50] sm:$0xff]
      %v766 = vld [vmem:[%s759 + $0x60] sm:$0xff]
      %v767 = vld [vmem:[%s759 + $0x70] sm:$0xff]
      %v768 = vld [vmem:[%s1 + $0x200] sm:$0xff]
      %v769 = vld [vmem:[%s1 + $0x208] sm:$0xff]
      %v770 = vld [vmem:[%s1 + $0x210] sm:$0xff]
      %v771 = vld [vmem:[%s1 + $0x218] sm:$0xff]
      %v772 = vld [vmem:[%s1 + $0x220] sm:$0xff]
      %v773 = vld [vmem:[%s1 + $0x228] sm:$0xff]
      %v774 = vld [vmem:[%s1 + $0x230] sm:$0xff]
      %v775 = vld [vmem:[%s1 + $0x238] sm:$0xff]
      %v776 = vld [vmem:[%s1 + $0x240] sm:$0xff]
      %v777 = vld [vmem:[%s1 + $0x248] sm:$0xff]
      %v778 = vld [vmem:[%s1 + $0x250] sm:$0xff]
      %v779 = vld [vmem:[%s1 + $0x258] sm:$0xff]
      %v780 = vld [vmem:[%s1 + $0x260] sm:$0xff]
      %v781 = vld [vmem:[%s1 + $0x268] sm:$0xff]
      %v782 = vld [vmem:[%s1 + $0x270] sm:$0xff]
      %v783 = vld [vmem:[%s1 + $0x278] sm:$0xff]
      %784 = vmatprep.subr.mxu0 0.0
      %785 = vmatpush1.msra.mxu0 %v768
      %786 = vmatprep.subr.mxu0 0.0
      %787 = vmatpush1.msra.mxu0 %v769
      %788 = vmatprep.subr.mxu0 0.0
      %789 = vmatpush1.msra.mxu0 %v770
      %790 = vmatprep.subr.mxu0 0.0
      %791 = vmatpush1.msra.mxu0 %v771
      %792 = vmatprep.subr.mxu0 0.0
      %793 = vmatpush1.msra.mxu0 %v772
      %794 = vmatprep.subr.mxu0 0.0
      %795 = vmatpush1.msra.mxu0 %v773
      %796 = vmatprep.subr.mxu0 0.0
      %797 = vmatpush1.msra.mxu0 %v774
      %798 = vmatprep.subr.mxu0 0.0
      %799 = vmatpush1.msra.mxu0 %v775
      %800 = vmatprep.subr.mxu0 0.0
      %801 = vmatpush1.msra.mxu0 %v776
      %802 = vmatprep.subr.mxu0 0.0
      %803 = vmatpush1.msra.mxu0 %v777
      %804 = vmatprep.subr.mxu0 0.0
      %805 = vmatpush1.msra.mxu0 %v778
      %806 = vmatprep.subr.mxu0 0.0
      %807 = vmatpush1.msra.mxu0 %v779
      %808 = vmatprep.subr.mxu0 0.0
      %809 = vmatpush1.msra.mxu0 %v780
      %810 = vmatprep.subr.mxu0 0.0
      %811 = vmatpush1.msra.mxu0 %v781
      %812 = vmatprep.subr.mxu0 0.0
      %813 = vmatpush1.msra.mxu0 %v782
      %814 = vmatprep.subr.mxu0 0.0
      %815 = vmatpush1.msra.mxu0 %v783
      %816 = vmatprep.subr.mxu0 0.0
      %817 = vmatpush1.msra.mxu0 0.0
      %818 = vmatprep.subr.mxu0 0.0
      %819 = vmatpush1.msra.mxu0 0.0
      %820 = vmatprep.subr.mxu0 0.0
      %821 = vmatpush1.msra.mxu0 0.0
      %822 = vmatprep.subr.mxu0 0.0
      %823 = vmatpush1.msra.mxu0 0.0
      %824 = vmatprep.subr.mxu0 0.0
      %825 = vmatpush1.msra.mxu0 0.0
      %826 = vmatprep.subr.mxu0 0.0
      %827 = vmatpush1.msra.mxu0 0.0
      %828 = vmatprep.subr.mxu0 0.0
      %829 = vmatpush1.msra.mxu0 0.0
      %830 = vmatprep.subr.mxu0 0.0
      %831 = vmatpush1.msra.mxu0 0.0
      %832 = vmatprep.subr.mxu0 0.0
      %833 = vmatpush1.msra.mxu0 0.0
      %834 = vmatprep.subr.mxu0 0.0
      %835 = vmatpush1.msra.mxu0 0.0
      %836 = vmatprep.subr.mxu0 0.0
      %837 = vmatpush1.msra.mxu0 0.0
      %838 = vmatprep.subr.mxu0 0.0
      %839 = vmatpush1.msra.mxu0 0.0
      %840 = vmatprep.subr.mxu0 0.0
      %841 = vmatpush1.msra.mxu0 0.0
      %842 = vmatprep.subr.mxu0 0.0
      %843 = vmatpush1.msra.mxu0 0.0
      %844 = vmatprep.subr.mxu0 0.0
      %845 = vmatpush1.msra.mxu0 0.0
      %846 = vmatprep.subr.mxu0 0.0
      %847 = vmatpush1.msra.mxu0 0.0
      %848 = vmatprep.mubr.f32.mxu0 0.0
      %849 = vmatmul.mubr.f32.gmra.mrb[0].mxu0 %v760
      %v850 = vpop.f32.mrb[0].mxu0
      %v851 = vadd.f32 0.0, %v850
      %v852 = vpop.f32.mrb[0].mxu0
      %853 = vmatprep.mubr.f32.mxu0 0.0
      %854 = vmatmul.mubr.f32.gmra.mrb[0].mxu0 %v761
      %v855 = vpop.f32.mrb[0].mxu0
      %v856 = vadd.f32 0.0, %v855
      %v857 = vpop.f32.mrb[0].mxu0
      %858 = vmatprep.mubr.f32.mxu0 0.0
      %859 = vmatmul.mubr.f32.gmra.mrb[0].mxu0 %v762
      %v860 = vpop.f32.mrb[0].mxu0
      %v861 = vadd.f32 0.0, %v860
      %v862 = vpop.f32.mrb[0].mxu0
      %863 = vmatprep.mubr.f32.mxu0 0.0
      %864 = vmatmul.mubr.f32.gmra.mrb[0].mxu0 %v763
      %v865 = vpop.f32.mrb[0].mxu0
      %v866 = vadd.f32 0.0, %v865
      %v867 = vpop.f32.mrb[0].mxu0
      %868 = vmatprep.mubr.f32.mxu0 0.0
      %869 = vmatmul.mubr.f32.gmra.mrb[0].mxu0 %v764
      %v870 = vpop.f32.mrb[0].mxu0
      %v871 = vadd.f32 0.0, %v870
      %v872 = vpop.f32.mrb[0].mxu0
      %873 = vmatprep.mubr.f32.mxu0 0.0
      %874 = vmatmul.mubr.f32.gmra.mrb[0].mxu0 %v765
      %v875 = vpop.f32.mrb[0].mxu0
      %v876 = vadd.f32 0.0, %v875
      %v877 = vpop.f32.mrb[0].mxu0
      %878 = vmatprep.mubr.f32.mxu0 0.0
      %879 = vmatmul.mubr.f32.gmra.mrb[0].mxu0 %v766
      %v880 = vpop.f32.mrb[0].mxu0
      %v881 = vadd.f32 0.0, %v880
      %v882 = vpop.f32.mrb[0].mxu0
      %883 = vmatprep.mubr.f32.mxu0 0.0
      %884 = vmatmul.mubr.f32.gmra.mrb[0].mxu0 %v767
      %v885 = vpop.f32.mrb[0].mxu0
      %v886 = vadd.f32 0.0, %v885
      %v887 = vpop.f32.mrb[0].mxu0
      %888 = vdwg.mxu0
      %v889 = vadd.f32 %v751, %v851
      %v890 = vadd.f32 %v752, %v856
      %v891 = vadd.f32 %v753, %v861
      %v892 = vadd.f32 %v754, %v866
      %v893 = vadd.f32 %v755, %v871
      %v894 = vadd.f32 %v756, %v876
      %v895 = vadd.f32 %v757, %v881
      %v896 = vadd.f32 %v758, %v886
      %v897 = vld [vmem:[%s621 + $0x1] sm:$0xff]
      %v898 = vld [vmem:[%s621 + $0x11] sm:$0xff]
      %v899 = vld [vmem:[%s621 + $0x21] sm:$0xff]
      %v900 = vld [vmem:[%s621 + $0x31] sm:$0xff]
      %v901 = vld [vmem:[%s621 + $0x41] sm:$0xff]
      %v902 = vld [vmem:[%s621 + $0x51] sm:$0xff]
      %v903 = vld [vmem:[%s621 + $0x61] sm:$0xff]
      %v904 = vld [vmem:[%s621 + $0x71] sm:$0xff]
      %v905 = vld [vmem:[%s1 + $0x280] sm:$0xff]
      %v906 = vld [vmem:[%s1 + $0x288] sm:$0xff]
      %v907 = vld [vmem:[%s1 + $0x290] sm:$0xff]
      %v908 = vld [vmem:[%s1 + $0x298] sm:$0xff]
      %v909 = vld [vmem:[%s1 + $0x2a0] sm:$0xff]
      %v910 = vld [vmem:[%s1 + $0x2a8] sm:$0xff]
      %v911 = vld [vmem:[%s1 + $0x2b0] sm:$0xff]
      %v912 = vld [vmem:[%s1 + $0x2b8] sm:$0xff]
      %v913 = vld [vmem:[%s1 + $0x2c0] sm:$0xff]
      %v914 = vld [vmem:[%s1 + $0x2c8] sm:$0xff]
      %v915 = vld [vmem:[%s1 + $0x2d0] sm:$0xff]
      %v916 = vld [vmem:[%s1 + $0x2d8] sm:$0xff]
      %v917 = vld [vmem:[%s1 + $0x2e0] sm:$0xff]
      %v918 = vld [vmem:[%s1 + $0x2e8] sm:$0xff]
      %v919 = vld [vmem:[%s1 + $0x2f0] sm:$0xff]
      %v920 = vld [vmem:[%s1 + $0x2f8] sm:$0xff]
      %921 = vmatprep.subr.mxu0 0.0
      %922 = vmatpush1.msra.mxu0 %v905
      %923 = vmatprep.subr.mxu0 0.0
      %924 = vmatpush1.msra.mxu0 %v906
      %925 = vmatprep.subr.mxu0 0.0
      %926 = vmatpush1.msra.mxu0 %v907
      %927 = vmatprep.subr.mxu0 0.0
      %928 = vmatpush1.msra.mxu0 %v908
      %929 = vmatprep.subr.mxu0 0.0
      %930 = vmatpush1.msra.mxu0 %v909
      %931 = vmatprep.subr.mxu0 0.0
      %932 = vmatpush1.msra.mxu0 %v910
      %933 = vmatprep.subr.mxu0 0.0
      %934 = vmatpush1.msra.mxu0 %v911
      %935 = vmatprep.subr.mxu0 0.0
      %936 = vmatpush1.msra.mxu0 %v912
      %937 = vmatprep.subr.mxu0 0.0
      %938 = vmatpush1.msra.mxu0 %v913
      %939 = vmatprep.subr.mxu0 0.0
      %940 = vmatpush1.msra.mxu0 %v914
      %941 = vmatprep.subr.mxu0 0.0
      %942 = vmatpush1.msra.mxu0 %v915
      %943 = vmatprep.subr.mxu0 0.0
      %944 = vmatpush1.msra.mxu0 %v916
      %945 = vmatprep.subr.mxu0 0.0
      %946 = vmatpush1.msra.mxu0 %v917
      %947 = vmatprep.subr.mxu0 0.0
      %948 = vmatpush1.msra.mxu0 %v918
      %949 = vmatprep.subr.mxu0 0.0
      %950 = vmatpush1.msra.mxu0 %v919
      %951 = vmatprep.subr.mxu0 0.0
      %952 = vmatpush1.msra.mxu0 %v920
      %953 = vmatprep.subr.mxu0 0.0
      %954 = vmatpush1.msra.mxu0 0.0
      %955 = vmatprep.subr.mxu0 0.0
      %956 = vmatpush1.msra.mxu0 0.0
      %957 = vmatprep.subr.mxu0 0.0
      %958 = vmatpush1.msra.mxu0 0.0
      %959 = vmatprep.subr.mxu0 0.0
      %960 = vmatpush1.msra.mxu0 0.0
      %961 = vmatprep.subr.mxu0 0.0
      %962 = vmatpush1.msra.mxu0 0.0
      %963 = vmatprep.subr.mxu0 0.0
      %964 = vmatpush1.msra.mxu0 0.0
      %965 = vmatprep.subr.mxu0 0.0
      %966 = vmatpush1.msra.mxu0 0.0
      %967 = vmatprep.subr.mxu0 0.0
      %968 = vmatpush1.msra.mxu0 0.0
      %969 = vmatprep.subr.mxu0 0.0
      %970 = vmatpush1.msra.mxu0 0.0
      %971 = vmatprep.subr.mxu0 0.0
      %972 = vmatpush1.msra.mxu0 0.0
      %973 = vmatprep.subr.mxu0 0.0
      %974 = vmatpush1.msra.mxu0 0.0
      %975 = vmatprep.subr.mxu0 0.0
      %976 = vmatpush1.msra.mxu0 0.0
      %977 = vmatprep.subr.mxu0 0.0
      %978 = vmatpush1.msra.mxu0 0.0
      %979 = vmatprep.subr.mxu0 0.0
      %980 = vmatpush1.msra.mxu0 0.0
      %981 = vmatprep.subr.mxu0 0.0
      %982 = vmatpush1.msra.mxu0 0.0
      %983 = vmatprep.subr.mxu0 0.0
      %984 = vmatpush1.msra.mxu0 0.0
      %985 = vmatprep.mubr.f32.mxu0 0.0
      %986 = vmatmul.mubr.f32.gmra.mrb[0].mxu0 %v897
      %v987 = vpop.f32.mrb[0].mxu0
      %v988 = vadd.f32 0.0, %v987
      %v989 = vpop.f32.mrb[0].mxu0
      %990 = vmatprep.mubr.f32.mxu0 0.0
      %991 = vmatmul.mubr.f32.gmra.mrb[0].mxu0 %v898
      %v992 = vpop.f32.mrb[0].mxu0
      %v993 = vadd.f32 0.0, %v992
      %v994 = vpop.f32.mrb[0].mxu0
      %995 = vmatprep.mubr.f32.mxu0 0.0
      %996 = vmatmul.mubr.f32.gmra.mrb[0].mxu0 %v899
      %v997 = vpop.f32.mrb[0].mxu0
      %v998 = vadd.f32 0.0, %v997
      %v999 = vpop.f32.mrb[0].mxu0
      %1000 = vmatprep.mubr.f32.mxu0 0.0
      %1001 = vmatmul.mubr.f32.gmra.mrb[0].mxu0 %v900
      %v1002 = vpop.f32.mrb[0].mxu0
      %v1003 = vadd.f32 0.0, %v1002
      %v1004 = vpop.f32.mrb[0].mxu0
      %1005 = vmatprep.mubr.f32.mxu0 0.0
      %1006 = vmatmul.mubr.f32.gmra.mrb[0].mxu0 %v901
      %v1007 = vpop.f32.mrb[0].mxu0
      %v1008 = vadd.f32 0.0, %v1007
      %v1009 = vpop.f32.mrb[0].mxu0
      %1010 = vmatprep.mubr.f32.mxu0 0.0
      %1011 = vmatmul.mubr.f32.gmra.mrb[0].mxu0 %v902
      %v1012 = vpop.f32.mrb[0].mxu0
      %v1013 = vadd.f32 0.0, %v1012
      %v1014 = vpop.f32.mrb[0].mxu0
      %1015 = vmatprep.mubr.f32.mxu0 0.0
      %1016 = vmatmul.mubr.f32.gmra.mrb[0].mxu0 %v903
      %v1017 = vpop.f32.mrb[0].mxu0
      %v1018 = vadd.f32 0.0, %v1017
      %v1019 = vpop.f32.mrb[0].mxu0
      %1020 = vmatprep.mubr.f32.mxu0 0.0
      %1021 = vmatmul.mubr.f32.gmra.mrb[0].mxu0 %v904
      %v1022 = vpop.f32.mrb[0].mxu0
      %v1023 = vadd.f32 0.0, %v1022
      %v1024 = vpop.f32.mrb[0].mxu0
      %1025 = vdwg.mxu0
      %v1026 = vadd.f32 %v889, %v988
      %v1027 = vadd.f32 %v890, %v993
      %v1028 = vadd.f32 %v891, %v998
      %v1029 = vadd.f32 %v892, %v1003
      %v1030 = vadd.f32 %v893, %v1008
      %v1031 = vadd.f32 %v894, %v1013
      %v1032 = vadd.f32 %v895, %v1018
      %v1033 = vadd.f32 %v896, %v1023
      %s1034 = scalar_lea.vmem %s209, 16
      %v1035 = vld [vmem:[%s1034] sm:$0xff]
      %v1036 = vld [vmem:[%s1034 + $0x10] sm:$0xff]
      %v1037 = vld [vmem:[%s1034 + $0x20] sm:$0xff]
      %v1038 = vld [vmem:[%s1034 + $0x30] sm:$0xff]
      %v1039 = vld [vmem:[%s1034 + $0x40] sm:$0xff]
      %v1040 = vld [vmem:[%s1034 + $0x50] sm:$0xff]
      %v1041 = vld [vmem:[%s1034 + $0x60] sm:$0xff]
      %v1042 = vld [vmem:[%s1034 + $0x70] sm:$0xff]
      %v1043 = vld [vmem:[%s1 + $0x300] sm:$0xff]
      %v1044 = vld [vmem:[%s1 + $0x308] sm:$0xff]
      %v1045 = vld [vmem:[%s1 + $0x310] sm:$0xff]
      %v1046 = vld [vmem:[%s1 + $0x318] sm:$0xff]
      %v1047 = vld [vmem:[%s1 + $0x320] sm:$0xff]
      %v1048 = vld [vmem:[%s1 + $0x328] sm:$0xff]
      %v1049 = vld [vmem:[%s1 + $0x330] sm:$0xff]
      %v1050 = vld [vmem:[%s1 + $0x338] sm:$0xff]
      %v1051 = vld [vmem:[%s1 + $0x340] sm:$0xff]
      %v1052 = vld [vmem:[%s1 + $0x348] sm:$0xff]
      %v1053 = vld [vmem:[%s1 + $0x350] sm:$0xff]
      %v1054 = vld [vmem:[%s1 + $0x358] sm:$0xff]
      %v1055 = vld [vmem:[%s1 + $0x360] sm:$0xff]
      %v1056 = vld [vmem:[%s1 + $0x368] sm:$0xff]
      %v1057 = vld [vmem:[%s1 + $0x370] sm:$0xff]
      %v1058 = vld [vmem:[%s1 + $0x378] sm:$0xff]
      %1059 = vmatprep.subr.mxu0 0.0
      %1060 = vmatpush1.msra.mxu0 %v1043
      %1061 = vmatprep.subr.mxu0 0.0
      %1062 = vmatpush1.msra.mxu0 %v1044
      %1063 = vmatprep.subr.mxu0 0.0
      %1064 = vmatpush1.msra.mxu0 %v1045
      %1065 = vmatprep.subr.mxu0 0.0
      %1066 = vmatpush1.msra.mxu0 %v1046
      %1067 = vmatprep.subr.mxu0 0.0
      %1068 = vmatpush1.msra.mxu0 %v1047
      %1069 = vmatprep.subr.mxu0 0.0
      %1070 = vmatpush1.msra.mxu0 %v1048
      %1071 = vmatprep.subr.mxu0 0.0
      %1072 = vmatpush1.msra.mxu0 %v1049
      %1073 = vmatprep.subr.mxu0 0.0
      %1074 = vmatpush1.msra.mxu0 %v1050
      %1075 = vmatprep.subr.mxu0 0.0
      %1076 = vmatpush1.msra.mxu0 %v1051
      %1077 = vmatprep.subr.mxu0 0.0
      %1078 = vmatpush1.msra.mxu0 %v1052
      %1079 = vmatprep.subr.mxu0 0.0
      %1080 = vmatpush1.msra.mxu0 %v1053
      %1081 = vmatprep.subr.mxu0 0.0
      %1082 = vmatpush1.msra.mxu0 %v1054
      %1083 = vmatprep.subr.mxu0 0.0
      %1084 = vmatpush1.msra.mxu0 %v1055
      %1085 = vmatprep.subr.mxu0 0.0
      %1086 = vmatpush1.msra.mxu0 %v1056
      %1087 = vmatprep.subr.mxu0 0.0
      %1088 = vmatpush1.msra.mxu0 %v1057
      %1089 = vmatprep.subr.mxu0 0.0
      %1090 = vmatpush1.msra.mxu0 %v1058
      %1091 = vmatprep.subr.mxu0 0.0
      %1092 = vmatpush1.msra.mxu0 0.0
      %1093 = vmatprep.subr.mxu0 0.0
      %1094 = vmatpush1.msra.mxu0 0.0
      %1095 = vmatprep.subr.mxu0 0.0
      %1096 = vmatpush1.msra.mxu0 0.0
      %1097 = vmatprep.subr.mxu0 0.0
      %1098 = vmatpush1.msra.mxu0 0.0
      %1099 = vmatprep.subr.mxu0 0.0
      %1100 = vmatpush1.msra.mxu0 0.0
      %1101 = vmatprep.subr.mxu0 0.0
      %1102 = vmatpush1.msra.mxu0 0.0
      %1103 = vmatprep.subr.mxu0 0.0
      %1104 = vmatpush1.msra.mxu0 0.0
      %1105 = vmatprep.subr.mxu0 0.0
      %1106 = vmatpush1.msra.mxu0 0.0
      %1107 = vmatprep.subr.mxu0 0.0
      %1108 = vmatpush1.msra.mxu0 0.0
      %1109 = vmatprep.subr.mxu0 0.0
      %1110 = vmatpush1.msra.mxu0 0.0
      %1111 = vmatprep.subr.mxu0 0.0
      %1112 = vmatpush1.msra.mxu0 0.0
      %1113 = vmatprep.subr.mxu0 0.0
      %1114 = vmatpush1.msra.mxu0 0.0
      %1115 = vmatprep.subr.mxu0 0.0
      %1116 = vmatpush1.msra.mxu0 0.0
      %1117 = vmatprep.subr.mxu0 0.0
      %1118 = vmatpush1.msra.mxu0 0.0
      %1119 = vmatprep.subr.mxu0 0.0
      %1120 = vmatpush1.msra.mxu0 0.0
      %1121 = vmatprep.subr.mxu0 0.0
      %1122 = vmatpush1.msra.mxu0 0.0
      %1123 = vmatprep.mubr.f32.mxu0 0.0
      %1124 = vmatmul.mubr.f32.gmra.mrb[0].mxu0 %v1035
      %v1125 = vpop.f32.mrb[0].mxu0
      %v1126 = vadd.f32 0.0, %v1125
      %v1127 = vpop.f32.mrb[0].mxu0
      %1128 = vmatprep.mubr.f32.mxu0 0.0
      %1129 = vmatmul.mubr.f32.gmra.mrb[0].mxu0 %v1036
      %v1130 = vpop.f32.mrb[0].mxu0
      %v1131 = vadd.f32 0.0, %v1130
      %v1132 = vpop.f32.mrb[0].mxu0
      %1133 = vmatprep.mubr.f32.mxu0 0.0
      %1134 = vmatmul.mubr.f32.gmra.mrb[0].mxu0 %v1037
      %v1135 = vpop.f32.mrb[0].mxu0
      %v1136 = vadd.f32 0.0, %v1135
      %v1137 = vpop.f32.mrb[0].mxu0
      %1138 = vmatprep.mubr.f32.mxu0 0.0
      %1139 = vmatmul.mubr.f32.gmra.mrb[0].mxu0 %v1038
      %v1140 = vpop.f32.mrb[0].mxu0
      %v1141 = vadd.f32 0.0, %v1140
      %v1142 = vpop.f32.mrb[0].mxu0
      %1143 = vmatprep.mubr.f32.mxu0 0.0
      %1144 = vmatmul.mubr.f32.gmra.mrb[0].mxu0 %v1039
      %v1145 = vpop.f32.mrb[0].mxu0
      %v1146 = vadd.f32 0.0, %v1145
      %v1147 = vpop.f32.mrb[0].mxu0
      %1148 = vmatprep.mubr.f32.mxu0 0.0
      %1149 = vmatmul.mubr.f32.gmra.mrb[0].mxu0 %v1040
      %v1150 = vpop.f32.mrb[0].mxu0
      %v1151 = vadd.f32 0.0, %v1150
      %v1152 = vpop.f32.mrb[0].mxu0
      %1153 = vmatprep.mubr.f32.mxu0 0.0
      %1154 = vmatmul.mubr.f32.gmra.mrb[0].mxu0 %v1041
      %v1155 = vpop.f32.mrb[0].mxu0
      %v1156 = vadd.f32 0.0, %v1155
      %v1157 = vpop.f32.mrb[0].mxu0
      %1158 = vmatprep.mubr.f32.mxu0 0.0
      %1159 = vmatmul.mubr.f32.gmra.mrb[0].mxu0 %v1042
      %v1160 = vpop.f32.mrb[0].mxu0
      %v1161 = vadd.f32 0.0, %v1160
      %v1162 = vpop.f32.mrb[0].mxu0
      %1163 = vdwg.mxu0
      %v1164 = vadd.f32 %v1026, %v1126
      %v1165 = vadd.f32 %v1027, %v1131
      %v1166 = vadd.f32 %v1028, %v1136
      %v1167 = vadd.f32 %v1029, %v1141
      %v1168 = vadd.f32 %v1030, %v1146
      %v1169 = vadd.f32 %v1031, %v1151
      %v1170 = vadd.f32 %v1032, %v1156
      %v1171 = vadd.f32 %v1033, %v1161
      %s1172 = scalar_lea.vmem %s209, 160
      %v1173 = vld [vmem:[%s1172] sm:$0xff]
      %v1174 = vld [vmem:[%s1172 + $0x10] sm:$0xff]
      %v1175 = vld [vmem:[%s1172 + $0x20] sm:$0xff]
      %v1176 = vld [vmem:[%s1172 + $0x30] sm:$0xff]
      %v1177 = vld [vmem:[%s1172 + $0x40] sm:$0xff]
      %v1178 = vld [vmem:[%s1172 + $0x50] sm:$0xff]
      %v1179 = vld [vmem:[%s1172 + $0x60] sm:$0xff]
      %v1180 = vld [vmem:[%s1172 + $0x70] sm:$0xff]
      %v1181 = vld [vmem:[%s1 + $0x380] sm:$0xff]
      %v1182 = vld [vmem:[%s1 + $0x388] sm:$0xff]
      %v1183 = vld [vmem:[%s1 + $0x390] sm:$0xff]
      %v1184 = vld [vmem:[%s1 + $0x398] sm:$0xff]
      %v1185 = vld [vmem:[%s1 + $0x3a0] sm:$0xff]
      %v1186 = vld [vmem:[%s1 + $0x3a8] sm:$0xff]
      %v1187 = vld [vmem:[%s1 + $0x3b0] sm:$0xff]
      %v1188 = vld [vmem:[%s1 + $0x3b8] sm:$0xff]
      %v1189 = vld [vmem:[%s1 + $0x3c0] sm:$0xff]
      %v1190 = vld [vmem:[%s1 + $0x3c8] sm:$0xff]
      %v1191 = vld [vmem:[%s1 + $0x3d0] sm:$0xff]
      %v1192 = vld [vmem:[%s1 + $0x3d8] sm:$0xff]
      %v1193 = vld [vmem:[%s1 + $0x3e0] sm:$0xff]
      %v1194 = vld [vmem:[%s1 + $0x3e8] sm:$0xff]
      %v1195 = vld [vmem:[%s1 + $0x3f0] sm:$0xff]
      %v1196 = vld [vmem:[%s1 + $0x3f8] sm:$0xff]
      %1197 = vmatprep.subr.mxu0 0.0
      %1198 = vmatpush1.msra.mxu0 %v1181
      %1199 = vmatprep.subr.mxu0 0.0
      %1200 = vmatpush1.msra.mxu0 %v1182
      %1201 = vmatprep.subr.mxu0 0.0
      %1202 = vmatpush1.msra.mxu0 %v1183
      %1203 = vmatprep.subr.mxu0 0.0
      %1204 = vmatpush1.msra.mxu0 %v1184
      %1205 = vmatprep.subr.mxu0 0.0
      %1206 = vmatpush1.msra.mxu0 %v1185
      %1207 = vmatprep.subr.mxu0 0.0
      %1208 = vmatpush1.msra.mxu0 %v1186
      %1209 = vmatprep.subr.mxu0 0.0
      %1210 = vmatpush1.msra.mxu0 %v1187
      %1211 = vmatprep.subr.mxu0 0.0
      %1212 = vmatpush1.msra.mxu0 %v1188
      %1213 = vmatprep.subr.mxu0 0.0
      %1214 = vmatpush1.msra.mxu0 %v1189
      %1215 = vmatprep.subr.mxu0 0.0
      %1216 = vmatpush1.msra.mxu0 %v1190
      %1217 = vmatprep.subr.mxu0 0.0
      %1218 = vmatpush1.msra.mxu0 %v1191
      %1219 = vmatprep.subr.mxu0 0.0
      %1220 = vmatpush1.msra.mxu0 %v1192
      %1221 = vmatprep.subr.mxu0 0.0
      %1222 = vmatpush1.msra.mxu0 %v1193
      %1223 = vmatprep.subr.mxu0 0.0
      %1224 = vmatpush1.msra.mxu0 %v1194
      %1225 = vmatprep.subr.mxu0 0.0
      %1226 = vmatpush1.msra.mxu0 %v1195
      %1227 = vmatprep.subr.mxu0 0.0
      %1228 = vmatpush1.msra.mxu0 %v1196
      %1229 = vmatprep.subr.mxu0 0.0
      %1230 = vmatpush1.msra.mxu0 0.0
      %1231 = vmatprep.subr.mxu0 0.0
      %1232 = vmatpush1.msra.mxu0 0.0
      %1233 = vmatprep.subr.mxu0 0.0
      %1234 = vmatpush1.msra.mxu0 0.0
      %1235 = vmatprep.subr.mxu0 0.0
      %1236 = vmatpush1.msra.mxu0 0.0
      %1237 = vmatprep.subr.mxu0 0.0
      %1238 = vmatpush1.msra.mxu0 0.0
      %1239 = vmatprep.subr.mxu0 0.0
      %1240 = vmatpush1.msra.mxu0 0.0
      %1241 = vmatprep.subr.mxu0 0.0
      %1242 = vmatpush1.msra.mxu0 0.0
      %1243 = vmatprep.subr.mxu0 0.0
      %1244 = vmatpush1.msra.mxu0 0.0
      %1245 = vmatprep.subr.mxu0 0.0
      %1246 = vmatpush1.msra.mxu0 0.0
      %1247 = vmatprep.subr.mxu0 0.0
      %1248 = vmatpush1.msra.mxu0 0.0
      %1249 = vmatprep.subr.mxu0 0.0
      %1250 = vmatpush1.msra.mxu0 0.0
      %1251 = vmatprep.subr.mxu0 0.0
      %1252 = vmatpush1.msra.mxu0 0.0
      %1253 = vmatprep.subr.mxu0 0.0
      %1254 = vmatpush1.msra.mxu0 0.0
      %1255 = vmatprep.subr.mxu0 0.0
      %1256 = vmatpush1.msra.mxu0 0.0
      %1257 = vmatprep.subr.mxu0 0.0
      %1258 = vmatpush1.msra.mxu0 0.0
      %1259 = vmatprep.subr.mxu0 0.0
      %1260 = vmatpush1.msra.mxu0 0.0
      %1261 = vmatprep.mubr.f32.mxu0 0.0
      %1262 = vmatmul.mubr.f32.gmra.mrb[0].mxu0 %v1173
      %v1263 = vpop.f32.mrb[0].mxu0
      %v1264 = vadd.f32 0.0, %v1263
      %v1265 = vpop.f32.mrb[0].mxu0
      %1266 = vmatprep.mubr.f32.mxu0 0.0
      %1267 = vmatmul.mubr.f32.gmra.mrb[0].mxu0 %v1174
      %v1268 = vpop.f32.mrb[0].mxu0
      %v1269 = vadd.f32 0.0, %v1268
      %v1270 = vpop.f32.mrb[0].mxu0
      %1271 = vmatprep.mubr.f32.mxu0 0.0
      %1272 = vmatmul.mubr.f32.gmra.mrb[0].mxu0 %v1175
      %v1273 = vpop.f32.mrb[0].mxu0
      %v1274 = vadd.f32 0.0, %v1273
      %v1275 = vpop.f32.mrb[0].mxu0
      %1276 = vmatprep.mubr.f32.mxu0 0.0
      %1277 = vmatmul.mubr.f32.gmra.mrb[0].mxu0 %v1176
      %v1278 = vpop.f32.mrb[0].mxu0
      %v1279 = vadd.f32 0.0, %v1278
      %v1280 = vpop.f32.mrb[0].mxu0
      %1281 = vmatprep.mubr.f32.mxu0 0.0
      %1282 = vmatmul.mubr.f32.gmra.mrb[0].mxu0 %v1177
      %v1283 = vpop.f32.mrb[0].mxu0
      %v1284 = vadd.f32 0.0, %v1283
      %v1285 = vpop.f32.mrb[0].mxu0
      %1286 = vmatprep.mubr.f32.mxu0 0.0
      %1287 = vmatmul.mubr.f32.gmra.mrb[0].mxu0 %v1178
      %v1288 = vpop.f32.mrb[0].mxu0
      %v1289 = vadd.f32 0.0, %v1288
      %v1290 = vpop.f32.mrb[0].mxu0
      %1291 = vmatprep.mubr.f32.mxu0 0.0
      %1292 = vmatmul.mubr.f32.gmra.mrb[0].mxu0 %v1179
      %v1293 = vpop.f32.mrb[0].mxu0
      %v1294 = vadd.f32 0.0, %v1293
      %v1295 = vpop.f32.mrb[0].mxu0
      %1296 = vmatprep.mubr.f32.mxu0 0.0
      %1297 = vmatmul.mubr.f32.gmra.mrb[0].mxu0 %v1180
      %v1298 = vpop.f32.mrb[0].mxu0
      %v1299 = vadd.f32 0.0, %v1298
      %v1300 = vpop.f32.mrb[0].mxu0
      %1301 = vdwg.mxu0
      %v1302 = vadd.f32 %v1164, %v1264
      %v1303 = vadd.f32 %v1165, %v1269
      %v1304 = vadd.f32 %v1166, %v1274
      %v1305 = vadd.f32 %v1167, %v1279
      %v1306 = vadd.f32 %v1168, %v1284
      %v1307 = vadd.f32 %v1169, %v1289
      %v1308 = vadd.f32 %v1170, %v1294
      %v1309 = vadd.f32 %v1171, %v1299
      %v1310 = vld [vmem:[%s1034 + $0x1] sm:$0xff]
      %v1311 = vld [vmem:[%s1034 + $0x11] sm:$0xff]
      %v1312 = vld [vmem:[%s1034 + $0x21] sm:$0xff]
      %v1313 = vld [vmem:[%s1034 + $0x31] sm:$0xff]
      %v1314 = vld [vmem:[%s1034 + $0x41] sm:$0xff]
      %v1315 = vld [vmem:[%s1034 + $0x51] sm:$0xff]
      %v1316 = vld [vmem:[%s1034 + $0x61] sm:$0xff]
      %v1317 = vld [vmem:[%s1034 + $0x71] sm:$0xff]
      %v1318 = vld [vmem:[%s1 + $0x400] sm:$0xff]
      %v1319 = vld [vmem:[%s1 + $0x408] sm:$0xff]
      %v1320 = vld [vmem:[%s1 + $0x410] sm:$0xff]
      %v1321 = vld [vmem:[%s1 + $0x418] sm:$0xff]
      %v1322 = vld [vmem:[%s1 + $0x420] sm:$0xff]
      %v1323 = vld [vmem:[%s1 + $0x428] sm:$0xff]
      %v1324 = vld [vmem:[%s1 + $0x430] sm:$0xff]
      %v1325 = vld [vmem:[%s1 + $0x438] sm:$0xff]
      %v1326 = vld [vmem:[%s1 + $0x440] sm:$0xff]
      %v1327 = vld [vmem:[%s1 + $0x448] sm:$0xff]
      %v1328 = vld [vmem:[%s1 + $0x450] sm:$0xff]
      %v1329 = vld [vmem:[%s1 + $0x458] sm:$0xff]
      %v1330 = vld [vmem:[%s1 + $0x460] sm:$0xff]
      %v1331 = vld [vmem:[%s1 + $0x468] sm:$0xff]
      %v1332 = vld [vmem:[%s1 + $0x470] sm:$0xff]
      %v1333 = vld [vmem:[%s1 + $0x478] sm:$0xff]
      %1334 = vmatprep.subr.mxu0 0.0
      %1335 = vmatpush1.msra.mxu0 %v1318
      %1336 = vmatprep.subr.mxu0 0.0
      %1337 = vmatpush1.msra.mxu0 %v1319
      %1338 = vmatprep.subr.mxu0 0.0
      %1339 = vmatpush1.msra.mxu0 %v1320
      %1340 = vmatprep.subr.mxu0 0.0
      %1341 = vmatpush1.msra.mxu0 %v1321
      %1342 = vmatprep.subr.mxu0 0.0
      %1343 = vmatpush1.msra.mxu0 %v1322
      %1344 = vmatprep.subr.mxu0 0.0
      %1345 = vmatpush1.msra.mxu0 %v1323
      %1346 = vmatprep.subr.mxu0 0.0
      %1347 = vmatpush1.msra.mxu0 %v1324
      %1348 = vmatprep.subr.mxu0 0.0
      %1349 = vmatpush1.msra.mxu0 %v1325
      %1350 = vmatprep.subr.mxu0 0.0
      %1351 = vmatpush1.msra.mxu0 %v1326
      %1352 = vmatprep.subr.mxu0 0.0
      %1353 = vmatpush1.msra.mxu0 %v1327
      %1354 = vmatprep.subr.mxu0 0.0
      %1355 = vmatpush1.msra.mxu0 %v1328
      %1356 = vmatprep.subr.mxu0 0.0
      %1357 = vmatpush1.msra.mxu0 %v1329
      %1358 = vmatprep.subr.mxu0 0.0
      %1359 = vmatpush1.msra.mxu0 %v1330
      %1360 = vmatprep.subr.mxu0 0.0
      %1361 = vmatpush1.msra.mxu0 %v1331
      %1362 = vmatprep.subr.mxu0 0.0
      %1363 = vmatpush1.msra.mxu0 %v1332
      %1364 = vmatprep.subr.mxu0 0.0
      %1365 = vmatpush1.msra.mxu0 %v1333
      %1366 = vmatprep.subr.mxu0 0.0
      %1367 = vmatpush1.msra.mxu0 0.0
      %1368 = vmatprep.subr.mxu0 0.0
      %1369 = vmatpush1.msra.mxu0 0.0
      %1370 = vmatprep.subr.mxu0 0.0
      %1371 = vmatpush1.msra.mxu0 0.0
      %1372 = vmatprep.subr.mxu0 0.0
      %1373 = vmatpush1.msra.mxu0 0.0
      %1374 = vmatprep.subr.mxu0 0.0
      %1375 = vmatpush1.msra.mxu0 0.0
      %1376 = vmatprep.subr.mxu0 0.0
      %1377 = vmatpush1.msra.mxu0 0.0
      %1378 = vmatprep.subr.mxu0 0.0
      %1379 = vmatpush1.msra.mxu0 0.0
      %1380 = vmatprep.subr.mxu0 0.0
      %1381 = vmatpush1.msra.mxu0 0.0
      %1382 = vmatprep.subr.mxu0 0.0
      %1383 = vmatpush1.msra.mxu0 0.0
      %1384 = vmatprep.subr.mxu0 0.0
      %1385 = vmatpush1.msra.mxu0 0.0
      %1386 = vmatprep.subr.mxu0 0.0
      %1387 = vmatpush1.msra.mxu0 0.0
      %1388 = vmatprep.subr.mxu0 0.0
      %1389 = vmatpush1.msra.mxu0 0.0
      %1390 = vmatprep.subr.mxu0 0.0
      %1391 = vmatpush1.msra.mxu0 0.0
      %1392 = vmatprep.subr.mxu0 0.0
      %1393 = vmatpush1.msra.mxu0 0.0
      %1394 = vmatprep.subr.mxu0 0.0
      %1395 = vmatpush1.msra.mxu0 0.0
      %1396 = vmatprep.subr.mxu0 0.0
      %1397 = vmatpush1.msra.mxu0 0.0
      %1398 = vmatprep.mubr.f32.mxu0 0.0
      %1399 = vmatmul.mubr.f32.gmra.mrb[0].mxu0 %v1310
      %v1400 = vpop.f32.mrb[0].mxu0
      %v1401 = vadd.f32 0.0, %v1400
      %v1402 = vpop.f32.mrb[0].mxu0
      %1403 = vmatprep.mubr.f32.mxu0 0.0
      %1404 = vmatmul.mubr.f32.gmra.mrb[0].mxu0 %v1311
      %v1405 = vpop.f32.mrb[0].mxu0
      %v1406 = vadd.f32 0.0, %v1405
      %v1407 = vpop.f32.mrb[0].mxu0
      %1408 = vmatprep.mubr.f32.mxu0 0.0
      %1409 = vmatmul.mubr.f32.gmra.mrb[0].mxu0 %v1312
      %v1410 = vpop.f32.mrb[0].mxu0
      %v1411 = vadd.f32 0.0, %v1410
      %v1412 = vpop.f32.mrb[0].mxu0
      %1413 = vmatprep.mubr.f32.mxu0 0.0
      %1414 = vmatmul.mubr.f32.gmra.mrb[0].mxu0 %v1313
      %v1415 = vpop.f32.mrb[0].mxu0
      %v1416 = vadd.f32 0.0, %v1415
      %v1417 = vpop.f32.mrb[0].mxu0
      %1418 = vmatprep.mubr.f32.mxu0 0.0
      %1419 = vmatmul.mubr.f32.gmra.mrb[0].mxu0 %v1314
      %v1420 = vpop.f32.mrb[0].mxu0
      %v1421 = vadd.f32 0.0, %v1420
      %v1422 = vpop.f32.mrb[0].mxu0
      %1423 = vmatprep.mubr.f32.mxu0 0.0
      %1424 = vmatmul.mubr.f32.gmra.mrb[0].mxu0 %v1315
      %v1425 = vpop.f32.mrb[0].mxu0
      %v1426 = vadd.f32 0.0, %v1425
      %v1427 = vpop.f32.mrb[0].mxu0
      %1428 = vmatprep.mubr.f32.mxu0 0.0
      %1429 = vmatmul.mubr.f32.gmra.mrb[0].mxu0 %v1316
      %v1430 = vpop.f32.mrb[0].mxu0
      %v1431 = vadd.f32 0.0, %v1430
      %v1432 = vpop.f32.mrb[0].mxu0
      %1433 = vmatprep.mubr.f32.mxu0 0.0
      %1434 = vmatmul.mubr.f32.gmra.mrb[0].mxu0 %v1317
      %v1435 = vpop.f32.mrb[0].mxu0
      %v1436 = vadd.f32 0.0, %v1435
      %v1437 = vpop.f32.mrb[0].mxu0
      %1438 = vdwg.mxu0
      %v1439 = vadd.f32 %v1302, %v1401
      %v1440 = vadd.f32 %v1303, %v1406
      %v1441 = vadd.f32 %v1304, %v1411
      %v1442 = vadd.f32 %v1305, %v1416
      %v1443 = vadd.f32 %v1306, %v1421
      %v1444 = vadd.f32 %v1307, %v1426
      %v1445 = vadd.f32 %v1308, %v1431
      %v1446 = vadd.f32 %v1309, %v1436
      %1447 = vst [vmem:[%s215] sm:$0xff] %v1439
      %1448 = vst [vmem:[%s215 + $0x8] sm:$0xff] %v1440
      %1449 = vst [vmem:[%s215 + $0x10] sm:$0xff] %v1441
      %1450 = vst [vmem:[%s215 + $0x18] sm:$0xff] %v1442
      %1451 = vst [vmem:[%s215 + $0x20] sm:$0xff] %v1443
      %1452 = vst [vmem:[%s215 + $0x28] sm:$0xff] %v1444
      %1453 = vst [vmem:[%s215 + $0x30] sm:$0xff] %v1445
      %1454 = vst [vmem:[%s215 + $0x38] sm:$0xff] %v1446
      %v1455 = vadd.f32 %v1439, %v1440
      %v1456 = vadd.f32 %v1455, %v1441
      %v1457 = vadd.f32 %v1456, %v1442
      %v1458 = vadd.f32 %v1457, %v1443
      %v1459 = vadd.f32 %v1458, %v1444
      %v1460 = vadd.f32 %v1459, %v1445
      %v1461 = vadd.f32 %v1460, %v1446
      %1462 = vst [vmem:[%s220] sm:$0xff] %v1461
      %v1463 = vmul.f32 %v1439, %v1439
      %v1464 = vmul.f32 %v1440, %v1440
      %v1465 = vmul.f32 %v1441, %v1441
      %v1466 = vmul.f32 %v1442, %v1442
      %v1467 = vmul.f32 %v1443, %v1443
      %v1468 = vmul.f32 %v1444, %v1444
      %v1469 = vmul.f32 %v1445, %v1445
      %v1470 = vmul.f32 %v1446, %v1446
      %v1471 = vadd.f32 %v1463, %v1464
      %v1472 = vadd.f32 %v1471, %v1465
      %v1473 = vadd.f32 %v1472, %v1466
      %v1474 = vadd.f32 %v1473, %v1467
      %v1475 = vadd.f32 %v1474, %v1468
      %v1476 = vadd.f32 %v1475, %v1469
      %v1477 = vadd.f32 %v1476, %v1470
      %1478 = vst [vmem:[%s224] sm:$0xff] %v1477
      %s1479 = smul.u32 8, %s16
      %p1480 = scmp.lt.s32.totalorder %s1479, 15
      %s1481 = scalar_select %p1480, %s1479, 15
      %s1482 = smul.addr %s1481, 8
      %s1483 = scalar_lea.vmem %s2, %s1482
      %p1484 = scmp.lt.s32.totalorder %s16, 1
      %s1485 = scalar_select %p1484, %s16, 1
      %s1486 = smul.addr %s1485, 8
      %s1487 = scalar_lea.vmem %s3, %s1486
      %p1488 = scmp.lt.s32.totalorder %s16, 1
      %s1489 = scalar_select %p1488, %s16, 1
      %s1490 = smul.addr %s1489, 8
      %s1491 = scalar_lea.vmem %s4, %s1490
      // Predicated region
      $region29: #{basic_block_forward.5} parent=27 // pred_check
        %p1492 = pneg %p81
      $region30: #{basic_block_forward.5} parent=27 // pred_check_branch
        %1494 = sbr.rel (%p1492) target = $region32
      $region31: #{basic_block_forward.5} parent=27 // pred_region
        %s1495 = smul.u32 8, %s16
      $region32: #{basic_block_forward.5} parent=27 // pred_fallthru
        _
      // Predicated region
      $region33: #{basic_block_forward.5} parent=27 // pred_check
        %p1496 = pneg %p107
      $region34: #{basic_block_forward.5} parent=27 // pred_check_branch
        %1498 = sbr.rel (%p1496) target = $region36
      $region35: #{basic_block_forward.5} parent=27 // pred_region
        _
      $region36: #{basic_block_forward.5} parent=27 // pred_fallthru
        _
      // Predicated region
      $region37: #{basic_block_forward.5} parent=27 // pred_check
        %p1499 = pneg %p133
      $region38: #{basic_block_forward.5} parent=27 // pred_check_branch
        %1501 = sbr.rel (%p1499) target = $region40
      $region39: #{basic_block_forward.5} parent=27 // pred_region
        _
      $region40: #{basic_block_forward.5} parent=27 // pred_fallthru
        _
    $region28: #{basic_block_forward.5} parent=5 // pred_fallthru
      _
    %p1502 = scmp.le.s32.totalorder 2, %s11
    // Predicated region
    $region41: #{basic_block_forward.5} parent=5 // pred_check
      %p1503 = pneg %p1502
    $region42: #{basic_block_forward.5} parent=5 // pred_check_branch
      %1505 = sbr.rel (%p1503) target = $region44
    $region43: #{basic_block_forward.5} parent=5 // pred_region
      %s1506 = ssub.s32 %s11, 2
      // Predicated region
      $region45: #{basic_block_forward.5} parent=43 // pred_check
        %p1507 = pneg %p87
      $region46: #{basic_block_forward.5} parent=43 // pred_check_branch
        %1509 = sbr.rel (%p1507) target = $region48
      $region47: #{basic_block_forward.5} parent=43 // pred_region
        %s1510 = smul.u32 8, %s17
        %p1511 = scmp.lt.s32.totalorder %s1510, 15
        %s1512 = scalar_select %p1511, %s1510, 15
        %s1513 = smul.addr %s1512, 8
        %s1514 = scalar_lea.vmem %s2, %s1513
      $region48: #{basic_block_forward.5} parent=43 // pred_fallthru
        _
      // Predicated region
      $region49: #{basic_block_forward.5} parent=43 // pred_check
        %p1515 = pneg %p113
      $region50: #{basic_block_forward.5} parent=43 // pred_check_branch
        %1517 = sbr.rel (%p1515) target = $region52
      $region51: #{basic_block_forward.5} parent=43 // pred_region
        %p1518 = scmp.lt.s32.totalorder %s17, 1
        %s1519 = scalar_select %p1518, %s17, 1
        %s1520 = smul.addr %s1519, 8
        %s1521 = scalar_lea.vmem %s3, %s1520
      $region52: #{basic_block_forward.5} parent=43 // pred_fallthru
        _
      // Predicated region
      $region53: #{basic_block_forward.5} parent=43 // pred_check
        %p1522 = pneg %p139
      $region54: #{basic_block_forward.5} parent=43 // pred_check_branch
        %1524 = sbr.rel (%p1522) target = $region56
      $region55: #{basic_block_forward.5} parent=43 // pred_region
        %p1525 = scmp.lt.s32.totalorder %s17, 1
        %s1526 = scalar_select %p1525, %s17, 1
        %s1527 = smul.addr %s1526, 8
        %s1528 = scalar_lea.vmem %s4, %s1527
      $region56: #{basic_block_forward.5} parent=43 // pred_fallthru
        _
    $region44: #{basic_block_forward.5} parent=5 // pred_fallthru
      _
  $region6: #{basic_block_forward.5} parent=0 // loop_footer
    %s15 = sadd.s32 1, %s11
  $region7: #{basic_block_forward.5} parent=0 // loop_footer_branch
    %10 = sbr.rel target = $region3
  $region8: #{basic_block_forward.5} parent=0 // loop_exit
    _

// kernel: basic_block_forward.6
$region0: #{basic_block_forward.6}
  #allocation0 [shape = 'u32[]', space=smem, size = 0x4, offset = 0x4, fixed_abs, tag = 'smem constant byte address 0x4 - core index']
  #allocation1 [shape = 'u32[144,128]{1,0:T(1,128)}', space=vmem, size = 0x12000, scoped, tag = 'internal scratch']
  %s0 = inlined_call_operand.vmem [shape: f32[128,128], index: 0, kind: input, shape index: {}, may-alias: {0,3}]
  %s1 = inlined_call_operand.vmem [shape: f32[1,128], index: 1, kind: input, shape index: {}]
  %s2 = inlined_call_operand.vmem [shape: f32[1,128], index: 2, kind: input, shape index: {}]
  %s3 = inlined_call_operand.vmem [shape: f32[128,128], index: 3, kind: output, shape index: {}, may-alias: {0,3}]
  %s4 = sld [smem:[#allocation0]]
  $region22: #{basic_block_forward.6} parent=0
    _
  %s6 = ssub.s32 1, %s4
  %s7 = scalar_select 0, %s6, %s4
  // Predicated region
  $region2: #{basic_block_forward.6} parent=0 // pred_check
    _
  $region3: #{basic_block_forward.6} parent=0 // pred_check_branch
    %9 = sbr.rel (0) target = $region5
  $region4: #{basic_block_forward.6} parent=0 // pred_region
    _
  $region5: #{basic_block_forward.6} parent=0 // pred_fallthru
    _
  // Predicated region
  $region6: #{basic_block_forward.6} parent=0 // pred_check
    _
  $region7: #{basic_block_forward.6} parent=0 // pred_check_branch
    %11 = sbr.rel (0) target = $region9
  $region8: #{basic_block_forward.6} parent=0 // pred_region
    _
  $region9: #{basic_block_forward.6} parent=0 // pred_fallthru
    _
  // Predicated region
  $region10: #{basic_block_forward.6} parent=0 // pred_check
    _
  $region11: #{basic_block_forward.6} parent=0 // pred_check_branch
    %13 = sbr.rel (0) target = $region13
  $region12: #{basic_block_forward.6} parent=0 // pred_region
    _
  $region13: #{basic_block_forward.6} parent=0 // pred_fallthru
    _
  %v14 = vld [vmem:[%s0] sm:$0xff]
  %v15 = vld [vmem:[%s0 + $0x8] sm:$0xff]
  %v16 = vld [vmem:[%s0 + $0x10] sm:$0xff]
  %v17 = vld [vmem:[%s0 + $0x18] sm:$0xff]
  %v18 = vld [vmem:[%s0 + $0x20] sm:$0xff]
  %v19 = vld [vmem:[%s0 + $0x28] sm:$0xff]
  %v20 = vld [vmem:[%s0 + $0x30] sm:$0xff]
  %v21 = vld [vmem:[%s0 + $0x38] sm:$0xff]
  %v22 = vld [vmem:[%s0 + $0x40] sm:$0xff]
  %v23 = vld [vmem:[%s0 + $0x48] sm:$0xff]
  %v24 = vld [vmem:[%s0 + $0x50] sm:$0xff]
  %v25 = vld [vmem:[%s0 + $0x58] sm:$0xff]
  %v26 = vld [vmem:[%s0 + $0x60] sm:$0xff]
  %v27 = vld [vmem:[%s0 + $0x68] sm:$0xff]
  %v28 = vld [vmem:[%s0 + $0x70] sm:$0xff]
  %v29 = vld [vmem:[%s0 + $0x78] sm:$0xff]
  %v30 = vld [vmem:[%s1] sm:$0x1]
  %v32 = vlaneseq
  %v33 = vshrl.u32 %v32, 7
  %v34 = vsub.s32 0, %v33
  %v35 = vrot.slane %v30, %v34
  %v37 = vmul.f32 %v14, %v35
  %v38 = vmul.f32 %v15, %v35
  %v39 = vmul.f32 %v16, %v35
  %v40 = vmul.f32 %v17, %v35
  %v41 = vmul.f32 %v18, %v35
  %v42 = vmul.f32 %v19, %v35
  %v43 = vmul.f32 %v20, %v35
  %v44 = vmul.f32 %v21, %v35
  %v45 = vmul.f32 %v22, %v35
  %v46 = vmul.f32 %v23, %v35
  %v47 = vmul.f32 %v24, %v35
  %v48 = vmul.f32 %v25, %v35
  %v49 = vmul.f32 %v26, %v35
  %v50 = vmul.f32 %v27, %v35
  %v51 = vmul.f32 %v28, %v35
  %v52 = vmul.f32 %v29, %v35
  %v53 = vld [vmem:[%s2] sm:$0x1]
  %v55 = vlaneseq
  %v56 = vshrl.u32 %v55, 7
  %v57 = vsub.s32 0, %v56
  %v58 = vrot.slane %v53, %v57
  %v60 = vadd.f32 %v37, %v58
  %v61 = vadd.f32 %v38, %v58
  %v62 = vadd.f32 %v39, %v58
  %v63 = vadd.f32 %v40, %v58
  %v64 = vadd.f32 %v41, %v58
  %v65 = vadd.f32 %v42, %v58
  %v66 = vadd.f32 %v43, %v58
  %v67 = vadd.f32 %v44, %v58
  %v68 = vadd.f32 %v45, %v58
  %v69 = vadd.f32 %v46, %v58
  %v70 = vadd.f32 %v47, %v58
  %v71 = vadd.f32 %v48, %v58
  %v72 = vadd.f32 %v49, %v58
  %v73 = vadd.f32 %v50, %v58
  %v74 = vadd.f32 %v51, %v58
  %v75 = vadd.f32 %v52, %v58
  %v76 = vmax.f32 %v60, 0.0
  %v77 = vmax.f32 %v61, 0.0
  %v78 = vmax.f32 %v62, 0.0
  %v79 = vmax.f32 %v63, 0.0
  %v80 = vmax.f32 %v64, 0.0
  %v81 = vmax.f32 %v65, 0.0
  %v82 = vmax.f32 %v66, 0.0
  %v83 = vmax.f32 %v67, 0.0
  %v84 = vmax.f32 %v68, 0.0
  %v85 = vmax.f32 %v69, 0.0
  %v86 = vmax.f32 %v70, 0.0
  %v87 = vmax.f32 %v71, 0.0
  %v88 = vmax.f32 %v72, 0.0
  %v89 = vmax.f32 %v73, 0.0
  %v90 = vmax.f32 %v74, 0.0
  %v91 = vmax.f32 %v75, 0.0
  %92 = vst [vmem:[%s3] sm:$0xff] %v76
  %93 = vst [vmem:[%s3 + $0x8] sm:$0xff] %v77
  %94 = vst [vmem:[%s3 + $0x10] sm:$0xff] %v78
  %95 = vst [vmem:[%s3 + $0x18] sm:$0xff] %v79
  %96 = vst [vmem:[%s3 + $0x20] sm:$0xff] %v80
  %97 = vst [vmem:[%s3 + $0x28] sm:$0xff] %v81
  %98 = vst [vmem:[%s3 + $0x30] sm:$0xff] %v82
  %99 = vst [vmem:[%s3 + $0x38] sm:$0xff] %v83
  %100 = vst [vmem:[%s3 + $0x40] sm:$0xff] %v84
  %101 = vst [vmem:[%s3 + $0x48] sm:$0xff] %v85
  %102 = vst [vmem:[%s3 + $0x50] sm:$0xff] %v86
  %103 = vst [vmem:[%s3 + $0x58] sm:$0xff] %v87
  %104 = vst [vmem:[%s3 + $0x60] sm:$0xff] %v88
  %105 = vst [vmem:[%s3 + $0x68] sm:$0xff] %v89
  %106 = vst [vmem:[%s3 + $0x70] sm:$0xff] %v90
  %107 = vst [vmem:[%s3 + $0x78] sm:$0xff] %v91
  // Predicated region
  $region14: #{basic_block_forward.6} parent=0 // pred_check
    _
  $region15: #{basic_block_forward.6} parent=0 // pred_check_branch
    %109 = sbr.rel (0) target = $region17
  $region16: #{basic_block_forward.6} parent=0 // pred_region
    _
  $region17: #{basic_block_forward.6} parent=0 // pred_fallthru
    _
  // Predicated region
  $region18: #{basic_block_forward.6} parent=0 // pred_check
    _
  $region19: #{basic_block_forward.6} parent=0 // pred_check_branch
    %111 = sbr.rel (0) target = $region21
  $region20: #{basic_block_forward.6} parent=0 // pred_region
    _
  $region21: #{basic_block_forward.6} parent=0 // pred_fallthru
    _

// kernel: basic_block_forward.9
$region0: #{basic_block_forward.9}
  #allocation0 [shape = 'u32[]', space=smem, size = 0x4, offset = 0x4, fixed_abs, tag = 'smem constant byte address 0x4 - core index']
  #allocation1 [shape = 'u32[144,128]{1,0:T(1,128)}', space=vmem, size = 0x12000, scoped, tag = 'internal scratch']
  %s0 = inlined_call_operand.vmem [shape: f32[128,128], index: 0, kind: input, shape index: {}, may-alias: {0,6}]
  %s1 = inlined_call_operand.vmem [shape: f32[128,128], index: 1, kind: input, shape index: {}]
  %s2 = inlined_call_operand.vmem [shape: f32[1,128], index: 2, kind: input, shape index: {}]
  %s3 = inlined_call_operand.vmem [shape: f32[1,128], index: 3, kind: input, shape index: {}]
  %s4 = inlined_call_operand.vmem [shape: f32[1,128], index: 4, kind: input, shape index: {}]
  %s5 = inlined_call_operand.vmem [shape: f32[1,128], index: 5, kind: input, shape index: {}]
  %s6 = inlined_call_operand.vmem [shape: f32[128,128], index: 6, kind: output, shape index: {}, may-alias: {0,6}]
  %s7 = sld [smem:[#allocation0]]
  $region34: #{basic_block_forward.9} parent=0
    _
  %s9 = ssub.s32 1, %s7
  %s10 = scalar_select 0, %s9, %s7
  // Predicated region
  $region2: #{basic_block_forward.9} parent=0 // pred_check
    _
  $region3: #{basic_block_forward.9} parent=0 // pred_check_branch
    %12 = sbr.rel (0) target = $region5
  $region4: #{basic_block_forward.9} parent=0 // pred_region
    _
  $region5: #{basic_block_forward.9} parent=0 // pred_fallthru
    _
  // Predicated region
  $region6: #{basic_block_forward.9} parent=0 // pred_check
    _
  $region7: #{basic_block_forward.9} parent=0 // pred_check_branch
    %14 = sbr.rel (0) target = $region9
  $region8: #{basic_block_forward.9} parent=0 // pred_region
    _
  $region9: #{basic_block_forward.9} parent=0 // pred_fallthru
    _
  // Predicated region
  $region10: #{basic_block_forward.9} parent=0 // pred_check
    _
  $region11: #{basic_block_forward.9} parent=0 // pred_check_branch
    %16 = sbr.rel (0) target = $region13
  $region12: #{basic_block_forward.9} parent=0 // pred_region
    _
  $region13: #{basic_block_forward.9} parent=0 // pred_fallthru
    _
  // Predicated region
  $region14: #{basic_block_forward.9} parent=0 // pred_check
    _
  $region15: #{basic_block_forward.9} parent=0 // pred_check_branch
    %18 = sbr.rel (0) target = $region17
  $region16: #{basic_block_forward.9} parent=0 // pred_region
    _
  $region17: #{basic_block_forward.9} parent=0 // pred_fallthru
    _
  // Predicated region
  $region18: #{basic_block_forward.9} parent=0 // pred_check
    _
  $region19: #{basic_block_forward.9} parent=0 // pred_check_branch
    %20 = sbr.rel (0) target = $region21
  $region20: #{basic_block_forward.9} parent=0 // pred_region
    _
  $region21: #{basic_block_forward.9} parent=0 // pred_fallthru
    _
  // Predicated region
  $region22: #{basic_block_forward.9} parent=0 // pred_check
    _
  $region23: #{basic_block_forward.9} parent=0 // pred_check_branch
    %22 = sbr.rel (0) target = $region25
  $region24: #{basic_block_forward.9} parent=0 // pred_region
    _
  $region25: #{basic_block_forward.9} parent=0 // pred_fallthru
    _
  %v23 = vld [vmem:[%s0] sm:$0xff]
  %v24 = vld [vmem:[%s0 + $0x8] sm:$0xff]
  %v25 = vld [vmem:[%s0 + $0x10] sm:$0xff]
  %v26 = vld [vmem:[%s0 + $0x18] sm:$0xff]
  %v27 = vld [vmem:[%s0 + $0x20] sm:$0xff]
  %v28 = vld [vmem:[%s0 + $0x28] sm:$0xff]
  %v29 = vld [vmem:[%s0 + $0x30] sm:$0xff]
  %v30 = vld [vmem:[%s0 + $0x38] sm:$0xff]
  %v31 = vld [vmem:[%s0 + $0x40] sm:$0xff]
  %v32 = vld [vmem:[%s0 + $0x48] sm:$0xff]
  %v33 = vld [vmem:[%s0 + $0x50] sm:$0xff]
  %v34 = vld [vmem:[%s0 + $0x58] sm:$0xff]
  %v35 = vld [vmem:[%s0 + $0x60] sm:$0xff]
  %v36 = vld [vmem:[%s0 + $0x68] sm:$0xff]
  %v37 = vld [vmem:[%s0 + $0x70] sm:$0xff]
  %v38 = vld [vmem:[%s0 + $0x78] sm:$0xff]
  %v39 = vld [vmem:[%s2] sm:$0x1]
  %v41 = vlaneseq
  %v42 = vshrl.u32 %v41, 7
  %v43 = vsub.s32 0, %v42
  %v44 = vrot.slane %v39, %v43
  %v46 = vmul.f32 %v23, %v44
  %v47 = vmul.f32 %v24, %v44
  %v48 = vmul.f32 %v25, %v44
  %v49 = vmul.f32 %v26, %v44
  %v50 = vmul.f32 %v27, %v44
  %v51 = vmul.f32 %v28, %v44
  %v52 = vmul.f32 %v29, %v44
  %v53 = vmul.f32 %v30, %v44
  %v54 = vmul.f32 %v31, %v44
  %v55 = vmul.f32 %v32, %v44
  %v56 = vmul.f32 %v33, %v44
  %v57 = vmul.f32 %v34, %v44
  %v58 = vmul.f32 %v35, %v44
  %v59 = vmul.f32 %v36, %v44
  %v60 = vmul.f32 %v37, %v44
  %v61 = vmul.f32 %v38, %v44
  %v62 = vld [vmem:[%s3] sm:$0x1]
  %v64 = vlaneseq
  %v65 = vshrl.u32 %v64, 7
  %v66 = vsub.s32 0, %v65
  %v67 = vrot.slane %v62, %v66
  %v69 = vadd.f32 %v46, %v67
  %v70 = vadd.f32 %v47, %v67
  %v71 = vadd.f32 %v48, %v67
  %v72 = vadd.f32 %v49, %v67
  %v73 = vadd.f32 %v50, %v67
  %v74 = vadd.f32 %v51, %v67
  %v75 = vadd.f32 %v52, %v67
  %v76 = vadd.f32 %v53, %v67
  %v77 = vadd.f32 %v54, %v67
  %v78 = vadd.f32 %v55, %v67
  %v79 = vadd.f32 %v56, %v67
  %v80 = vadd.f32 %v57, %v67
  %v81 = vadd.f32 %v58, %v67
  %v82 = vadd.f32 %v59, %v67
  %v83 = vadd.f32 %v60, %v67
  %v84 = vadd.f32 %v61, %v67
  %v85 = vld [vmem:[%s1] sm:$0xff]
  %v86 = vld [vmem:[%s1 + $0x8] sm:$0xff]
  %v87 = vld [vmem:[%s1 + $0x10] sm:$0xff]
  %v88 = vld [vmem:[%s1 + $0x18] sm:$0xff]
  %v89 = vld [vmem:[%s1 + $0x20] sm:$0xff]
  %v90 = vld [vmem:[%s1 + $0x28] sm:$0xff]
  %v91 = vld [vmem:[%s1 + $0x30] sm:$0xff]
  %v92 = vld [vmem:[%s1 + $0x38] sm:$0xff]
  %v93 = vld [vmem:[%s1 + $0x40] sm:$0xff]
  %v94 = vld [vmem:[%s1 + $0x48] sm:$0xff]
  %v95 = vld [vmem:[%s1 + $0x50] sm:$0xff]
  %v96 = vld [vmem:[%s1 + $0x58] sm:$0xff]
  %v97 = vld [vmem:[%s1 + $0x60] sm:$0xff]
  %v98 = vld [vmem:[%s1 + $0x68] sm:$0xff]
  %v99 = vld [vmem:[%s1 + $0x70] sm:$0xff]
  %v100 = vld [vmem:[%s1 + $0x78] sm:$0xff]
  %v101 = vld [vmem:[%s4] sm:$0x1]
  %v103 = vlaneseq
  %v104 = vshrl.u32 %v103, 7
  %v105 = vsub.s32 0, %v104
  %v106 = vrot.slane %v101, %v105
  %v108 = vmul.f32 %v85, %v106
  %v109 = vmul.f32 %v86, %v106
  %v110 = vmul.f32 %v87, %v106
  %v111 = vmul.f32 %v88, %v106
  %v112 = vmul.f32 %v89, %v106
  %v113 = vmul.f32 %v90, %v106
  %v114 = vmul.f32 %v91, %v106
  %v115 = vmul.f32 %v92, %v106
  %v116 = vmul.f32 %v93, %v106
  %v117 = vmul.f32 %v94, %v106
  %v118 = vmul.f32 %v95, %v106
  %v119 = vmul.f32 %v96, %v106
  %v120 = vmul.f32 %v97, %v106
  %v121 = vmul.f32 %v98, %v106
  %v122 = vmul.f32 %v99, %v106
  %v123 = vmul.f32 %v100, %v106
  %v124 = vadd.f32 %v69, %v108
  %v125 = vadd.f32 %v70, %v109
  %v126 = vadd.f32 %v71, %v110
  %v127 = vadd.f32 %v72, %v111
  %v128 = vadd.f32 %v73, %v112
  %v129 = vadd.f32 %v74, %v113
  %v130 = vadd.f32 %v75, %v114
  %v131 = vadd.f32 %v76, %v115
  %v132 = vadd.f32 %v77, %v116
  %v133 = vadd.f32 %v78, %v117
  %v134 = vadd.f32 %v79, %v118
  %v135 = vadd.f32 %v80, %v119
  %v136 = vadd.f32 %v81, %v120
  %v137 = vadd.f32 %v82, %v121
  %v138 = vadd.f32 %v83, %v122
  %v139 = vadd.f32 %v84, %v123
  %v140 = vld [vmem:[%s5] sm:$0x1]
  %v142 = vlaneseq
  %v143 = vshrl.u32 %v142, 7
  %v144 = vsub.s32 0, %v143
  %v145 = vrot.slane %v140, %v144
  %v147 = vadd.f32 %v124, %v145
  %v148 = vadd.f32 %v125, %v145
  %v149 = vadd.f32 %v126, %v145
  %v150 = vadd.f32 %v127, %v145
  %v151 = vadd.f32 %v128, %v145
  %v152 = vadd.f32 %v129, %v145
  %v153 = vadd.f32 %v130, %v145
  %v154 = vadd.f32 %v131, %v145
  %v155 = vadd.f32 %v132, %v145
  %v156 = vadd.f32 %v133, %v145
  %v157 = vadd.f32 %v134, %v145
  %v158 = vadd.f32 %v135, %v145
  %v159 = vadd.f32 %v136, %v145
  %v160 = vadd.f32 %v137, %v145
  %v161 = vadd.f32 %v138, %v145
  %v162 = vadd.f32 %v139, %v145
  %v163 = vmax.f32 %v147, 0.0
  %v164 = vmax.f32 %v148, 0.0
  %v165 = vmax.f32 %v149, 0.0
  %v166 = vmax.f32 %v150, 0.0
  %v167 = vmax.f32 %v151, 0.0
  %v168 = vmax.f32 %v152, 0.0
  %v169 = vmax.f32 %v153, 0.0
  %v170 = vmax.f32 %v154, 0.0
  %v171 = vmax.f32 %v155, 0.0
  %v172 = vmax.f32 %v156, 0.0
  %v173 = vmax.f32 %v157, 0.0
  %v174 = vmax.f32 %v158, 0.0
  %v175 = vmax.f32 %v159, 0.0
  %v176 = vmax.f32 %v160, 0.0
  %v177 = vmax.f32 %v161, 0.0
  %v178 = vmax.f32 %v162, 0.0
  %179 = vst [vmem:[%s6] sm:$0xff] %v163
  %180 = vst [vmem:[%s6 + $0x8] sm:$0xff] %v164
  %181 = vst [vmem:[%s6 + $0x10] sm:$0xff] %v165
  %182 = vst [vmem:[%s6 + $0x18] sm:$0xff] %v166
  %183 = vst [vmem:[%s6 + $0x20] sm:$0xff] %v167
  %184 = vst [vmem:[%s6 + $0x28] sm:$0xff] %v168
  %185 = vst [vmem:[%s6 + $0x30] sm:$0xff] %v169
  %186 = vst [vmem:[%s6 + $0x38] sm:$0xff] %v170
  %187 = vst [vmem:[%s6 + $0x40] sm:$0xff] %v171
  %188 = vst [vmem:[%s6 + $0x48] sm:$0xff] %v172
  %189 = vst [vmem:[%s6 + $0x50] sm:$0xff] %v173
  %190 = vst [vmem:[%s6 + $0x58] sm:$0xff] %v174
  %191 = vst [vmem:[%s6 + $0x60] sm:$0xff] %v175
  %192 = vst [vmem:[%s6 + $0x68] sm:$0xff] %v176
  %193 = vst [vmem:[%s6 + $0x70] sm:$0xff] %v177
  %194 = vst [vmem:[%s6 + $0x78] sm:$0xff] %v178
  // Predicated region
  $region26: #{basic_block_forward.9} parent=0 // pred_check
    _
  $region27: #{basic_block_forward.9} parent=0 // pred_check_branch
    %196 = sbr.rel (0) target = $region29
  $region28: #{basic_block_forward.9} parent=0 // pred_region
    _
  $region29: #{basic_block_forward.9} parent=0 // pred_fallthru
    _
  // Predicated region
  $region30: #{basic_block_forward.9} parent=0 // pred_check
    _
  $region31: #{basic_block_forward.9} parent=0 // pred_check_branch
    %198 = sbr.rel (0) target = $region33
  $region32: #{basic_block_forward.9} parent=0 // pred_region
    _
  $region33: #{basic_block_forward.9} parent=0 // pred_fallthru
    _

// kernel: basic_block_forward.7
$region0: #{basic_block_forward.7}
  #allocation0 [shape = 'u32[]', space=smem, size = 0x4, offset = 0x4, fixed_abs, tag = 'smem constant byte address 0x4 - core index']
  #allocation1 [shape = 'u32[144,128]{1,0:T(1,128)}', space=vmem, size = 0x12000, scoped, tag = 'internal scratch']
  %s0 = inlined_call_operand.vmem [shape: f32[20,10,128], index: 0, kind: input, shape index: {}]
  %s1 = inlined_call_operand.vmem [shape: f32[1152,128], index: 1, kind: input, shape index: {}]
  %s2 = inlined_call_operand.vmem [shape: f32[128,128], index: 2, kind: output, shape index: {0}]
  %s3 = inlined_call_operand.vmem [shape: f32[16,128], index: 3, kind: output, shape index: {1}]
  %s4 = inlined_call_operand.vmem [shape: f32[16,128], index: 4, kind: output, shape index: {2}]
  %5 = xla_tuple %s2, %s3, %s4
  %s6 = sld [smem:[#allocation0]]
  $region57: #{basic_block_forward.7} parent=0
    _
  %s8 = ssub.s32 1, %s6
  %s9 = scalar_select 0, %s8, %s6
  loop: start=0, step=1, limit=4
  $region2: #{basic_block_forward.7} parent=0 // loop_pre_header
    _
  $region3: #{basic_block_forward.7} parent=0 // loop_header
    %s11 = sphi 0, %s15
    %p12 = scmp.ge.s32.totalorder %s11, 4
    %s21 = sphi 0, %s23
    %s24 = sphi 0, %s21
    %s25 = sphi 0, %s24
    %s41 = sphi 0, %s25
    %s45 = sphi 0, %s45
    %s47 = sphi 0, %s45
    %s48 = sphi 0, %s47
    %s62 = sphi 0, %s48
    %s68 = sphi 0, %s70
    %s71 = sphi 0, %s68
    %s72 = sphi 0, %s71
    %s88 = sphi 0, %s72
    %s94 = sphi 0, %s96
    %s97 = sphi 0, %s94
    %s98 = sphi 0, %s97
    %s114 = sphi 0, %s98
    %s120 = sphi 0, %s122
    %s123 = sphi 0, %s120
    %s124 = sphi 0, %s123
    %s140 = sphi 0, %s124
  $region4: #{basic_block_forward.7} parent=0 // loop_header_branch
    %14 = sbr.rel (%p12) target = $region8
  $region5: #{basic_block_forward.7} parent=0 // loop_body
    %s16 = ssub.s32 %s11, 1
    %s17 = ssub.s32 %s11, 2
    %s18 = sadd.s32 %s11, 1
    %s19 = ssub.s32 %s11, %s18
    %p20 = scmp.eq.s32.totalorder %s19, 0
    %s22 = sadd.s32 %s21, 1
    %s23 = scalar_select %p20, %s21, %s22
    %p26 = pneg %p20
    %p27 = scmp.eq.s32.totalorder %s11, 1
    %p28 = por %p26, %p27
    %p29 = scmp.ne.s32.totalorder %s21, %s24
    %p30 = scmp.eq.s32.totalorder %s11, 0
    %p31 = por %p29, %p30
    %p32 = scmp.ne.s32.totalorder %s21, %s24
    %p33 = scmp.eq.s32.totalorder %s16, 1
    %p34 = por %p32, %p33
    %p35 = scmp.ne.s32.totalorder %s24, %s25
    %p36 = scmp.eq.s32.totalorder %s16, 0
    %p37 = por %p35, %p36
    %p38 = scmp.ne.s32.totalorder %s24, %s25
    %p39 = scmp.eq.s32.totalorder %s17, 1
    %p40 = por %p38, %p39
    %p42 = scmp.ne.s32.totalorder %s25, %s41
    %p43 = scmp.eq.s32.totalorder %s17, 0
    %p44 = por %p42, %p43
    %s46 = sadd.s32 %s45, 1
    %p49 = scmp.eq.s32.totalorder %s11, 1
    %p50 = scmp.ne.s32.totalorder %s45, %s47
    %p51 = scmp.eq.s32.totalorder %s11, 0
    %p52 = por %p50, %p51
    %p53 = scmp.ne.s32.totalorder %s45, %s47
    %p54 = scmp.eq.s32.totalorder %s16, 1
    %p55 = por %p53, %p54
    %p56 = scmp.ne.s32.totalorder %s47, %s48
    %p57 = scmp.eq.s32.totalorder %s16, 0
    %p58 = por %p56, %p57
    %p59 = scmp.ne.s32.totalorder %s47, %s48
    %p60 = scmp.eq.s32.totalorder %s17, 1
    %p61 = por %p59, %p60
    %p63 = scmp.ne.s32.totalorder %s48, %s62
    %p64 = scmp.eq.s32.totalorder %s17, 0
    %p65 = por %p63, %p64
    %s66 = ssub.s32 %s11, %s18
    %p67 = scmp.eq.s32.totalorder %s66, 0
    %s69 = sadd.s32 %s68, 1
    %s70 = scalar_select %p67, %s68, %s69
    %p73 = pneg %p67
    %p74 = scmp.eq.s32.totalorder %s11, 1
    %p75 = por %p73, %p74
    %p76 = scmp.ne.s32.totalorder %s68, %s71
    %p77 = scmp.eq.s32.totalorder %s11, 0
    %p78 = por %p76, %p77
    %p79 = scmp.ne.s32.totalorder %s68, %s71
    %p80 = scmp.eq.s32.totalorder %s16, 1
    %p81 = por %p79, %p80
    %p82 = scmp.ne.s32.totalorder %s71, %s72
    %p83 = scmp.eq.s32.totalorder %s16, 0
    %p84 = por %p82, %p83
    %p85 = scmp.ne.s32.totalorder %s71, %s72
    %p86 = scmp.eq.s32.totalorder %s17, 1
    %p87 = por %p85, %p86
    %p89 = scmp.ne.s32.totalorder %s72, %s88
    %p90 = scmp.eq.s32.totalorder %s17, 0
    %p91 = por %p89, %p90
    %s92 = ssub.s32 %s11, %s18
    %p93 = scmp.eq.s32.totalorder %s92, 0
    %s95 = sadd.s32 %s94, 1
    %s96 = scalar_select %p93, %s94, %s95
    %p99 = pneg %p93
    %p100 = scmp.eq.s32.totalorder %s11, 1
    %p101 = por %p99, %p100
    %p102 = scmp.ne.s32.totalorder %s94, %s97
    %p103 = scmp.eq.s32.totalorder %s11, 0
    %p104 = por %p102, %p103
    %p105 = scmp.ne.s32.totalorder %s94, %s97
    %p106 = scmp.eq.s32.totalorder %s16, 1
    %p107 = por %p105, %p106
    %p108 = scmp.ne.s32.totalorder %s97, %s98
    %p109 = scmp.eq.s32.totalorder %s16, 0
    %p110 = por %p108, %p109
    %p111 = scmp.ne.s32.totalorder %s97, %s98
    %p112 = scmp.eq.s32.totalorder %s17, 1
    %p113 = por %p111, %p112
    %p115 = scmp.ne.s32.totalorder %s98, %s114
    %p116 = scmp.eq.s32.totalorder %s17, 0
    %p117 = por %p115, %p116
    %s118 = ssub.s32 %s11, %s18
    %p119 = scmp.eq.s32.totalorder %s118, 0
    %s121 = sadd.s32 %s120, 1
    %s122 = scalar_select %p119, %s120, %s121
    %p125 = pneg %p119
    %p126 = scmp.eq.s32.totalorder %s11, 1
    %p127 = por %p125, %p126
    %p128 = scmp.ne.s32.totalorder %s120, %s123
    %p129 = scmp.eq.s32.totalorder %s11, 0
    %p130 = por %p128, %p129
    %p131 = scmp.ne.s32.totalorder %s120, %s123
    %p132 = scmp.eq.s32.totalorder %s16, 1
    %p133 = por %p131, %p132
    %p134 = scmp.ne.s32.totalorder %s123, %s124
    %p135 = scmp.eq.s32.totalorder %s16, 0
    %p136 = por %p134, %p135
    %p137 = scmp.ne.s32.totalorder %s123, %s124
    %p138 = scmp.eq.s32.totalorder %s17, 1
    %p139 = por %p137, %p138
    %p141 = scmp.ne.s32.totalorder %s124, %s140
    %p142 = scmp.eq.s32.totalorder %s17, 0
    %p143 = por %p141, %p142
    %p144 = scmp.le.s32.totalorder 1, %s11
    %p145 = scmp.lt.s32.totalorder %s11, 3
    %p146 = pnand %p144, %p145
    %p147 = pneg %p146
    // Predicated region
    $region9: #{basic_block_forward.7} parent=5 // pred_check
      _
    $region10: #{basic_block_forward.7} parent=5 // pred_check_branch
      %149 = sbr.rel (%p146) target = $region12
    $region11: #{basic_block_forward.7} parent=5 // pred_region
      %s150 = ssub.s32 %s11, 1
      // Predicated region
      $region13: #{basic_block_forward.7} parent=11 // pred_check
        %p151 = pneg %p58
      $region14: #{basic_block_forward.7} parent=11 // pred_check_branch
        %153 = sbr.rel (%p151) target = $region16
      $region15: #{basic_block_forward.7} parent=11 // pred_region
        _
      $region16: #{basic_block_forward.7} parent=11 // pred_fallthru
        _
    $region12: #{basic_block_forward.7} parent=5 // pred_fallthru
      _
    %p154 = scmp.lt.s32.totalorder %s11, 2
    // Predicated region
    $region17: #{basic_block_forward.7} parent=5 // pred_check
      %p155 = pneg %p154
    $region18: #{basic_block_forward.7} parent=5 // pred_check_branch
      %157 = sbr.rel (%p155) target = $region20
    $region19: #{basic_block_forward.7} parent=5 // pred_region
      // Predicated region
      $region21: #{basic_block_forward.7} parent=19 // pred_check
        %p158 = pneg %p31
      $region22: #{basic_block_forward.7} parent=19 // pred_check_branch
        %160 = sbr.rel (%p158) target = $region24
      $region23: #{basic_block_forward.7} parent=19 // pred_region
        %s161 = smul.u32 10, %s11
        %p162 = scmp.lt.s32.totalorder %s161, 19
        %s163 = scalar_select %p162, %s161, 19
        %s164 = smul.addr %s163, 2
        %s165 = smul.addr %s164, 8
        %s166 = scalar_lea.vmem %s0, %s165
        %s167 = smul.u32 10, %s11
      $region24: #{basic_block_forward.7} parent=19 // pred_fallthru
        _
    $region20: #{basic_block_forward.7} parent=5 // pred_fallthru
      _
    %p168 = scmp.le.s32.totalorder 1, %s11
    %p169 = scmp.lt.s32.totalorder %s11, 3
    %p170 = pnand %p168, %p169
    %p171 = pneg %p170
    // Predicated region
    $region25: #{basic_block_forward.7} parent=5 // pred_check
      _
    $region26: #{basic_block_forward.7} parent=5 // pred_check_branch
      %173 = sbr.rel (%p170) target = $region28
    $region27: #{basic_block_forward.7} parent=5 // pred_region
      %s174 = ssub.s32 %s11, 1
      %s175 = smul.u32 10, %s16
      %p176 = scmp.lt.s32.totalorder %s175, 19
      %s177 = scalar_select %p176, %s175, 19
      %s178 = smul.addr %s177, 2
      %s179 = smul.addr %s178, 8
      %s180 = scalar_lea.vmem %s0, %s179
      %p181 = pneg %p37
      %p182 = pneg %p34
      %p183 = pneg %p58
      %p184 = pneg %p55
      %p185 = pneg %p84
      %p186 = pneg %p81
      %s187 = smul.u32 8, %s16
      %p188 = scmp.lt.s32.totalorder %s187, 15
      %s189 = scalar_select %p188, %s187, 15
      %s190 = smul.addr %s189, 8
      %s191 = scalar_lea.vmem %s2, %s190
      %p192 = pneg %p110
      %p193 = pneg %p107
      %p194 = scmp.lt.s32.totalorder %s16, 1
      %s195 = scalar_select %p194, %s16, 1
      %s196 = smul.addr %s195, 8
      %s197 = scalar_lea.vmem %s3, %s196
      %p198 = pneg %p136
      %p199 = pneg %p133
      %p200 = scmp.lt.s32.totalorder %s16, 1
      %s201 = scalar_select %p200, %s16, 1
      %s202 = smul.addr %s201, 8
      %s203 = scalar_lea.vmem %s4, %s202
      %s204 = smul.u32 10, %s16
      %p205 = scmp.lt.s32.totalorder %s204, 19
      %s206 = scalar_select %p205, %s204, 19
      %s207 = smul.addr %s206, 2
      %s208 = smul.addr %s207, 8
      %s209 = scalar_lea.vmem %s0, %s208
      %s210 = smul.u32 10, %s16
      %s211 = smul.u32 8, %s16
      %p212 = scmp.lt.s32.totalorder %s211, 15
      %s213 = scalar_select %p212, %s211, 15
      %s214 = smul.addr %s213, 8
      %s215 = scalar_lea.vmem %s2, %s214
      %s216 = smul.u32 8, %s16
      %p217 = scmp.lt.s32.totalorder %s16, 1
      %s218 = scalar_select %p217, %s16, 1
      %s219 = smul.addr %s218, 8
      %s220 = scalar_lea.vmem %s3, %s219
      %p221 = scmp.lt.s32.totalorder %s16, 1
      %s222 = scalar_select %p221, %s16, 1
      %s223 = smul.addr %s222, 8
      %s224 = scalar_lea.vmem %s4, %s223
      %v225 = vld [vmem:[%s209] sm:$0xff]
      %v226 = vld [vmem:[%s209 + $0x10] sm:$0xff]
      %v227 = vld [vmem:[%s209 + $0x20] sm:$0xff]
      %v228 = vld [vmem:[%s209 + $0x30] sm:$0xff]
      %v229 = vld [vmem:[%s209 + $0x40] sm:$0xff]
      %v230 = vld [vmem:[%s209 + $0x50] sm:$0xff]
      %v231 = vld [vmem:[%s209 + $0x60] sm:$0xff]
      %v232 = vld [vmem:[%s209 + $0x70] sm:$0xff]
      %v233 = vld [vmem:[%s1] sm:$0xff]
      %v234 = vld [vmem:[%s1 + $0x8] sm:$0xff]
      %v235 = vld [vmem:[%s1 + $0x10] sm:$0xff]
      %v236 = vld [vmem:[%s1 + $0x18] sm:$0xff]
      %v237 = vld [vmem:[%s1 + $0x20] sm:$0xff]
      %v238 = vld [vmem:[%s1 + $0x28] sm:$0xff]
      %v239 = vld [vmem:[%s1 + $0x30] sm:$0xff]
      %v240 = vld [vmem:[%s1 + $0x38] sm:$0xff]
      %v241 = vld [vmem:[%s1 + $0x40] sm:$0xff]
      %v242 = vld [vmem:[%s1 + $0x48] sm:$0xff]
      %v243 = vld [vmem:[%s1 + $0x50] sm:$0xff]
      %v244 = vld [vmem:[%s1 + $0x58] sm:$0xff]
      %v245 = vld [vmem:[%s1 + $0x60] sm:$0xff]
      %v246 = vld [vmem:[%s1 + $0x68] sm:$0xff]
      %v247 = vld [vmem:[%s1 + $0x70] sm:$0xff]
      %v248 = vld [vmem:[%s1 + $0x78] sm:$0xff]
      %v249 = vld [vmem:[%s209 + $0x1] sm:$0xff]
      %v250 = vld [vmem:[%s209 + $0x11] sm:$0xff]
      %v251 = vld [vmem:[%s209 + $0x21] sm:$0xff]
      %v252 = vld [vmem:[%s209 + $0x31] sm:$0xff]
      %v253 = vld [vmem:[%s209 + $0x41] sm:$0xff]
      %v254 = vld [vmem:[%s209 + $0x51] sm:$0xff]
      %v255 = vld [vmem:[%s209 + $0x61] sm:$0xff]
      %v256 = vld [vmem:[%s209 + $0x71] sm:$0xff]
      %v257 = vld [vmem:[%s1 + $0x80] sm:$0xff]
      %v258 = vld [vmem:[%s1 + $0x88] sm:$0xff]
      %v259 = vld [vmem:[%s1 + $0x90] sm:$0xff]
      %v260 = vld [vmem:[%s1 + $0x98] sm:$0xff]
      %v261 = vld [vmem:[%s1 + $0xa0] sm:$0xff]
      %v262 = vld [vmem:[%s1 + $0xa8] sm:$0xff]
      %v263 = vld [vmem:[%s1 + $0xb0] sm:$0xff]
      %v264 = vld [vmem:[%s1 + $0xb8] sm:$0xff]
      %v265 = vld [vmem:[%s1 + $0xc0] sm:$0xff]
      %v266 = vld [vmem:[%s1 + $0xc8] sm:$0xff]
      %v267 = vld [vmem:[%s1 + $0xd0] sm:$0xff]
      %v268 = vld [vmem:[%s1 + $0xd8] sm:$0xff]
      %v269 = vld [vmem:[%s1 + $0xe0] sm:$0xff]
      %v270 = vld [vmem:[%s1 + $0xe8] sm:$0xff]
      %v271 = vld [vmem:[%s1 + $0xf0] sm:$0xff]
      %v272 = vld [vmem:[%s1 + $0xf8] sm:$0xff]
      %273 = vmatprep.subr.mxu0 0.0
      %274 = vmatpush1.msra.mxu0 %v257
      %275 = vmatprep.subr.mxu0 0.0
      %276 = vmatpush1.msra.mxu0 %v258
      %277 = vmatprep.subr.mxu0 0.0
      %278 = vmatpush1.msra.mxu0 %v259
      %279 = vmatprep.subr.mxu0 0.0
      %280 = vmatpush1.msra.mxu0 %v260
      %281 = vmatprep.subr.mxu0 0.0
      %282 = vmatpush1.msra.mxu0 %v261
      %283 = vmatprep.subr.mxu0 0.0
      %284 = vmatpush1.msra.mxu0 %v262
      %285 = vmatprep.subr.mxu0 0.0
      %286 = vmatpush1.msra.mxu0 %v263
      %287 = vmatprep.subr.mxu0 0.0
      %288 = vmatpush1.msra.mxu0 %v264
      %289 = vmatprep.subr.mxu0 0.0
      %290 = vmatpush1.msra.mxu0 %v265
      %291 = vmatprep.subr.mxu0 0.0
      %292 = vmatpush1.msra.mxu0 %v266
      %293 = vmatprep.subr.mxu0 0.0
      %294 = vmatpush1.msra.mxu0 %v267
      %295 = vmatprep.subr.mxu0 0.0
      %296 = vmatpush1.msra.mxu0 %v268
      %297 = vmatprep.subr.mxu0 0.0
      %298 = vmatpush1.msra.mxu0 %v269
      %299 = vmatprep.subr.mxu0 0.0
      %300 = vmatpush1.msra.mxu0 %v270
      %301 = vmatprep.subr.mxu0 0.0
      %302 = vmatpush1.msra.mxu0 %v271
      %303 = vmatprep.subr.mxu0 0.0
      %304 = vmatpush1.msra.mxu0 %v272
      %305 = vmatprep.subr.mxu0 0.0
      %306 = vmatpush1.msra.mxu0 0.0
      %307 = vmatprep.subr.mxu0 0.0
      %308 = vmatpush1.msra.mxu0 0.0
      %309 = vmatprep.subr.mxu0 0.0
      %310 = vmatpush1.msra.mxu0 0.0
      %311 = vmatprep.subr.mxu0 0.0
      %312 = vmatpush1.msra.mxu0 0.0
      %313 = vmatprep.subr.mxu0 0.0
      %314 = vmatpush1.msra.mxu0 0.0
      %315 = vmatprep.subr.mxu0 0.0
      %316 = vmatpush1.msra.mxu0 0.0
      %317 = vmatprep.subr.mxu0 0.0
      %318 = vmatpush1.msra.mxu0 0.0
      %319 = vmatprep.subr.mxu0 0.0
      %320 = vmatpush1.msra.mxu0 0.0
      %321 = vmatprep.subr.mxu0 0.0
      %322 = vmatpush1.msra.mxu0 0.0
      %323 = vmatprep.subr.mxu0 0.0
      %324 = vmatpush1.msra.mxu0 0.0
      %325 = vmatprep.subr.mxu0 0.0
      %326 = vmatpush1.msra.mxu0 0.0
      %327 = vmatprep.subr.mxu0 0.0
      %328 = vmatpush1.msra.mxu0 0.0
      %329 = vmatprep.subr.mxu0 0.0
      %330 = vmatpush1.msra.mxu0 0.0
      %331 = vmatprep.subr.mxu0 0.0
      %332 = vmatpush1.msra.mxu0 0.0
      %333 = vmatprep.subr.mxu0 0.0
      %334 = vmatpush1.msra.mxu0 0.0
      %335 = vmatprep.subr.mxu0 0.0
      %336 = vmatpush1.msra.mxu0 0.0
      %337 = vmatprep.mubr.f32.mxu0 0.0
      %338 = vmatmul.mubr.f32.gmra.mrb[0].mxu0 %v249
      %v339 = vpop.f32.mrb[0].mxu0
      %v340 = vadd.f32 0.0, %v339
      %v341 = vpop.f32.mrb[0].mxu0
      %342 = vmatprep.mubr.f32.mxu0 0.0
      %343 = vmatmul.mubr.f32.gmra.mrb[0].mxu0 %v250
      %v344 = vpop.f32.mrb[0].mxu0
      %v345 = vadd.f32 0.0, %v344
      %v346 = vpop.f32.mrb[0].mxu0
      %347 = vmatprep.mubr.f32.mxu0 0.0
      %348 = vmatmul.mubr.f32.gmra.mrb[0].mxu0 %v251
      %v349 = vpop.f32.mrb[0].mxu0
      %v350 = vadd.f32 0.0, %v349
      %v351 = vpop.f32.mrb[0].mxu0
      %352 = vmatprep.mubr.f32.mxu0 0.0
      %353 = vmatmul.mubr.f32.gmra.mrb[0].mxu0 %v252
      %v354 = vpop.f32.mrb[0].mxu0
      %v355 = vadd.f32 0.0, %v354
      %v356 = vpop.f32.mrb[0].mxu0
      %357 = vmatprep.mubr.f32.mxu0 0.0
      %358 = vmatmul.mubr.f32.gmra.mrb[0].mxu0 %v253
      %v359 = vpop.f32.mrb[0].mxu0
      %v360 = vadd.f32 0.0, %v359
      %v361 = vpop.f32.mrb[0].mxu0
      %362 = vmatprep.mubr.f32.mxu0 0.0
      %363 = vmatmul.mubr.f32.gmra.mrb[0].mxu0 %v254
      %v364 = vpop.f32.mrb[0].mxu0
      %v365 = vadd.f32 0.0, %v364
      %v366 = vpop.f32.mrb[0].mxu0
      %367 = vmatprep.mubr.f32.mxu0 0.0
      %368 = vmatmul.mubr.f32.gmra.mrb[0].mxu0 %v255
      %v369 = vpop.f32.mrb[0].mxu0
      %v370 = vadd.f32 0.0, %v369
      %v371 = vpop.f32.mrb[0].mxu0
      %372 = vmatprep.mubr.f32.mxu0 0.0
      %373 = vmatmul.mubr.f32.gmra.mrb[0].mxu0 %v256
      %v374 = vpop.f32.mrb[0].mxu0
      %v375 = vadd.f32 0.0, %v374
      %v376 = vpop.f32.mrb[0].mxu0
      %377 = vdwg.mxu0
      %378 = vmatprep.subr.mxu0 0.0
      %379 = vmatpush1.msra.mxu0 %v233
      %380 = vmatprep.subr.mxu0 0.0
      %381 = vmatpush1.msra.mxu0 %v234
      %382 = vmatprep.subr.mxu0 0.0
      %383 = vmatpush1.msra.mxu0 %v235
      %384 = vmatprep.subr.mxu0 0.0
      %385 = vmatpush1.msra.mxu0 %v236
      %386 = vmatprep.subr.mxu0 0.0
      %387 = vmatpush1.msra.mxu0 %v237
      %388 = vmatprep.subr.mxu0 0.0
      %389 = vmatpush1.msra.mxu0 %v238
      %390 = vmatprep.subr.mxu0 0.0
      %391 = vmatpush1.msra.mxu0 %v239
      %392 = vmatprep.subr.mxu0 0.0
      %393 = vmatpush1.msra.mxu0 %v240
      %394 = vmatprep.subr.mxu0 0.0
      %395 = vmatpush1.msra.mxu0 %v241
      %396 = vmatprep.subr.mxu0 0.0
      %397 = vmatpush1.msra.mxu0 %v242
      %398 = vmatprep.subr.mxu0 0.0
      %399 = vmatpush1.msra.mxu0 %v243
      %400 = vmatprep.subr.mxu0 0.0
      %401 = vmatpush1.msra.mxu0 %v244
      %402 = vmatprep.subr.mxu0 0.0
      %403 = vmatpush1.msra.mxu0 %v245
      %404 = vmatprep.subr.mxu0 0.0
      %405 = vmatpush1.msra.mxu0 %v246
      %406 = vmatprep.subr.mxu0 0.0
      %407 = vmatpush1.msra.mxu0 %v247
      %408 = vmatprep.subr.mxu0 0.0
      %409 = vmatpush1.msra.mxu0 %v248
      %410 = vmatprep.subr.mxu0 0.0
      %411 = vmatpush1.msra.mxu0 0.0
      %412 = vmatprep.subr.mxu0 0.0
      %413 = vmatpush1.msra.mxu0 0.0
      %414 = vmatprep.subr.mxu0 0.0
      %415 = vmatpush1.msra.mxu0 0.0
      %416 = vmatprep.subr.mxu0 0.0
      %417 = vmatpush1.msra.mxu0 0.0
      %418 = vmatprep.subr.mxu0 0.0
      %419 = vmatpush1.msra.mxu0 0.0
      %420 = vmatprep.subr.mxu0 0.0
      %421 = vmatpush1.msra.mxu0 0.0
      %422 = vmatprep.subr.mxu0 0.0
      %423 = vmatpush1.msra.mxu0 0.0
      %424 = vmatprep.subr.mxu0 0.0
      %425 = vmatpush1.msra.mxu0 0.0
      %426 = vmatprep.subr.mxu0 0.0
      %427 = vmatpush1.msra.mxu0 0.0
      %428 = vmatprep.subr.mxu0 0.0
      %429 = vmatpush1.msra.mxu0 0.0
      %430 = vmatprep.subr.mxu0 0.0
      %431 = vmatpush1.msra.mxu0 0.0
      %432 = vmatprep.subr.mxu0 0.0
      %433 = vmatpush1.msra.mxu0 0.0
      %434 = vmatprep.subr.mxu0 0.0
      %435 = vmatpush1.msra.mxu0 0.0
      %436 = vmatprep.subr.mxu0 0.0
      %437 = vmatpush1.msra.mxu0 0.0
      %438 = vmatprep.subr.mxu0 0.0
      %439 = vmatpush1.msra.mxu0 0.0
      %440 = vmatprep.subr.mxu0 0.0
      %441 = vmatpush1.msra.mxu0 0.0
      %442 = vmatprep.mubr.f32.mxu0 0.0
      %443 = vmatmul.mubr.f32.gmra.mrb[0].mxu0 %v225
      %v444 = vpop.f32.mrb[0].mxu0
      %v445 = vadd.f32 %v340, %v444
      %v446 = vpop.f32.mrb[0].mxu0
      %447 = vmatprep.mubr.f32.mxu0 0.0
      %448 = vmatmul.mubr.f32.gmra.mrb[0].mxu0 %v226
      %v449 = vpop.f32.mrb[0].mxu0
      %v450 = vadd.f32 %v345, %v449
      %v451 = vpop.f32.mrb[0].mxu0
      %452 = vmatprep.mubr.f32.mxu0 0.0
      %453 = vmatmul.mubr.f32.gmra.mrb[0].mxu0 %v227
      %v454 = vpop.f32.mrb[0].mxu0
      %v455 = vadd.f32 %v350, %v454
      %v456 = vpop.f32.mrb[0].mxu0
      %457 = vmatprep.mubr.f32.mxu0 0.0
      %458 = vmatmul.mubr.f32.gmra.mrb[0].mxu0 %v228
      %v459 = vpop.f32.mrb[0].mxu0
      %v460 = vadd.f32 %v355, %v459
      %v461 = vpop.f32.mrb[0].mxu0
      %462 = vmatprep.mubr.f32.mxu0 0.0
      %463 = vmatmul.mubr.f32.gmra.mrb[0].mxu0 %v229
      %v464 = vpop.f32.mrb[0].mxu0
      %v465 = vadd.f32 %v360, %v464
      %v466 = vpop.f32.mrb[0].mxu0
      %467 = vmatprep.mubr.f32.mxu0 0.0
      %468 = vmatmul.mubr.f32.gmra.mrb[0].mxu0 %v230
      %v469 = vpop.f32.mrb[0].mxu0
      %v470 = vadd.f32 %v365, %v469
      %v471 = vpop.f32.mrb[0].mxu0
      %472 = vmatprep.mubr.f32.mxu0 0.0
      %473 = vmatmul.mubr.f32.gmra.mrb[0].mxu0 %v231
      %v474 = vpop.f32.mrb[0].mxu0
      %v475 = vadd.f32 %v370, %v474
      %v476 = vpop.f32.mrb[0].mxu0
      %477 = vmatprep.mubr.f32.mxu0 0.0
      %478 = vmatmul.mubr.f32.gmra.mrb[0].mxu0 %v232
      %v479 = vpop.f32.mrb[0].mxu0
      %v480 = vadd.f32 %v375, %v479
      %v481 = vpop.f32.mrb[0].mxu0
      %482 = vdwg.mxu0
      %v483 = vld [vmem:[%s209 + $0x2] sm:$0xff]
      %v484 = vld [vmem:[%s209 + $0x12] sm:$0xff]
      %v485 = vld [vmem:[%s209 + $0x22] sm:$0xff]
      %v486 = vld [vmem:[%s209 + $0x32] sm:$0xff]
      %v487 = vld [vmem:[%s209 + $0x42] sm:$0xff]
      %v488 = vld [vmem:[%s209 + $0x52] sm:$0xff]
      %v489 = vld [vmem:[%s209 + $0x62] sm:$0xff]
      %v490 = vld [vmem:[%s209 + $0x72] sm:$0xff]
      %v491 = vld [vmem:[%s1 + $0x100] sm:$0xff]
      %v492 = vld [vmem:[%s1 + $0x108] sm:$0xff]
      %v493 = vld [vmem:[%s1 + $0x110] sm:$0xff]
      %v494 = vld [vmem:[%s1 + $0x118] sm:$0xff]
      %v495 = vld [vmem:[%s1 + $0x120] sm:$0xff]
      %v496 = vld [vmem:[%s1 + $0x128] sm:$0xff]
      %v497 = vld [vmem:[%s1 + $0x130] sm:$0xff]
      %v498 = vld [vmem:[%s1 + $0x138] sm:$0xff]
      %v499 = vld [vmem:[%s1 + $0x140] sm:$0xff]
      %v500 = vld [vmem:[%s1 + $0x148] sm:$0xff]
      %v501 = vld [vmem:[%s1 + $0x150] sm:$0xff]
      %v502 = vld [vmem:[%s1 + $0x158] sm:$0xff]
      %v503 = vld [vmem:[%s1 + $0x160] sm:$0xff]
      %v504 = vld [vmem:[%s1 + $0x168] sm:$0xff]
      %v505 = vld [vmem:[%s1 + $0x170] sm:$0xff]
      %v506 = vld [vmem:[%s1 + $0x178] sm:$0xff]
      %507 = vmatprep.subr.mxu0 0.0
      %508 = vmatpush1.msra.mxu0 %v491
      %509 = vmatprep.subr.mxu0 0.0
      %510 = vmatpush1.msra.mxu0 %v492
      %511 = vmatprep.subr.mxu0 0.0
      %512 = vmatpush1.msra.mxu0 %v493
      %513 = vmatprep.subr.mxu0 0.0
      %514 = vmatpush1.msra.mxu0 %v494
      %515 = vmatprep.subr.mxu0 0.0
      %516 = vmatpush1.msra.mxu0 %v495
      %517 = vmatprep.subr.mxu0 0.0
      %518 = vmatpush1.msra.mxu0 %v496
      %519 = vmatprep.subr.mxu0 0.0
      %520 = vmatpush1.msra.mxu0 %v497
      %521 = vmatprep.subr.mxu0 0.0
      %522 = vmatpush1.msra.mxu0 %v498
      %523 = vmatprep.subr.mxu0 0.0
      %524 = vmatpush1.msra.mxu0 %v499
      %525 = vmatprep.subr.mxu0 0.0
      %526 = vmatpush1.msra.mxu0 %v500
      %527 = vmatprep.subr.mxu0 0.0
      %528 = vmatpush1.msra.mxu0 %v501
      %529 = vmatprep.subr.mxu0 0.0
      %530 = vmatpush1.msra.mxu0 %v502
      %531 = vmatprep.subr.mxu0 0.0
      %532 = vmatpush1.msra.mxu0 %v503
      %533 = vmatprep.subr.mxu0 0.0
      %534 = vmatpush1.msra.mxu0 %v504
      %535 = vmatprep.subr.mxu0 0.0
      %536 = vmatpush1.msra.mxu0 %v505
      %537 = vmatprep.subr.mxu0 0.0
      %538 = vmatpush1.msra.mxu0 %v506
      %539 = vmatprep.subr.mxu0 0.0
      %540 = vmatpush1.msra.mxu0 0.0
      %541 = vmatprep.subr.mxu0 0.0
      %542 = vmatpush1.msra.mxu0 0.0
      %543 = vmatprep.subr.mxu0 0.0
      %544 = vmatpush1.msra.mxu0 0.0
      %545 = vmatprep.subr.mxu0 0.0
      %546 = vmatpush1.msra.mxu0 0.0
      %547 = vmatprep.subr.mxu0 0.0
      %548 = vmatpush1.msra.mxu0 0.0
      %549 = vmatprep.subr.mxu0 0.0
      %550 = vmatpush1.msra.mxu0 0.0
      %551 = vmatprep.subr.mxu0 0.0
      %552 = vmatpush1.msra.mxu0 0.0
      %553 = vmatprep.subr.mxu0 0.0
      %554 = vmatpush1.msra.mxu0 0.0
      %555 = vmatprep.subr.mxu0 0.0
      %556 = vmatpush1.msra.mxu0 0.0
      %557 = vmatprep.subr.mxu0 0.0
      %558 = vmatpush1.msra.mxu0 0.0
      %559 = vmatprep.subr.mxu0 0.0
      %560 = vmatpush1.msra.mxu0 0.0
      %561 = vmatprep.subr.mxu0 0.0
      %562 = vmatpush1.msra.mxu0 0.0
      %563 = vmatprep.subr.mxu0 0.0
      %564 = vmatpush1.msra.mxu0 0.0
      %565 = vmatprep.subr.mxu0 0.0
      %566 = vmatpush1.msra.mxu0 0.0
      %567 = vmatprep.subr.mxu0 0.0
      %568 = vmatpush1.msra.mxu0 0.0
      %569 = vmatprep.subr.mxu0 0.0
      %570 = vmatpush1.msra.mxu0 0.0
      %571 = vmatprep.mubr.f32.mxu0 0.0
      %572 = vmatmul.mubr.f32.gmra.mrb[0].mxu0 %v483
      %v573 = vpop.f32.mrb[0].mxu0
      %v574 = vadd.f32 0.0, %v573
      %v575 = vpop.f32.mrb[0].mxu0
      %576 = vmatprep.mubr.f32.mxu0 0.0
      %577 = vmatmul.mubr.f32.gmra.mrb[0].mxu0 %v484
      %v578 = vpop.f32.mrb[0].mxu0
      %v579 = vadd.f32 0.0, %v578
      %v580 = vpop.f32.mrb[0].mxu0
      %581 = vmatprep.mubr.f32.mxu0 0.0
      %582 = vmatmul.mubr.f32.gmra.mrb[0].mxu0 %v485
      %v583 = vpop.f32.mrb[0].mxu0
      %v584 = vadd.f32 0.0, %v583
      %v585 = vpop.f32.mrb[0].mxu0
      %586 = vmatprep.mubr.f32.mxu0 0.0
      %587 = vmatmul.mubr.f32.gmra.mrb[0].mxu0 %v486
      %v588 = vpop.f32.mrb[0].mxu0
      %v589 = vadd.f32 0.0, %v588
      %v590 = vpop.f32.mrb[0].mxu0
      %591 = vmatprep.mubr.f32.mxu0 0.0
      %592 = vmatmul.mubr.f32.gmra.mrb[0].mxu0 %v487
      %v593 = vpop.f32.mrb[0].mxu0
      %v594 = vadd.f32 0.0, %v593
      %v595 = vpop.f32.mrb[0].mxu0
      %596 = vmatprep.mubr.f32.mxu0 0.0
      %597 = vmatmul.mubr.f32.gmra.mrb[0].mxu0 %v488
      %v598 = vpop.f32.mrb[0].mxu0
      %v599 = vadd.f32 0.0, %v598
      %v600 = vpop.f32.mrb[0].mxu0
      %601 = vmatprep.mubr.f32.mxu0 0.0
      %602 = vmatmul.mubr.f32.gmra.mrb[0].mxu0 %v489
      %v603 = vpop.f32.mrb[0].mxu0
      %v604 = vadd.f32 0.0, %v603
      %v605 = vpop.f32.mrb[0].mxu0
      %606 = vmatprep.mubr.f32.mxu0 0.0
      %607 = vmatmul.mubr.f32.gmra.mrb[0].mxu0 %v490
      %v608 = vpop.f32.mrb[0].mxu0
      %v609 = vadd.f32 0.0, %v608
      %v610 = vpop.f32.mrb[0].mxu0
      %611 = vdwg.mxu0
      %v612 = vadd.f32 %v445, %v574
      %v613 = vadd.f32 %v450, %v579
      %v614 = vadd.f32 %v455, %v584
      %v615 = vadd.f32 %v460, %v589
      %v616 = vadd.f32 %v465, %v594
      %v617 = vadd.f32 %v470, %v599
      %v618 = vadd.f32 %v475, %v604
      %v619 = vadd.f32 %v480, %v609
      %s620 = scalar_lea.vmem %s209, 16
      %v621 = vld [vmem:[%s620] sm:$0xff]
      %v622 = vld [vmem:[%s620 + $0x10] sm:$0xff]
      %v623 = vld [vmem:[%s620 + $0x20] sm:$0xff]
      %v624 = vld [vmem:[%s620 + $0x30] sm:$0xff]
      %v625 = vld [vmem:[%s620 + $0x40] sm:$0xff]
      %v626 = vld [vmem:[%s620 + $0x50] sm:$0xff]
      %v627 = vld [vmem:[%s620 + $0x60] sm:$0xff]
      %v628 = vld [vmem:[%s620 + $0x70] sm:$0xff]
      %v629 = vld [vmem:[%s1 + $0x180] sm:$0xff]
      %v630 = vld [vmem:[%s1 + $0x188] sm:$0xff]
      %v631 = vld [vmem:[%s1 + $0x190] sm:$0xff]
      %v632 = vld [vmem:[%s1 + $0x198] sm:$0xff]
      %v633 = vld [vmem:[%s1 + $0x1a0] sm:$0xff]
      %v634 = vld [vmem:[%s1 + $0x1a8] sm:$0xff]
      %v635 = vld [vmem:[%s1 + $0x1b0] sm:$0xff]
      %v636 = vld [vmem:[%s1 + $0x1b8] sm:$0xff]
      %v637 = vld [vmem:[%s1 + $0x1c0] sm:$0xff]
      %v638 = vld [vmem:[%s1 + $0x1c8] sm:$0xff]
      %v639 = vld [vmem:[%s1 + $0x1d0] sm:$0xff]
      %v640 = vld [vmem:[%s1 + $0x1d8] sm:$0xff]
      %v641 = vld [vmem:[%s1 + $0x1e0] sm:$0xff]
      %v642 = vld [vmem:[%s1 + $0x1e8] sm:$0xff]
      %v643 = vld [vmem:[%s1 + $0x1f0] sm:$0xff]
      %v644 = vld [vmem:[%s1 + $0x1f8] sm:$0xff]
      %645 = vmatprep.subr.mxu0 0.0
      %646 = vmatpush1.msra.mxu0 %v629
      %647 = vmatprep.subr.mxu0 0.0
      %648 = vmatpush1.msra.mxu0 %v630
      %649 = vmatprep.subr.mxu0 0.0
      %650 = vmatpush1.msra.mxu0 %v631
      %651 = vmatprep.subr.mxu0 0.0
      %652 = vmatpush1.msra.mxu0 %v632
      %653 = vmatprep.subr.mxu0 0.0
      %654 = vmatpush1.msra.mxu0 %v633
      %655 = vmatprep.subr.mxu0 0.0
      %656 = vmatpush1.msra.mxu0 %v634
      %657 = vmatprep.subr.mxu0 0.0
      %658 = vmatpush1.msra.mxu0 %v635
      %659 = vmatprep.subr.mxu0 0.0
      %660 = vmatpush1.msra.mxu0 %v636
      %661 = vmatprep.subr.mxu0 0.0
      %662 = vmatpush1.msra.mxu0 %v637
      %663 = vmatprep.subr.mxu0 0.0
      %664 = vmatpush1.msra.mxu0 %v638
      %665 = vmatprep.subr.mxu0 0.0
      %666 = vmatpush1.msra.mxu0 %v639
      %667 = vmatprep.subr.mxu0 0.0
      %668 = vmatpush1.msra.mxu0 %v640
      %669 = vmatprep.subr.mxu0 0.0
      %670 = vmatpush1.msra.mxu0 %v641
      %671 = vmatprep.subr.mxu0 0.0
      %672 = vmatpush1.msra.mxu0 %v642
      %673 = vmatprep.subr.mxu0 0.0
      %674 = vmatpush1.msra.mxu0 %v643
      %675 = vmatprep.subr.mxu0 0.0
      %676 = vmatpush1.msra.mxu0 %v644
      %677 = vmatprep.subr.mxu0 0.0
      %678 = vmatpush1.msra.mxu0 0.0
      %679 = vmatprep.subr.mxu0 0.0
      %680 = vmatpush1.msra.mxu0 0.0
      %681 = vmatprep.subr.mxu0 0.0
      %682 = vmatpush1.msra.mxu0 0.0
      %683 = vmatprep.subr.mxu0 0.0
      %684 = vmatpush1.msra.mxu0 0.0
      %685 = vmatprep.subr.mxu0 0.0
      %686 = vmatpush1.msra.mxu0 0.0
      %687 = vmatprep.subr.mxu0 0.0
      %688 = vmatpush1.msra.mxu0 0.0
      %689 = vmatprep.subr.mxu0 0.0
      %690 = vmatpush1.msra.mxu0 0.0
      %691 = vmatprep.subr.mxu0 0.0
      %692 = vmatpush1.msra.mxu0 0.0
      %693 = vmatprep.subr.mxu0 0.0
      %694 = vmatpush1.msra.mxu0 0.0
      %695 = vmatprep.subr.mxu0 0.0
      %696 = vmatpush1.msra.mxu0 0.0
      %697 = vmatprep.subr.mxu0 0.0
      %698 = vmatpush1.msra.mxu0 0.0
      %699 = vmatprep.subr.mxu0 0.0
      %700 = vmatpush1.msra.mxu0 0.0
      %701 = vmatprep.subr.mxu0 0.0
      %702 = vmatpush1.msra.mxu0 0.0
      %703 = vmatprep.subr.mxu0 0.0
      %704 = vmatpush1.msra.mxu0 0.0
      %705 = vmatprep.subr.mxu0 0.0
      %706 = vmatpush1.msra.mxu0 0.0
      %707 = vmatprep.subr.mxu0 0.0
      %708 = vmatpush1.msra.mxu0 0.0
      %709 = vmatprep.mubr.f32.mxu0 0.0
      %710 = vmatmul.mubr.f32.gmra.mrb[0].mxu0 %v621
      %v711 = vpop.f32.mrb[0].mxu0
      %v712 = vadd.f32 0.0, %v711
      %v713 = vpop.f32.mrb[0].mxu0
      %714 = vmatprep.mubr.f32.mxu0 0.0
      %715 = vmatmul.mubr.f32.gmra.mrb[0].mxu0 %v622
      %v716 = vpop.f32.mrb[0].mxu0
      %v717 = vadd.f32 0.0, %v716
      %v718 = vpop.f32.mrb[0].mxu0
      %719 = vmatprep.mubr.f32.mxu0 0.0
      %720 = vmatmul.mubr.f32.gmra.mrb[0].mxu0 %v623
      %v721 = vpop.f32.mrb[0].mxu0
      %v722 = vadd.f32 0.0, %v721
      %v723 = vpop.f32.mrb[0].mxu0
      %724 = vmatprep.mubr.f32.mxu0 0.0
      %725 = vmatmul.mubr.f32.gmra.mrb[0].mxu0 %v624
      %v726 = vpop.f32.mrb[0].mxu0
      %v727 = vadd.f32 0.0, %v726
      %v728 = vpop.f32.mrb[0].mxu0
      %729 = vmatprep.mubr.f32.mxu0 0.0
      %730 = vmatmul.mubr.f32.gmra.mrb[0].mxu0 %v625
      %v731 = vpop.f32.mrb[0].mxu0
      %v732 = vadd.f32 0.0, %v731
      %v733 = vpop.f32.mrb[0].mxu0
      %734 = vmatprep.mubr.f32.mxu0 0.0
      %735 = vmatmul.mubr.f32.gmra.mrb[0].mxu0 %v626
      %v736 = vpop.f32.mrb[0].mxu0
      %v737 = vadd.f32 0.0, %v736
      %v738 = vpop.f32.mrb[0].mxu0
      %739 = vmatprep.mubr.f32.mxu0 0.0
      %740 = vmatmul.mubr.f32.gmra.mrb[0].mxu0 %v627
      %v741 = vpop.f32.mrb[0].mxu0
      %v742 = vadd.f32 0.0, %v741
      %v743 = vpop.f32.mrb[0].mxu0
      %744 = vmatprep.mubr.f32.mxu0 0.0
      %745 = vmatmul.mubr.f32.gmra.mrb[0].mxu0 %v628
      %v746 = vpop.f32.mrb[0].mxu0
      %v747 = vadd.f32 0.0, %v746
      %v748 = vpop.f32.mrb[0].mxu0
      %749 = vdwg.mxu0
      %v750 = vadd.f32 %v612, %v712
      %v751 = vadd.f32 %v613, %v717
      %v752 = vadd.f32 %v614, %v722
      %v753 = vadd.f32 %v615, %v727
      %v754 = vadd.f32 %v616, %v732
      %v755 = vadd.f32 %v617, %v737
      %v756 = vadd.f32 %v618, %v742
      %v757 = vadd.f32 %v619, %v747
      %v758 = vld [vmem:[%s620 + $0x1] sm:$0xff]
      %v759 = vld [vmem:[%s620 + $0x11] sm:$0xff]
      %v760 = vld [vmem:[%s620 + $0x21] sm:$0xff]
      %v761 = vld [vmem:[%s620 + $0x31] sm:$0xff]
      %v762 = vld [vmem:[%s620 + $0x41] sm:$0xff]
      %v763 = vld [vmem:[%s620 + $0x51] sm:$0xff]
      %v764 = vld [vmem:[%s620 + $0x61] sm:$0xff]
      %v765 = vld [vmem:[%s620 + $0x71] sm:$0xff]
      %v766 = vld [vmem:[%s1 + $0x200] sm:$0xff]
      %v767 = vld [vmem:[%s1 + $0x208] sm:$0xff]
      %v768 = vld [vmem:[%s1 + $0x210] sm:$0xff]
      %v769 = vld [vmem:[%s1 + $0x218] sm:$0xff]
      %v770 = vld [vmem:[%s1 + $0x220] sm:$0xff]
      %v771 = vld [vmem:[%s1 + $0x228] sm:$0xff]
      %v772 = vld [vmem:[%s1 + $0x230] sm:$0xff]
      %v773 = vld [vmem:[%s1 + $0x238] sm:$0xff]
      %v774 = vld [vmem:[%s1 + $0x240] sm:$0xff]
      %v775 = vld [vmem:[%s1 + $0x248] sm:$0xff]
      %v776 = vld [vmem:[%s1 + $0x250] sm:$0xff]
      %v777 = vld [vmem:[%s1 + $0x258] sm:$0xff]
      %v778 = vld [vmem:[%s1 + $0x260] sm:$0xff]
      %v779 = vld [vmem:[%s1 + $0x268] sm:$0xff]
      %v780 = vld [vmem:[%s1 + $0x270] sm:$0xff]
      %v781 = vld [vmem:[%s1 + $0x278] sm:$0xff]
      %782 = vmatprep.subr.mxu0 0.0
      %783 = vmatpush1.msra.mxu0 %v766
      %784 = vmatprep.subr.mxu0 0.0
      %785 = vmatpush1.msra.mxu0 %v767
      %786 = vmatprep.subr.mxu0 0.0
      %787 = vmatpush1.msra.mxu0 %v768
      %788 = vmatprep.subr.mxu0 0.0
      %789 = vmatpush1.msra.mxu0 %v769
      %790 = vmatprep.subr.mxu0 0.0
      %791 = vmatpush1.msra.mxu0 %v770
      %792 = vmatprep.subr.mxu0 0.0
      %793 = vmatpush1.msra.mxu0 %v771
      %794 = vmatprep.subr.mxu0 0.0
      %795 = vmatpush1.msra.mxu0 %v772
      %796 = vmatprep.subr.mxu0 0.0
      %797 = vmatpush1.msra.mxu0 %v773
      %798 = vmatprep.subr.mxu0 0.0
      %799 = vmatpush1.msra.mxu0 %v774
      %800 = vmatprep.subr.mxu0 0.0
      %801 = vmatpush1.msra.mxu0 %v775
      %802 = vmatprep.subr.mxu0 0.0
      %803 = vmatpush1.msra.mxu0 %v776
      %804 = vmatprep.subr.mxu0 0.0
      %805 = vmatpush1.msra.mxu0 %v777
      %806 = vmatprep.subr.mxu0 0.0
      %807 = vmatpush1.msra.mxu0 %v778
      %808 = vmatprep.subr.mxu0 0.0
      %809 = vmatpush1.msra.mxu0 %v779
      %810 = vmatprep.subr.mxu0 0.0
      %811 = vmatpush1.msra.mxu0 %v780
      %812 = vmatprep.subr.mxu0 0.0
      %813 = vmatpush1.msra.mxu0 %v781
      %814 = vmatprep.subr.mxu0 0.0
      %815 = vmatpush1.msra.mxu0 0.0
      %816 = vmatprep.subr.mxu0 0.0
      %817 = vmatpush1.msra.mxu0 0.0
      %818 = vmatprep.subr.mxu0 0.0
      %819 = vmatpush1.msra.mxu0 0.0
      %820 = vmatprep.subr.mxu0 0.0
      %821 = vmatpush1.msra.mxu0 0.0
      %822 = vmatprep.subr.mxu0 0.0
      %823 = vmatpush1.msra.mxu0 0.0
      %824 = vmatprep.subr.mxu0 0.0
      %825 = vmatpush1.msra.mxu0 0.0
      %826 = vmatprep.subr.mxu0 0.0
      %827 = vmatpush1.msra.mxu0 0.0
      %828 = vmatprep.subr.mxu0 0.0
      %829 = vmatpush1.msra.mxu0 0.0
      %830 = vmatprep.subr.mxu0 0.0
      %831 = vmatpush1.msra.mxu0 0.0
      %832 = vmatprep.subr.mxu0 0.0
      %833 = vmatpush1.msra.mxu0 0.0
      %834 = vmatprep.subr.mxu0 0.0
      %835 = vmatpush1.msra.mxu0 0.0
      %836 = vmatprep.subr.mxu0 0.0
      %837 = vmatpush1.msra.mxu0 0.0
      %838 = vmatprep.subr.mxu0 0.0
      %839 = vmatpush1.msra.mxu0 0.0
      %840 = vmatprep.subr.mxu0 0.0
      %841 = vmatpush1.msra.mxu0 0.0
      %842 = vmatprep.subr.mxu0 0.0
      %843 = vmatpush1.msra.mxu0 0.0
      %844 = vmatprep.subr.mxu0 0.0
      %845 = vmatpush1.msra.mxu0 0.0
      %846 = vmatprep.mubr.f32.mxu0 0.0
      %847 = vmatmul.mubr.f32.gmra.mrb[0].mxu0 %v758
      %v848 = vpop.f32.mrb[0].mxu0
      %v849 = vadd.f32 0.0, %v848
      %v850 = vpop.f32.mrb[0].mxu0
      %851 = vmatprep.mubr.f32.mxu0 0.0
      %852 = vmatmul.mubr.f32.gmra.mrb[0].mxu0 %v759
      %v853 = vpop.f32.mrb[0].mxu0
      %v854 = vadd.f32 0.0, %v853
      %v855 = vpop.f32.mrb[0].mxu0
      %856 = vmatprep.mubr.f32.mxu0 0.0
      %857 = vmatmul.mubr.f32.gmra.mrb[0].mxu0 %v760
      %v858 = vpop.f32.mrb[0].mxu0
      %v859 = vadd.f32 0.0, %v858
      %v860 = vpop.f32.mrb[0].mxu0
      %861 = vmatprep.mubr.f32.mxu0 0.0
      %862 = vmatmul.mubr.f32.gmra.mrb[0].mxu0 %v761
      %v863 = vpop.f32.mrb[0].mxu0
      %v864 = vadd.f32 0.0, %v863
      %v865 = vpop.f32.mrb[0].mxu0
      %866 = vmatprep.mubr.f32.mxu0 0.0
      %867 = vmatmul.mubr.f32.gmra.mrb[0].mxu0 %v762
      %v868 = vpop.f32.mrb[0].mxu0
      %v869 = vadd.f32 0.0, %v868
      %v870 = vpop.f32.mrb[0].mxu0
      %871 = vmatprep.mubr.f32.mxu0 0.0
      %872 = vmatmul.mubr.f32.gmra.mrb[0].mxu0 %v763
      %v873 = vpop.f32.mrb[0].mxu0
      %v874 = vadd.f32 0.0, %v873
      %v875 = vpop.f32.mrb[0].mxu0
      %876 = vmatprep.mubr.f32.mxu0 0.0
      %877 = vmatmul.mubr.f32.gmra.mrb[0].mxu0 %v764
      %v878 = vpop.f32.mrb[0].mxu0
      %v879 = vadd.f32 0.0, %v878
      %v880 = vpop.f32.mrb[0].mxu0
      %881 = vmatprep.mubr.f32.mxu0 0.0
      %882 = vmatmul.mubr.f32.gmra.mrb[0].mxu0 %v765
      %v883 = vpop.f32.mrb[0].mxu0
      %v884 = vadd.f32 0.0, %v883
      %v885 = vpop.f32.mrb[0].mxu0
      %886 = vdwg.mxu0
      %v887 = vadd.f32 %v750, %v849
      %v888 = vadd.f32 %v751, %v854
      %v889 = vadd.f32 %v752, %v859
      %v890 = vadd.f32 %v753, %v864
      %v891 = vadd.f32 %v754, %v869
      %v892 = vadd.f32 %v755, %v874
      %v893 = vadd.f32 %v756, %v879
      %v894 = vadd.f32 %v757, %v884
      %v895 = vld [vmem:[%s620 + $0x2] sm:$0xff]
      %v896 = vld [vmem:[%s620 + $0x12] sm:$0xff]
      %v897 = vld [vmem:[%s620 + $0x22] sm:$0xff]
      %v898 = vld [vmem:[%s620 + $0x32] sm:$0xff]
      %v899 = vld [vmem:[%s620 + $0x42] sm:$0xff]
      %v900 = vld [vmem:[%s620 + $0x52] sm:$0xff]
      %v901 = vld [vmem:[%s620 + $0x62] sm:$0xff]
      %v902 = vld [vmem:[%s620 + $0x72] sm:$0xff]
      %v903 = vld [vmem:[%s1 + $0x280] sm:$0xff]
      %v904 = vld [vmem:[%s1 + $0x288] sm:$0xff]
      %v905 = vld [vmem:[%s1 + $0x290] sm:$0xff]
      %v906 = vld [vmem:[%s1 + $0x298] sm:$0xff]
      %v907 = vld [vmem:[%s1 + $0x2a0] sm:$0xff]
      %v908 = vld [vmem:[%s1 + $0x2a8] sm:$0xff]
      %v909 = vld [vmem:[%s1 + $0x2b0] sm:$0xff]
      %v910 = vld [vmem:[%s1 + $0x2b8] sm:$0xff]
      %v911 = vld [vmem:[%s1 + $0x2c0] sm:$0xff]
      %v912 = vld [vmem:[%s1 + $0x2c8] sm:$0xff]
      %v913 = vld [vmem:[%s1 + $0x2d0] sm:$0xff]
      %v914 = vld [vmem:[%s1 + $0x2d8] sm:$0xff]
      %v915 = vld [vmem:[%s1 + $0x2e0] sm:$0xff]
      %v916 = vld [vmem:[%s1 + $0x2e8] sm:$0xff]
      %v917 = vld [vmem:[%s1 + $0x2f0] sm:$0xff]
      %v918 = vld [vmem:[%s1 + $0x2f8] sm:$0xff]
      %919 = vmatprep.subr.mxu0 0.0
      %920 = vmatpush1.msra.mxu0 %v903
      %921 = vmatprep.subr.mxu0 0.0
      %922 = vmatpush1.msra.mxu0 %v904
      %923 = vmatprep.subr.mxu0 0.0
      %924 = vmatpush1.msra.mxu0 %v905
      %925 = vmatprep.subr.mxu0 0.0
      %926 = vmatpush1.msra.mxu0 %v906
      %927 = vmatprep.subr.mxu0 0.0
      %928 = vmatpush1.msra.mxu0 %v907
      %929 = vmatprep.subr.mxu0 0.0
      %930 = vmatpush1.msra.mxu0 %v908
      %931 = vmatprep.subr.mxu0 0.0
      %932 = vmatpush1.msra.mxu0 %v909
      %933 = vmatprep.subr.mxu0 0.0
      %934 = vmatpush1.msra.mxu0 %v910
      %935 = vmatprep.subr.mxu0 0.0
      %936 = vmatpush1.msra.mxu0 %v911
      %937 = vmatprep.subr.mxu0 0.0
      %938 = vmatpush1.msra.mxu0 %v912
      %939 = vmatprep.subr.mxu0 0.0
      %940 = vmatpush1.msra.mxu0 %v913
      %941 = vmatprep.subr.mxu0 0.0
      %942 = vmatpush1.msra.mxu0 %v914
      %943 = vmatprep.subr.mxu0 0.0
      %944 = vmatpush1.msra.mxu0 %v915
      %945 = vmatprep.subr.mxu0 0.0
      %946 = vmatpush1.msra.mxu0 %v916
      %947 = vmatprep.subr.mxu0 0.0
      %948 = vmatpush1.msra.mxu0 %v917
      %949 = vmatprep.subr.mxu0 0.0
      %950 = vmatpush1.msra.mxu0 %v918
      %951 = vmatprep.subr.mxu0 0.0
      %952 = vmatpush1.msra.mxu0 0.0
      %953 = vmatprep.subr.mxu0 0.0
      %954 = vmatpush1.msra.mxu0 0.0
      %955 = vmatprep.subr.mxu0 0.0
      %956 = vmatpush1.msra.mxu0 0.0
      %957 = vmatprep.subr.mxu0 0.0
      %958 = vmatpush1.msra.mxu0 0.0
      %959 = vmatprep.subr.mxu0 0.0
      %960 = vmatpush1.msra.mxu0 0.0
      %961 = vmatprep.subr.mxu0 0.0
      %962 = vmatpush1.msra.mxu0 0.0
      %963 = vmatprep.subr.mxu0 0.0
      %964 = vmatpush1.msra.mxu0 0.0
      %965 = vmatprep.subr.mxu0 0.0
      %966 = vmatpush1.msra.mxu0 0.0
      %967 = vmatprep.subr.mxu0 0.0
      %968 = vmatpush1.msra.mxu0 0.0
      %969 = vmatprep.subr.mxu0 0.0
      %970 = vmatpush1.msra.mxu0 0.0
      %971 = vmatprep.subr.mxu0 0.0
      %972 = vmatpush1.msra.mxu0 0.0
      %973 = vmatprep.subr.mxu0 0.0
      %974 = vmatpush1.msra.mxu0 0.0
      %975 = vmatprep.subr.mxu0 0.0
      %976 = vmatpush1.msra.mxu0 0.0
      %977 = vmatprep.subr.mxu0 0.0
      %978 = vmatpush1.msra.mxu0 0.0
      %979 = vmatprep.subr.mxu0 0.0
      %980 = vmatpush1.msra.mxu0 0.0
      %981 = vmatprep.subr.mxu0 0.0
      %982 = vmatpush1.msra.mxu0 0.0
      %983 = vmatprep.mubr.f32.mxu0 0.0
      %984 = vmatmul.mubr.f32.gmra.mrb[0].mxu0 %v895
      %v985 = vpop.f32.mrb[0].mxu0
      %v986 = vadd.f32 0.0, %v985
      %v987 = vpop.f32.mrb[0].mxu0
      %988 = vmatprep.mubr.f32.mxu0 0.0
      %989 = vmatmul.mubr.f32.gmra.mrb[0].mxu0 %v896
      %v990 = vpop.f32.mrb[0].mxu0
      %v991 = vadd.f32 0.0, %v990
      %v992 = vpop.f32.mrb[0].mxu0
      %993 = vmatprep.mubr.f32.mxu0 0.0
      %994 = vmatmul.mubr.f32.gmra.mrb[0].mxu0 %v897
      %v995 = vpop.f32.mrb[0].mxu0
      %v996 = vadd.f32 0.0, %v995
      %v997 = vpop.f32.mrb[0].mxu0
      %998 = vmatprep.mubr.f32.mxu0 0.0
      %999 = vmatmul.mubr.f32.gmra.mrb[0].mxu0 %v898
      %v1000 = vpop.f32.mrb[0].mxu0
      %v1001 = vadd.f32 0.0, %v1000
      %v1002 = vpop.f32.mrb[0].mxu0
      %1003 = vmatprep.mubr.f32.mxu0 0.0
      %1004 = vmatmul.mubr.f32.gmra.mrb[0].mxu0 %v899
      %v1005 = vpop.f32.mrb[0].mxu0
      %v1006 = vadd.f32 0.0, %v1005
      %v1007 = vpop.f32.mrb[0].mxu0
      %1008 = vmatprep.mubr.f32.mxu0 0.0
      %1009 = vmatmul.mubr.f32.gmra.mrb[0].mxu0 %v900
      %v1010 = vpop.f32.mrb[0].mxu0
      %v1011 = vadd.f32 0.0, %v1010
      %v1012 = vpop.f32.mrb[0].mxu0
      %1013 = vmatprep.mubr.f32.mxu0 0.0
      %1014 = vmatmul.mubr.f32.gmra.mrb[0].mxu0 %v901
      %v1015 = vpop.f32.mrb[0].mxu0
      %v1016 = vadd.f32 0.0, %v1015
      %v1017 = vpop.f32.mrb[0].mxu0
      %1018 = vmatprep.mubr.f32.mxu0 0.0
      %1019 = vmatmul.mubr.f32.gmra.mrb[0].mxu0 %v902
      %v1020 = vpop.f32.mrb[0].mxu0
      %v1021 = vadd.f32 0.0, %v1020
      %v1022 = vpop.f32.mrb[0].mxu0
      %1023 = vdwg.mxu0
      %v1024 = vadd.f32 %v887, %v986
      %v1025 = vadd.f32 %v888, %v991
      %v1026 = vadd.f32 %v889, %v996
      %v1027 = vadd.f32 %v890, %v1001
      %v1028 = vadd.f32 %v891, %v1006
      %v1029 = vadd.f32 %v892, %v1011
      %v1030 = vadd.f32 %v893, %v1016
      %v1031 = vadd.f32 %v894, %v1021
      %s1032 = scalar_lea.vmem %s209, 32
      %v1033 = vld [vmem:[%s1032] sm:$0xff]
      %v1034 = vld [vmem:[%s1032 + $0x10] sm:$0xff]
      %v1035 = vld [vmem:[%s1032 + $0x20] sm:$0xff]
      %v1036 = vld [vmem:[%s1032 + $0x30] sm:$0xff]
      %v1037 = vld [vmem:[%s1032 + $0x40] sm:$0xff]
      %v1038 = vld [vmem:[%s1032 + $0x50] sm:$0xff]
      %v1039 = vld [vmem:[%s1032 + $0x60] sm:$0xff]
      %v1040 = vld [vmem:[%s1032 + $0x70] sm:$0xff]
      %v1041 = vld [vmem:[%s1 + $0x300] sm:$0xff]
      %v1042 = vld [vmem:[%s1 + $0x308] sm:$0xff]
      %v1043 = vld [vmem:[%s1 + $0x310] sm:$0xff]
      %v1044 = vld [vmem:[%s1 + $0x318] sm:$0xff]
      %v1045 = vld [vmem:[%s1 + $0x320] sm:$0xff]
      %v1046 = vld [vmem:[%s1 + $0x328] sm:$0xff]
      %v1047 = vld [vmem:[%s1 + $0x330] sm:$0xff]
      %v1048 = vld [vmem:[%s1 + $0x338] sm:$0xff]
      %v1049 = vld [vmem:[%s1 + $0x340] sm:$0xff]
      %v1050 = vld [vmem:[%s1 + $0x348] sm:$0xff]
      %v1051 = vld [vmem:[%s1 + $0x350] sm:$0xff]
      %v1052 = vld [vmem:[%s1 + $0x358] sm:$0xff]
      %v1053 = vld [vmem:[%s1 + $0x360] sm:$0xff]
      %v1054 = vld [vmem:[%s1 + $0x368] sm:$0xff]
      %v1055 = vld [vmem:[%s1 + $0x370] sm:$0xff]
      %v1056 = vld [vmem:[%s1 + $0x378] sm:$0xff]
      %1057 = vmatprep.subr.mxu0 0.0
      %1058 = vmatpush1.msra.mxu0 %v1041
      %1059 = vmatprep.subr.mxu0 0.0
      %1060 = vmatpush1.msra.mxu0 %v1042
      %1061 = vmatprep.subr.mxu0 0.0
      %1062 = vmatpush1.msra.mxu0 %v1043
      %1063 = vmatprep.subr.mxu0 0.0
      %1064 = vmatpush1.msra.mxu0 %v1044
      %1065 = vmatprep.subr.mxu0 0.0
      %1066 = vmatpush1.msra.mxu0 %v1045
      %1067 = vmatprep.subr.mxu0 0.0
      %1068 = vmatpush1.msra.mxu0 %v1046
      %1069 = vmatprep.subr.mxu0 0.0
      %1070 = vmatpush1.msra.mxu0 %v1047
      %1071 = vmatprep.subr.mxu0 0.0
      %1072 = vmatpush1.msra.mxu0 %v1048
      %1073 = vmatprep.subr.mxu0 0.0
      %1074 = vmatpush1.msra.mxu0 %v1049
      %1075 = vmatprep.subr.mxu0 0.0
      %1076 = vmatpush1.msra.mxu0 %v1050
      %1077 = vmatprep.subr.mxu0 0.0
      %1078 = vmatpush1.msra.mxu0 %v1051
      %1079 = vmatprep.subr.mxu0 0.0
      %1080 = vmatpush1.msra.mxu0 %v1052
      %1081 = vmatprep.subr.mxu0 0.0
      %1082 = vmatpush1.msra.mxu0 %v1053
      %1083 = vmatprep.subr.mxu0 0.0
      %1084 = vmatpush1.msra.mxu0 %v1054
      %1085 = vmatprep.subr.mxu0 0.0
      %1086 = vmatpush1.msra.mxu0 %v1055
      %1087 = vmatprep.subr.mxu0 0.0
      %1088 = vmatpush1.msra.mxu0 %v1056
      %1089 = vmatprep.subr.mxu0 0.0
      %1090 = vmatpush1.msra.mxu0 0.0
      %1091 = vmatprep.subr.mxu0 0.0
      %1092 = vmatpush1.msra.mxu0 0.0
      %1093 = vmatprep.subr.mxu0 0.0
      %1094 = vmatpush1.msra.mxu0 0.0
      %1095 = vmatprep.subr.mxu0 0.0
      %1096 = vmatpush1.msra.mxu0 0.0
      %1097 = vmatprep.subr.mxu0 0.0
      %1098 = vmatpush1.msra.mxu0 0.0
      %1099 = vmatprep.subr.mxu0 0.0
      %1100 = vmatpush1.msra.mxu0 0.0
      %1101 = vmatprep.subr.mxu0 0.0
      %1102 = vmatpush1.msra.mxu0 0.0
      %1103 = vmatprep.subr.mxu0 0.0
      %1104 = vmatpush1.msra.mxu0 0.0
      %1105 = vmatprep.subr.mxu0 0.0
      %1106 = vmatpush1.msra.mxu0 0.0
      %1107 = vmatprep.subr.mxu0 0.0
      %1108 = vmatpush1.msra.mxu0 0.0
      %1109 = vmatprep.subr.mxu0 0.0
      %1110 = vmatpush1.msra.mxu0 0.0
      %1111 = vmatprep.subr.mxu0 0.0
      %1112 = vmatpush1.msra.mxu0 0.0
      %1113 = vmatprep.subr.mxu0 0.0
      %1114 = vmatpush1.msra.mxu0 0.0
      %1115 = vmatprep.subr.mxu0 0.0
      %1116 = vmatpush1.msra.mxu0 0.0
      %1117 = vmatprep.subr.mxu0 0.0
      %1118 = vmatpush1.msra.mxu0 0.0
      %1119 = vmatprep.subr.mxu0 0.0
      %1120 = vmatpush1.msra.mxu0 0.0
      %1121 = vmatprep.mubr.f32.mxu0 0.0
      %1122 = vmatmul.mubr.f32.gmra.mrb[0].mxu0 %v1033
      %v1123 = vpop.f32.mrb[0].mxu0
      %v1124 = vadd.f32 0.0, %v1123
      %v1125 = vpop.f32.mrb[0].mxu0
      %1126 = vmatprep.mubr.f32.mxu0 0.0
      %1127 = vmatmul.mubr.f32.gmra.mrb[0].mxu0 %v1034
      %v1128 = vpop.f32.mrb[0].mxu0
      %v1129 = vadd.f32 0.0, %v1128
      %v1130 = vpop.f32.mrb[0].mxu0
      %1131 = vmatprep.mubr.f32.mxu0 0.0
      %1132 = vmatmul.mubr.f32.gmra.mrb[0].mxu0 %v1035
      %v1133 = vpop.f32.mrb[0].mxu0
      %v1134 = vadd.f32 0.0, %v1133
      %v1135 = vpop.f32.mrb[0].mxu0
      %1136 = vmatprep.mubr.f32.mxu0 0.0
      %1137 = vmatmul.mubr.f32.gmra.mrb[0].mxu0 %v1036
      %v1138 = vpop.f32.mrb[0].mxu0
      %v1139 = vadd.f32 0.0, %v1138
      %v1140 = vpop.f32.mrb[0].mxu0
      %1141 = vmatprep.mubr.f32.mxu0 0.0
      %1142 = vmatmul.mubr.f32.gmra.mrb[0].mxu0 %v1037
      %v1143 = vpop.f32.mrb[0].mxu0
      %v1144 = vadd.f32 0.0, %v1143
      %v1145 = vpop.f32.mrb[0].mxu0
      %1146 = vmatprep.mubr.f32.mxu0 0.0
      %1147 = vmatmul.mubr.f32.gmra.mrb[0].mxu0 %v1038
      %v1148 = vpop.f32.mrb[0].mxu0
      %v1149 = vadd.f32 0.0, %v1148
      %v1150 = vpop.f32.mrb[0].mxu0
      %1151 = vmatprep.mubr.f32.mxu0 0.0
      %1152 = vmatmul.mubr.f32.gmra.mrb[0].mxu0 %v1039
      %v1153 = vpop.f32.mrb[0].mxu0
      %v1154 = vadd.f32 0.0, %v1153
      %v1155 = vpop.f32.mrb[0].mxu0
      %1156 = vmatprep.mubr.f32.mxu0 0.0
      %1157 = vmatmul.mubr.f32.gmra.mrb[0].mxu0 %v1040
      %v1158 = vpop.f32.mrb[0].mxu0
      %v1159 = vadd.f32 0.0, %v1158
      %v1160 = vpop.f32.mrb[0].mxu0
      %1161 = vdwg.mxu0
      %v1162 = vadd.f32 %v1024, %v1124
      %v1163 = vadd.f32 %v1025, %v1129
      %v1164 = vadd.f32 %v1026, %v1134
      %v1165 = vadd.f32 %v1027, %v1139
      %v1166 = vadd.f32 %v1028, %v1144
      %v1167 = vadd.f32 %v1029, %v1149
      %v1168 = vadd.f32 %v1030, %v1154
      %v1169 = vadd.f32 %v1031, %v1159
      %v1170 = vld [vmem:[%s1032 + $0x1] sm:$0xff]
      %v1171 = vld [vmem:[%s1032 + $0x11] sm:$0xff]
      %v1172 = vld [vmem:[%s1032 + $0x21] sm:$0xff]
      %v1173 = vld [vmem:[%s1032 + $0x31] sm:$0xff]
      %v1174 = vld [vmem:[%s1032 + $0x41] sm:$0xff]
      %v1175 = vld [vmem:[%s1032 + $0x51] sm:$0xff]
      %v1176 = vld [vmem:[%s1032 + $0x61] sm:$0xff]
      %v1177 = vld [vmem:[%s1032 + $0x71] sm:$0xff]
      %v1178 = vld [vmem:[%s1 + $0x380] sm:$0xff]
      %v1179 = vld [vmem:[%s1 + $0x388] sm:$0xff]
      %v1180 = vld [vmem:[%s1 + $0x390] sm:$0xff]
      %v1181 = vld [vmem:[%s1 + $0x398] sm:$0xff]
      %v1182 = vld [vmem:[%s1 + $0x3a0] sm:$0xff]
      %v1183 = vld [vmem:[%s1 + $0x3a8] sm:$0xff]
      %v1184 = vld [vmem:[%s1 + $0x3b0] sm:$0xff]
      %v1185 = vld [vmem:[%s1 + $0x3b8] sm:$0xff]
      %v1186 = vld [vmem:[%s1 + $0x3c0] sm:$0xff]
      %v1187 = vld [vmem:[%s1 + $0x3c8] sm:$0xff]
      %v1188 = vld [vmem:[%s1 + $0x3d0] sm:$0xff]
      %v1189 = vld [vmem:[%s1 + $0x3d8] sm:$0xff]
      %v1190 = vld [vmem:[%s1 + $0x3e0] sm:$0xff]
      %v1191 = vld [vmem:[%s1 + $0x3e8] sm:$0xff]
      %v1192 = vld [vmem:[%s1 + $0x3f0] sm:$0xff]
      %v1193 = vld [vmem:[%s1 + $0x3f8] sm:$0xff]
      %1194 = vmatprep.subr.mxu0 0.0
      %1195 = vmatpush1.msra.mxu0 %v1178
      %1196 = vmatprep.subr.mxu0 0.0
      %1197 = vmatpush1.msra.mxu0 %v1179
      %1198 = vmatprep.subr.mxu0 0.0
      %1199 = vmatpush1.msra.mxu0 %v1180
      %1200 = vmatprep.subr.mxu0 0.0
      %1201 = vmatpush1.msra.mxu0 %v1181
      %1202 = vmatprep.subr.mxu0 0.0
      %1203 = vmatpush1.msra.mxu0 %v1182
      %1204 = vmatprep.subr.mxu0 0.0
      %1205 = vmatpush1.msra.mxu0 %v1183
      %1206 = vmatprep.subr.mxu0 0.0
      %1207 = vmatpush1.msra.mxu0 %v1184
      %1208 = vmatprep.subr.mxu0 0.0
      %1209 = vmatpush1.msra.mxu0 %v1185
      %1210 = vmatprep.subr.mxu0 0.0
      %1211 = vmatpush1.msra.mxu0 %v1186
      %1212 = vmatprep.subr.mxu0 0.0
      %1213 = vmatpush1.msra.mxu0 %v1187
      %1214 = vmatprep.subr.mxu0 0.0
      %1215 = vmatpush1.msra.mxu0 %v1188
      %1216 = vmatprep.subr.mxu0 0.0
      %1217 = vmatpush1.msra.mxu0 %v1189
      %1218 = vmatprep.subr.mxu0 0.0
      %1219 = vmatpush1.msra.mxu0 %v1190
      %1220 = vmatprep.subr.mxu0 0.0
      %1221 = vmatpush1.msra.mxu0 %v1191
      %1222 = vmatprep.subr.mxu0 0.0
      %1223 = vmatpush1.msra.mxu0 %v1192
      %1224 = vmatprep.subr.mxu0 0.0
      %1225 = vmatpush1.msra.mxu0 %v1193
      %1226 = vmatprep.subr.mxu0 0.0
      %1227 = vmatpush1.msra.mxu0 0.0
      %1228 = vmatprep.subr.mxu0 0.0
      %1229 = vmatpush1.msra.mxu0 0.0
      %1230 = vmatprep.subr.mxu0 0.0
      %1231 = vmatpush1.msra.mxu0 0.0
      %1232 = vmatprep.subr.mxu0 0.0
      %1233 = vmatpush1.msra.mxu0 0.0
      %1234 = vmatprep.subr.mxu0 0.0
      %1235 = vmatpush1.msra.mxu0 0.0
      %1236 = vmatprep.subr.mxu0 0.0
      %1237 = vmatpush1.msra.mxu0 0.0
      %1238 = vmatprep.subr.mxu0 0.0
      %1239 = vmatpush1.msra.mxu0 0.0
      %1240 = vmatprep.subr.mxu0 0.0
      %1241 = vmatpush1.msra.mxu0 0.0
      %1242 = vmatprep.subr.mxu0 0.0
      %1243 = vmatpush1.msra.mxu0 0.0
      %1244 = vmatprep.subr.mxu0 0.0
      %1245 = vmatpush1.msra.mxu0 0.0
      %1246 = vmatprep.subr.mxu0 0.0
      %1247 = vmatpush1.msra.mxu0 0.0
      %1248 = vmatprep.subr.mxu0 0.0
      %1249 = vmatpush1.msra.mxu0 0.0
      %1250 = vmatprep.subr.mxu0 0.0
      %1251 = vmatpush1.msra.mxu0 0.0
      %1252 = vmatprep.subr.mxu0 0.0
      %1253 = vmatpush1.msra.mxu0 0.0
      %1254 = vmatprep.subr.mxu0 0.0
      %1255 = vmatpush1.msra.mxu0 0.0
      %1256 = vmatprep.subr.mxu0 0.0
      %1257 = vmatpush1.msra.mxu0 0.0
      %1258 = vmatprep.mubr.f32.mxu0 0.0
      %1259 = vmatmul.mubr.f32.gmra.mrb[0].mxu0 %v1170
      %v1260 = vpop.f32.mrb[0].mxu0
      %v1261 = vadd.f32 0.0, %v1260
      %v1262 = vpop.f32.mrb[0].mxu0
      %1263 = vmatprep.mubr.f32.mxu0 0.0
      %1264 = vmatmul.mubr.f32.gmra.mrb[0].mxu0 %v1171
      %v1265 = vpop.f32.mrb[0].mxu0
      %v1266 = vadd.f32 0.0, %v1265
      %v1267 = vpop.f32.mrb[0].mxu0
      %1268 = vmatprep.mubr.f32.mxu0 0.0
      %1269 = vmatmul.mubr.f32.gmra.mrb[0].mxu0 %v1172
      %v1270 = vpop.f32.mrb[0].mxu0
      %v1271 = vadd.f32 0.0, %v1270
      %v1272 = vpop.f32.mrb[0].mxu0
      %1273 = vmatprep.mubr.f32.mxu0 0.0
      %1274 = vmatmul.mubr.f32.gmra.mrb[0].mxu0 %v1173
      %v1275 = vpop.f32.mrb[0].mxu0
      %v1276 = vadd.f32 0.0, %v1275
      %v1277 = vpop.f32.mrb[0].mxu0
      %1278 = vmatprep.mubr.f32.mxu0 0.0
      %1279 = vmatmul.mubr.f32.gmra.mrb[0].mxu0 %v1174
      %v1280 = vpop.f32.mrb[0].mxu0
      %v1281 = vadd.f32 0.0, %v1280
      %v1282 = vpop.f32.mrb[0].mxu0
      %1283 = vmatprep.mubr.f32.mxu0 0.0
      %1284 = vmatmul.mubr.f32.gmra.mrb[0].mxu0 %v1175
      %v1285 = vpop.f32.mrb[0].mxu0
      %v1286 = vadd.f32 0.0, %v1285
      %v1287 = vpop.f32.mrb[0].mxu0
      %1288 = vmatprep.mubr.f32.mxu0 0.0
      %1289 = vmatmul.mubr.f32.gmra.mrb[0].mxu0 %v1176
      %v1290 = vpop.f32.mrb[0].mxu0
      %v1291 = vadd.f32 0.0, %v1290
      %v1292 = vpop.f32.mrb[0].mxu0
      %1293 = vmatprep.mubr.f32.mxu0 0.0
      %1294 = vmatmul.mubr.f32.gmra.mrb[0].mxu0 %v1177
      %v1295 = vpop.f32.mrb[0].mxu0
      %v1296 = vadd.f32 0.0, %v1295
      %v1297 = vpop.f32.mrb[0].mxu0
      %1298 = vdwg.mxu0
      %v1299 = vadd.f32 %v1162, %v1261
      %v1300 = vadd.f32 %v1163, %v1266
      %v1301 = vadd.f32 %v1164, %v1271
      %v1302 = vadd.f32 %v1165, %v1276
      %v1303 = vadd.f32 %v1166, %v1281
      %v1304 = vadd.f32 %v1167, %v1286
      %v1305 = vadd.f32 %v1168, %v1291
      %v1306 = vadd.f32 %v1169, %v1296
      %v1307 = vld [vmem:[%s1032 + $0x2] sm:$0xff]
      %v1308 = vld [vmem:[%s1032 + $0x12] sm:$0xff]
      %v1309 = vld [vmem:[%s1032 + $0x22] sm:$0xff]
      %v1310 = vld [vmem:[%s1032 + $0x32] sm:$0xff]
      %v1311 = vld [vmem:[%s1032 + $0x42] sm:$0xff]
      %v1312 = vld [vmem:[%s1032 + $0x52] sm:$0xff]
      %v1313 = vld [vmem:[%s1032 + $0x62] sm:$0xff]
      %v1314 = vld [vmem:[%s1032 + $0x72] sm:$0xff]
      %v1315 = vld [vmem:[%s1 + $0x400] sm:$0xff]
      %v1316 = vld [vmem:[%s1 + $0x408] sm:$0xff]
      %v1317 = vld [vmem:[%s1 + $0x410] sm:$0xff]
      %v1318 = vld [vmem:[%s1 + $0x418] sm:$0xff]
      %v1319 = vld [vmem:[%s1 + $0x420] sm:$0xff]
      %v1320 = vld [vmem:[%s1 + $0x428] sm:$0xff]
      %v1321 = vld [vmem:[%s1 + $0x430] sm:$0xff]
      %v1322 = vld [vmem:[%s1 + $0x438] sm:$0xff]
      %v1323 = vld [vmem:[%s1 + $0x440] sm:$0xff]
      %v1324 = vld [vmem:[%s1 + $0x448] sm:$0xff]
      %v1325 = vld [vmem:[%s1 + $0x450] sm:$0xff]
      %v1326 = vld [vmem:[%s1 + $0x458] sm:$0xff]
      %v1327 = vld [vmem:[%s1 + $0x460] sm:$0xff]
      %v1328 = vld [vmem:[%s1 + $0x468] sm:$0xff]
      %v1329 = vld [vmem:[%s1 + $0x470] sm:$0xff]
      %v1330 = vld [vmem:[%s1 + $0x478] sm:$0xff]
      %1331 = vmatprep.subr.mxu0 0.0
      %1332 = vmatpush1.msra.mxu0 %v1315
      %1333 = vmatprep.subr.mxu0 0.0
      %1334 = vmatpush1.msra.mxu0 %v1316
      %1335 = vmatprep.subr.mxu0 0.0
      %1336 = vmatpush1.msra.mxu0 %v1317
      %1337 = vmatprep.subr.mxu0 0.0
      %1338 = vmatpush1.msra.mxu0 %v1318
      %1339 = vmatprep.subr.mxu0 0.0
      %1340 = vmatpush1.msra.mxu0 %v1319
      %1341 = vmatprep.subr.mxu0 0.0
      %1342 = vmatpush1.msra.mxu0 %v1320
      %1343 = vmatprep.subr.mxu0 0.0
      %1344 = vmatpush1.msra.mxu0 %v1321
      %1345 = vmatprep.subr.mxu0 0.0
      %1346 = vmatpush1.msra.mxu0 %v1322
      %1347 = vmatprep.subr.mxu0 0.0
      %1348 = vmatpush1.msra.mxu0 %v1323
      %1349 = vmatprep.subr.mxu0 0.0
      %1350 = vmatpush1.msra.mxu0 %v1324
      %1351 = vmatprep.subr.mxu0 0.0
      %1352 = vmatpush1.msra.mxu0 %v1325
      %1353 = vmatprep.subr.mxu0 0.0
      %1354 = vmatpush1.msra.mxu0 %v1326
      %1355 = vmatprep.subr.mxu0 0.0
      %1356 = vmatpush1.msra.mxu0 %v1327
      %1357 = vmatprep.subr.mxu0 0.0
      %1358 = vmatpush1.msra.mxu0 %v1328
      %1359 = vmatprep.subr.mxu0 0.0
      %1360 = vmatpush1.msra.mxu0 %v1329
      %1361 = vmatprep.subr.mxu0 0.0
      %1362 = vmatpush1.msra.mxu0 %v1330
      %1363 = vmatprep.subr.mxu0 0.0
      %1364 = vmatpush1.msra.mxu0 0.0
      %1365 = vmatprep.subr.mxu0 0.0
      %1366 = vmatpush1.msra.mxu0 0.0
      %1367 = vmatprep.subr.mxu0 0.0
      %1368 = vmatpush1.msra.mxu0 0.0
      %1369 = vmatprep.subr.mxu0 0.0
      %1370 = vmatpush1.msra.mxu0 0.0
      %1371 = vmatprep.subr.mxu0 0.0
      %1372 = vmatpush1.msra.mxu0 0.0
      %1373 = vmatprep.subr.mxu0 0.0
      %1374 = vmatpush1.msra.mxu0 0.0
      %1375 = vmatprep.subr.mxu0 0.0
      %1376 = vmatpush1.msra.mxu0 0.0
      %1377 = vmatprep.subr.mxu0 0.0
      %1378 = vmatpush1.msra.mxu0 0.0
      %1379 = vmatprep.subr.mxu0 0.0
      %1380 = vmatpush1.msra.mxu0 0.0
      %1381 = vmatprep.subr.mxu0 0.0
      %1382 = vmatpush1.msra.mxu0 0.0
      %1383 = vmatprep.subr.mxu0 0.0
      %1384 = vmatpush1.msra.mxu0 0.0
      %1385 = vmatprep.subr.mxu0 0.0
      %1386 = vmatpush1.msra.mxu0 0.0
      %1387 = vmatprep.subr.mxu0 0.0
      %1388 = vmatpush1.msra.mxu0 0.0
      %1389 = vmatprep.subr.mxu0 0.0
      %1390 = vmatpush1.msra.mxu0 0.0
      %1391 = vmatprep.subr.mxu0 0.0
      %1392 = vmatpush1.msra.mxu0 0.0
      %1393 = vmatprep.subr.mxu0 0.0
      %1394 = vmatpush1.msra.mxu0 0.0
      %1395 = vmatprep.mubr.f32.mxu0 0.0
      %1396 = vmatmul.mubr.f32.gmra.mrb[0].mxu0 %v1307
      %v1397 = vpop.f32.mrb[0].mxu0
      %v1398 = vadd.f32 0.0, %v1397
      %v1399 = vpop.f32.mrb[0].mxu0
      %1400 = vmatprep.mubr.f32.mxu0 0.0
      %1401 = vmatmul.mubr.f32.gmra.mrb[0].mxu0 %v1308
      %v1402 = vpop.f32.mrb[0].mxu0
      %v1403 = vadd.f32 0.0, %v1402
      %v1404 = vpop.f32.mrb[0].mxu0
      %1405 = vmatprep.mubr.f32.mxu0 0.0
      %1406 = vmatmul.mubr.f32.gmra.mrb[0].mxu0 %v1309
      %v1407 = vpop.f32.mrb[0].mxu0
      %v1408 = vadd.f32 0.0, %v1407
      %v1409 = vpop.f32.mrb[0].mxu0
      %1410 = vmatprep.mubr.f32.mxu0 0.0
      %1411 = vmatmul.mubr.f32.gmra.mrb[0].mxu0 %v1310
      %v1412 = vpop.f32.mrb[0].mxu0
      %v1413 = vadd.f32 0.0, %v1412
      %v1414 = vpop.f32.mrb[0].mxu0
      %1415 = vmatprep.mubr.f32.mxu0 0.0
      %1416 = vmatmul.mubr.f32.gmra.mrb[0].mxu0 %v1311
      %v1417 = vpop.f32.mrb[0].mxu0
      %v1418 = vadd.f32 0.0, %v1417
      %v1419 = vpop.f32.mrb[0].mxu0
      %1420 = vmatprep.mubr.f32.mxu0 0.0
      %1421 = vmatmul.mubr.f32.gmra.mrb[0].mxu0 %v1312
      %v1422 = vpop.f32.mrb[0].mxu0
      %v1423 = vadd.f32 0.0, %v1422
      %v1424 = vpop.f32.mrb[0].mxu0
      %1425 = vmatprep.mubr.f32.mxu0 0.0
      %1426 = vmatmul.mubr.f32.gmra.mrb[0].mxu0 %v1313
      %v1427 = vpop.f32.mrb[0].mxu0
      %v1428 = vadd.f32 0.0, %v1427
      %v1429 = vpop.f32.mrb[0].mxu0
      %1430 = vmatprep.mubr.f32.mxu0 0.0
      %1431 = vmatmul.mubr.f32.gmra.mrb[0].mxu0 %v1314
      %v1432 = vpop.f32.mrb[0].mxu0
      %v1433 = vadd.f32 0.0, %v1432
      %v1434 = vpop.f32.mrb[0].mxu0
      %1435 = vdwg.mxu0
      %v1436 = vadd.f32 %v1299, %v1398
      %v1437 = vadd.f32 %v1300, %v1403
      %v1438 = vadd.f32 %v1301, %v1408
      %v1439 = vadd.f32 %v1302, %v1413
      %v1440 = vadd.f32 %v1303, %v1418
      %v1441 = vadd.f32 %v1304, %v1423
      %v1442 = vadd.f32 %v1305, %v1428
      %v1443 = vadd.f32 %v1306, %v1433
      %1444 = vst [vmem:[%s215] sm:$0xff] %v1436
      %1445 = vst [vmem:[%s215 + $0x8] sm:$0xff] %v1437
      %1446 = vst [vmem:[%s215 + $0x10] sm:$0xff] %v1438
      %1447 = vst [vmem:[%s215 + $0x18] sm:$0xff] %v1439
      %1448 = vst [vmem:[%s215 + $0x20] sm:$0xff] %v1440
      %1449 = vst [vmem:[%s215 + $0x28] sm:$0xff] %v1441
      %1450 = vst [vmem:[%s215 + $0x30] sm:$0xff] %v1442
      %1451 = vst [vmem:[%s215 + $0x38] sm:$0xff] %v1443
      %v1452 = vadd.f32 %v1436, %v1437
      %v1453 = vadd.f32 %v1452, %v1438
      %v1454 = vadd.f32 %v1453, %v1439
      %v1455 = vadd.f32 %v1454, %v1440
      %v1456 = vadd.f32 %v1455, %v1441
      %v1457 = vadd.f32 %v1456, %v1442
      %v1458 = vadd.f32 %v1457, %v1443
      %1459 = vst [vmem:[%s220] sm:$0xff] %v1458
      %v1460 = vmul.f32 %v1436, %v1436
      %v1461 = vmul.f32 %v1437, %v1437
      %v1462 = vmul.f32 %v1438, %v1438
      %v1463 = vmul.f32 %v1439, %v1439
      %v1464 = vmul.f32 %v1440, %v1440
      %v1465 = vmul.f32 %v1441, %v1441
      %v1466 = vmul.f32 %v1442, %v1442
      %v1467 = vmul.f32 %v1443, %v1443
      %v1468 = vadd.f32 %v1460, %v1461
      %v1469 = vadd.f32 %v1468, %v1462
      %v1470 = vadd.f32 %v1469, %v1463
      %v1471 = vadd.f32 %v1470, %v1464
      %v1472 = vadd.f32 %v1471, %v1465
      %v1473 = vadd.f32 %v1472, %v1466
      %v1474 = vadd.f32 %v1473, %v1467
      %1475 = vst [vmem:[%s224] sm:$0xff] %v1474
      %s1476 = smul.u32 8, %s16
      %p1477 = scmp.lt.s32.totalorder %s1476, 15
      %s1478 = scalar_select %p1477, %s1476, 15
      %s1479 = smul.addr %s1478, 8
      %s1480 = scalar_lea.vmem %s2, %s1479
      %p1481 = scmp.lt.s32.totalorder %s16, 1
      %s1482 = scalar_select %p1481, %s16, 1
      %s1483 = smul.addr %s1482, 8
      %s1484 = scalar_lea.vmem %s3, %s1483
      %p1485 = scmp.lt.s32.totalorder %s16, 1
      %s1486 = scalar_select %p1485, %s16, 1
      %s1487 = smul.addr %s1486, 8
      %s1488 = scalar_lea.vmem %s4, %s1487
      // Predicated region
      $region29: #{basic_block_forward.7} parent=27 // pred_check
        %p1489 = pneg %p81
      $region30: #{basic_block_forward.7} parent=27 // pred_check_branch
        %1491 = sbr.rel (%p1489) target = $region32
      $region31: #{basic_block_forward.7} parent=27 // pred_region
        %s1492 = smul.u32 8, %s16
      $region32: #{basic_block_forward.7} parent=27 // pred_fallthru
        _
      // Predicated region
      $region33: #{basic_block_forward.7} parent=27 // pred_check
        %p1493 = pneg %p107
      $region34: #{basic_block_forward.7} parent=27 // pred_check_branch
        %1495 = sbr.rel (%p1493) target = $region36
      $region35: #{basic_block_forward.7} parent=27 // pred_region
        _
      $region36: #{basic_block_forward.7} parent=27 // pred_fallthru
        _
      // Predicated region
      $region37: #{basic_block_forward.7} parent=27 // pred_check
        %p1496 = pneg %p133
      $region38: #{basic_block_forward.7} parent=27 // pred_check_branch
        %1498 = sbr.rel (%p1496) target = $region40
      $region39: #{basic_block_forward.7} parent=27 // pred_region
        _
      $region40: #{basic_block_forward.7} parent=27 // pred_fallthru
        _
    $region28: #{basic_block_forward.7} parent=5 // pred_fallthru
      _
    %p1499 = scmp.le.s32.totalorder 2, %s11
    // Predicated region
    $region41: #{basic_block_forward.7} parent=5 // pred_check
      %p1500 = pneg %p1499
    $region42: #{basic_block_forward.7} parent=5 // pred_check_branch
      %1502 = sbr.rel (%p1500) target = $region44
    $region43: #{basic_block_forward.7} parent=5 // pred_region
      %s1503 = ssub.s32 %s11, 2
      // Predicated region
      $region45: #{basic_block_forward.7} parent=43 // pred_check
        %p1504 = pneg %p87
      $region46: #{basic_block_forward.7} parent=43 // pred_check_branch
        %1506 = sbr.rel (%p1504) target = $region48
      $region47: #{basic_block_forward.7} parent=43 // pred_region
        %s1507 = smul.u32 8, %s17
        %p1508 = scmp.lt.s32.totalorder %s1507, 15
        %s1509 = scalar_select %p1508, %s1507, 15
        %s1510 = smul.addr %s1509, 8
        %s1511 = scalar_lea.vmem %s2, %s1510
      $region48: #{basic_block_forward.7} parent=43 // pred_fallthru
        _
      // Predicated region
      $region49: #{basic_block_forward.7} parent=43 // pred_check
        %p1512 = pneg %p113
      $region50: #{basic_block_forward.7} parent=43 // pred_check_branch
        %1514 = sbr.rel (%p1512) target = $region52
      $region51: #{basic_block_forward.7} parent=43 // pred_region
        %p1515 = scmp.lt.s32.totalorder %s17, 1
        %s1516 = scalar_select %p1515, %s17, 1
        %s1517 = smul.addr %s1516, 8
        %s1518 = scalar_lea.vmem %s3, %s1517
      $region52: #{basic_block_forward.7} parent=43 // pred_fallthru
        _
      // Predicated region
      $region53: #{basic_block_forward.7} parent=43 // pred_check
        %p1519 = pneg %p139
      $region54: #{basic_block_forward.7} parent=43 // pred_check_branch
        %1521 = sbr.rel (%p1519) target = $region56
      $region55: #{basic_block_forward.7} parent=43 // pred_region
        %p1522 = scmp.lt.s32.totalorder %s17, 1
        %s1523 = scalar_select %p1522, %s17, 1
        %s1524 = smul.addr %s1523, 8
        %s1525 = scalar_lea.vmem %s4, %s1524
      $region56: #{basic_block_forward.7} parent=43 // pred_fallthru
        _
    $region44: #{basic_block_forward.7} parent=5 // pred_fallthru
      _
  $region6: #{basic_block_forward.7} parent=0 // loop_footer
    %s15 = sadd.s32 1, %s11
  $region7: #{basic_block_forward.7} parent=0 // loop_footer_branch
    %10 = sbr.rel target = $region3
  $region8: #{basic_block_forward.7} parent=0 // loop_exit
    _

</llo_original>
